<compile_context>
chip_gen: v7x
topology: tpu7x:2x2x1
jax: 0.10.0
libtpu: 0.0.40
codegen_flags: <defaults>
</compile_context>

<pallas_src>
import functools
import math

import jax
import jax.numpy as jnp
from jax.experimental import pallas as pl
from jax.experimental.pallas import tpu as pltpu

ALPHA = 0.2          # LeakyReLU slope of the GAT layers
NEG_BIG = -9e15      # mask value used by the torch module
LN_EPS = 1e-5
BN_EPS = 1e-5


# ---------------------------------------------------------------------------
# Fused kernel: adjacency mask + 4 GATs (banded & full, h & w) + direction sum
#               + LayerNorm + Conv1x1/BN/SiLU + grouped Conv1x1/BN/SiLU.
# One grid step per batch element; everything stays VMEM-resident.
# ---------------------------------------------------------------------------
def _gat_ln_ffn_kernel(nodes_ref, hp_ref, ha2t_ref, ow_ref, oa2t_ref,
                       lng_ref, lnb_ref, w1_ref, s1_ref, b1_ref,
                       w2_ref, s2_ref, b2_ref, o_ref,
                       *, nheads, nhid, nclass, alpha):
    ndir, N, C = nodes_ref.shape
    nh2 = 2 * nheads                       # heads of both variants ("_3" + "_all")

    def leaky(v):                          # LeakyReLU as one VPU max
        return jnp.maximum(v, alpha * v)

    def elu(v):
        return jnp.where(v > 0, v, jnp.exp(v) - 1.0)

    def masked_softmax(e, mask):
        logits = jnp.where(mask, e, NEG_BIG)
        m = jnp.max(logits, axis=1, keepdims=True)
        p = jnp.exp(logits - m)
        s = jnp.sum(p, axis=1, keepdims=True)
        return p * pl.reciprocal(s, approx=True)          # divide -> EUP slot

    # |i - j| <= 1 band mask built in-kernel (no DMA'd input needed).
    row = jax.lax.broadcasted_iota(jnp.int32, (N, N), 0)
    col = jax.lax.broadcasted_iota(jnp.int32, (N, N), 1)
    band = jnp.abs(row - col) <= 1

    g = jnp.zeros((N, nclass), jnp.float32)

    for d in range(ndir):                  # static direction loop: 0 = h-GATs, 1 = w-GATs
        X = nodes_ref[d]                   # (N, C) f32 node features
        Xb = X.astype(jnp.bfloat16)        # bf16 copy for MXU operands

        # torch: adj = where(cos >= 0, cos, 0); only adj > 0 is consumed.
        # sign(cos) == sign(<x_i, x_j>), so the f32 Gram sign suffices; kept in
        # f32 so bf16 rounding cannot flip the discrete mask.
        gram = jax.lax.dot_general(X, X, (((1,), (1,)), ((), ())),
                                   preferred_element_type=jnp.float32)
        mask_all = gram > 0.0
        masks = (jnp.logical_and(mask_all, band), mask_all)   # (banded "*_3", "*_all")

        # Head projections of BOTH variants in one lane-dense MXU pass:
        #   hp_ref[d] = [ per-head V columns (nh2*nhid) | per-head W@a1 columns (nh2) ]
        P = jnp.dot(Xb, hp_ref[d], preferred_element_type=jnp.float32)   # (N, nh2*(nhid+1))
        V_all = P[:, :nh2 * nhid]
        S1 = P[:, nh2 * nhid:]
        # a2 scores for all heads as rows: (nh2, C) x (N, C)^T -> (nh2, N)
        S2 = jax.lax.dot_general(ha2t_ref[d], Xb, (((1,), (1,)), ((), ())),
                                 preferred_element_type=jnp.float32)

        for v in range(2):                 # variant 0 = banded "*_3", 1 = "*_all"
            mask = masks[v]
            # Out-layer use of the head-concat is linear -> accumulate per-head
            # contributions (== Hcat @ [Vout | Wout a1]) without a lane concat.
            acc = jnp.zeros((N, nclass + 1), jnp.float32)   # [ Hcat@Vout | Hcat@(Wout a1) ]
            f2 = jnp.zeros((1, N), jnp.float32)             # (Qout a2)^T Hcat^T
            for k in range(nheads):        # tiny static loop; projections already batched
                i = v * nheads + k
                e = leaky(S1[:, i:i + 1] + S2[i:i + 1, :])            # (N, N)
                att = masked_softmax(e, mask)
                va = V_all[:, i * nhid:(i + 1) * nhid]                # (N, nhid)
                hk = elu(jnp.dot(att.astype(jnp.bfloat16), va.astype(jnp.bfloat16),
                                 preferred_element_type=jnp.float32))
                hkb = hk.astype(jnp.bfloat16)
                acc = acc + jnp.dot(hkb, ow_ref[d, v, k],
                                    preferred_element_type=jnp.float32)
                f2 = f2 + jax.lax.dot_general(oa2t_ref[d, v, k], hkb,
                                              (((1,), (1,)), ((), ())),
                                              preferred_element_type=jnp.float32)
            vo = acc[:, :nclass]
            f1 = acc[:, nclass:nclass + 1]
            att_o = masked_softmax(leaky(f1 + f2), mask)
            g = g + elu(jnp.dot(att_o.astype(jnp.bfloat16), vo.astype(jnp.bfloat16),
                                preferred_element_type=jnp.float32))

    # ---- fused epilogue: LayerNorm + ffn.0 (Conv1x1+BN+SiLU) + ffn.2 (grouped) --
    mu = jnp.mean(g, axis=1, keepdims=True)
    xc = g - mu
    var = jnp.mean(xc * xc, axis=1, keepdims=True)
    xln = xc * jax.lax.rsqrt(var + LN_EPS) * lng_ref[...] + lnb_ref[...]

    y = jnp.dot(xln.astype(jnp.bfloat16), w1_ref[...], preferred_element_type=jnp.float32)
    y = y * s1_ref[...] + b1_ref[...]
    y = y * jax.nn.sigmoid(y)

    # Grouped 1x1 conv (groups=C/2, 2 outputs per input channel) as a tiny dense
    # matmul.  TODO(synk): at large C use an interleave-broadcast * w2 instead.
    z = jnp.dot(y.astype(jnp.bfloat16), w2_ref[...], preferred_element_type=jnp.float32)
    z = z * s2_ref[...] + b2_ref[...]
    z = z * jax.nn.sigmoid(z)
    o_ref[...] = z.astype(o_ref.dtype)


def fused_gat_ln_ffn(nodes, gat_arrays, ffn_arrays, *, nheads, nhid, nclass,
                     alpha=ALPHA):
    """nodes: (B, 2, N, C) -> (B, N, nclass) fused GAT-sum + LN + FFN result."""
    B, D, N, C = nodes.shape
    kernel = functools.partial(_gat_ln_ffn_kernel, nheads=nheads, nhid=nhid,
                               nclass=nclass, alpha=alpha)

    def const_spec(a):                     # whole array, resident across the batch grid
        zeros = (0,) * a.ndim
        return pl.BlockSpec(a.shape, lambda b: zeros)

    in_specs = ([pl.BlockSpec((None, D, N, C), lambda b: (b, 0, 0, 0))]
                + [const_spec(a) for a in gat_arrays]
                + [const_spec(a) for a in ffn_arrays])
    out_spec = pl.BlockSpec((None, N, nclass), lambda b: (b, 0, 0))

    nh2 = 2 * nheads
    per_dir = (2 * N * N * C + 2 * N * C * nh2 * (nhid + 1) + 2 * nh2 * C * N
               + nh2 * (12 * N * N + 2 * N * N * nhid
                        + 2 * N * nhid * (nclass + 2) + 4 * N)
               + 2 * (12 * N * N + 2 * N * N * nclass + 2 * N * nclass))
    ffn_flops = N * (4 * C * (C // 2) + 20 * C)
    cost = pl.CostEstimate(
        flops=int(B * (D * per_dir + ffn_flops)),
        transcendentals=int(B * (D * ((nh2 + 2) * N * N + nh2 * N * nhid
                                      + 2 * N * nclass) + N * (C + C // 2))),
        bytes_accessed=int(4 * B * (D * N * C + N * nclass)
                           + sum(int(a.size) * a.dtype.itemsize
                                 for a in list(gat_arrays) + list(ffn_arrays))),
    )
    return pl.pallas_call(
        kernel,
        out_shape=jax.ShapeDtypeStruct((B, N, nclass), jnp.float32),
        grid=(B,),
        in_specs=in_specs,
        out_specs=out_spec,
        compiler_params=pltpu.CompilerParams(
            dimension_semantics=("parallel",),          # batch-parallel (both v7x TCs)
            vmem_limit_bytes=32 * 1024 * 1024),
        cost_estimate=cost,
    )(nodes, *gat_arrays, *ffn_arrays)


# ---------------------------------------------------------------------------
# Parameter init (raw torch layout) and host-side packing for the kernel
# ---------------------------------------------------------------------------
def init_params(key, C, nheads):
    assert C % nheads == 0
    nhid = C // nheads
    nclass = C   # module stores GAT output into (C, W) buffers -> nclass must equal C
    k_gats, k_ln, k_ffn = jax.random.split(key, 3)

    def xavier(k, shape, gain=1.414):
        fin, fout = shape
        a = gain * math.sqrt(6.0 / (fin + fout))
        return jax.random.uniform(k, shape, jnp.float32, -a, a)

    def init_layer(k, fin, fout):
        kw, kq, kv, ka = jax.random.split(k, 4)
        return {"W": xavier(kw, (fin, fout)), "Q": xavier(kq, (fin, fout)),
                "V": xavier(kv, (fin, fout)), "a": xavier(ka, (2 * fout, 1))}

    def init_gat(k):
        ks = jax.random.split(k, nheads + 1)
        return {"heads": [init_layer(ks[i], C, nhid) for i in range(nheads)],
                "out": init_layer(ks[-1], C, nclass)}

    kg = jax.random.split(k_gats, 4)
    params = {"gat_h3": init_gat(kg[0]), "gat_hall": init_gat(kg[1]),
              "gat_w3": init_gat(kg[2]), "gat_wall": init_gat(kg[3])}

    kl1, kl2 = jax.random.split(k_ln)
    params["ln_gamma"] = 1.0 + 0.1 * jax.random.normal(kl1, (C,), jnp.float32)
    params["ln_beta"] = 0.1 * jax.random.normal(kl2, (C,), jnp.float32)

    kf = jax.random.split(k_ffn, 10)
    Ch = C // 2
    params["ffn"] = {
        "w1": 0.3 * jax.random.normal(kf[0], (Ch, C), jnp.float32),   # Conv2d(C, C/2, 1) (out, in)
        "bn1_gamma": 1.0 + 0.1 * jax.random.normal(kf[1], (Ch,), jnp.float32),
        "bn1_beta": 0.1 * jax.random.normal(kf[2], (Ch,), jnp.float32),
        "bn1_mean": 0.05 * jax.random.normal(kf[3], (Ch,), jnp.float32),
        "bn1_var": 1.0 + 0.1 * jax.random.uniform(kf[4], (Ch,), jnp.float32),
        "w2": 0.5 * jax.random.normal(kf[5], (C,), jnp.float32),      # DWConv(C/2, C, 1) per-out scalar
        "bn2_gamma": 1.0 + 0.1 * jax.random.normal(kf[6], (C,), jnp.float32),
        "bn2_beta": 0.1 * jax.random.normal(kf[7], (C,), jnp.float32),
        "bn2_mean": 0.05 * jax.random.normal(kf[8], (C,), jnp.float32),
        "bn2_var": 1.0 + 0.1 * jax.random.uniform(kf[9], (C,), jnp.float32),
    }
    return params


def _pack_direction(g3, gall, nheads, nhid, nclass):
    def head_v(gp):                       # (C, nheads*nhid)
        return jnp.concatenate([gp["heads"][k]["V"] for k in range(nheads)], axis=1)

    def head_a1(gp):                      # (C, nheads): per-head W @ a[:nhid]
        return jnp.concatenate([gp["heads"][k]["W"] @ gp["heads"][k]["a"][:nhid]
                                for k in range(nheads)], axis=1)

    def head_a2t(gp):                     # (nheads, C): per-head (Q @ a[nhid:])^T
        return jnp.concatenate([(gp["heads"][k]["Q"] @ gp["heads"][k]["a"][nhid:]).T
                                for k in range(nheads)], axis=0)

    def out_w(gp):                        # (nheads, nhid, nclass+1): head-rows of [Vout | Wout a1]
        w = jnp.concatenate([gp["out"]["V"],
                             gp["out"]["W"] @ gp["out"]["a"][:nclass]], axis=1)
        return w.reshape(nheads, nhid, nclass + 1)

    def out_a2t(gp):                      # (nheads, 1, nhid): head-cols of (Qout a2)^T
        a2t = (gp["out"]["Q"] @ gp["out"]["a"][nclass:]).T
        return a2t.reshape(1, nheads, nhid).transpose(1, 0, 2)

    hp = jnp.concatenate([head_v(g3), head_v(gall), head_a1(g3), head_a1(gall)], axis=1)
    ha2t = jnp.concatenate([head_a2t(g3), head_a2t(gall)], axis=0)
    ow = jnp.stack([out_w(g3), out_w(gall)])
    oa2t = jnp.stack([out_a2t(g3), out_a2t(gall)])
    return hp, ha2t, ow, oa2t


def pack_gat_params(params, nheads, nhid, nclass):
    # direction 0 = h-GATs (nodes = column positions), direction 1 = w-GATs.
    dir_h = _pack_direction(params["gat_h3"], params["gat_hall"], nheads, nhid, nclass)
    dir_w = _pack_direction(params["gat_w3"], params["gat_wall"], nheads, nhid, nclass)
    # MXU operands pre-cast to bf16 (accumulation stays f32 in-kernel).
    return [jnp.stack([ah, aw]).astype(jnp.bfloat16) for ah, aw in zip(dir_h, dir_w)]


def pack_ln_ffn_params(params):
    f = params["ffn"]
    C = params["ln_gamma"].shape[0]
    Ch = C // 2
    s1 = f["bn1_gamma"] / jnp.sqrt(f["bn1_var"] + BN_EPS)
    b1 = f["bn1_beta"] - f["bn1_mean"] * s1
    s2 = f["bn2_gamma"] / jnp.sqrt(f["bn2_var"] + BN_EPS)
    b2 = f["bn2_beta"] - f["bn2_mean"] * s2
    # grouped 1x1 conv (groups=C/2, 2 outputs per input channel) as dense (C/2, C)
    cols = jnp.arange(C)
    w2m = jnp.zeros((Ch, C), jnp.float32).at[cols // 2, cols].set(f["w2"])
    return [params["ln_gamma"][None, :], params["ln_beta"][None, :],
            f["w1"].T.astype(jnp.bfloat16), s1[None, :], b1[None, :],
            w2m.astype(jnp.bfloat16), s2[None, :], b2[None, :]]


# ---------------------------------------------------------------------------
# Full forward
# ---------------------------------------------------------------------------
def gat_featurehw_forward(x_nchw, params):
    x = x_nchw.astype(jnp.float32)
    B, C, H, W = x.shape
    # The torch `.expand(B, C, H, W)` of (B, C, 1, H) tensors requires H == W.
    assert H == W, "GAT_FeatureHW_try requires H == W"
    nheads = len(params["gat_h3"]["heads"])
    nhid = C // nheads
    nclass = params["gat_h3"]["out"]["V"].shape[1]
    assert nclass == C, "GAT nclass must equal C (outputs stored into (C, W) buffers)"

    # Row/column mean pooling (cheap XLA reductions); nodes channels-last so C
    # sits on TPU lanes inside the kernel.
    xh_nodes = jnp.transpose(jnp.mean(x, axis=2), (0, 2, 1))   # (B, W, C) h-direction nodes
    xw_nodes = jnp.transpose(jnp.mean(x, axis=3), (0, 2, 1))   # (B, H, C) w-direction nodes
    nodes = jnp.stack([xh_nodes, xw_nodes], axis=1)            # (B, 2, N, C), N == H == W

    gat_arrays = pack_gat_params(params, nheads, nhid, nclass)
    ffn_arrays = pack_ln_ffn_params(params)
    z = fused_gat_ln_ffn(nodes, gat_arrays, ffn_arrays,
                         nheads=nheads, nhid=nhid, nclass=nclass)   # (B, N=W, C)

    # Pre-FFN tensor is constant along H (see expand above), so the fused
    # per-node result is broadcast over H and transposed back to NCHW.
    out = jnp.broadcast_to(z[:, None, :, :], (B, H, W, C))
    return jnp.transpose(out, (0, 3, 1, 2))


# ---------------------------------------------------------------------------
# Pure-JAX reference (faithful eval-mode translation of the torch module)
# ---------------------------------------------------------------------------
def _leaky_ref(v):
    return jnp.where(v > 0, v, ALPHA * v)


def _elu_ref(v):
    return jnp.where(v > 0, v, jnp.exp(v) - 1.0)


def _cos_sim_ref(Xn, eps=1e-8):
    g = Xn @ Xn.T
    n = jnp.sqrt(jnp.sum(Xn * Xn, axis=1))
    return g / jnp.maximum(n[:, None] * n[None, :], eps)


def _gat_layer_ref(Xn, adj, lp, concat):
    h = Xn @ lp["W"]
    q = Xn @ lp["Q"]
    v = Xn @ lp["V"]
    fo = lp["W"].shape[1]
    e = _leaky_ref(h @ lp["a"][:fo] + (q @ lp["a"][fo:]).T)
    logits = jnp.where(adj > 0, e, NEG_BIG)
    att = jax.nn.softmax(logits, axis=1)
    hp = att @ v
    return _elu_ref(hp) if concat else hp


def _gat_module_ref(Xn, adj, gp):
    hs = [_gat_layer_ref(Xn, adj, hp_, True) for hp_ in gp["heads"]]
    xc = jnp.concatenate(hs, axis=1)
    return _elu_ref(_gat_layer_ref(xc, adj, gp["out"], False))


def reference_forward(x_nchw, params):
    x = x_nchw.astype(jnp.float32)
    B, C, H, W = x.shape
    x_h = jnp.mean(x, axis=2)   # (B, C, W)
    x_w = jnp.mean(x, axis=3)   # (B, C, H)
    iw = jnp.arange(W)
    band_w = (jnp.abs(iw[:, None] - iw[None, :]) <= 1).astype(jnp.float32)
    ih = jnp.arange(H)
    band_h = (jnp.abs(ih[:, None] - ih[None, :]) <= 1).astype(jnp.float32)

    Gh3, Ghall, Gw3, Gwall = [], [], [], []
    for b in range(B):
        xh = x_h[b].T
        ch = _cos_sim_ref(xh)
        adj_h = jnp.where(ch >= 0, ch, 0.0)
        Ghall.append(_gat_module_ref(xh, adj_h, params["gat_hall"]).T)
        Gh3.append(_gat_module_ref(xh, adj_h * band_w, params["gat_h3"]).T)
        xw = x_w[b].T
        cw = _cos_sim_ref(xw)
        adj_w = jnp.where(cw >= 0, cw, 0.0)
        Gwall.append(_gat_module_ref(xw, adj_w, params["gat_wall"]).T)
        Gw3.append(_gat_module_ref(xw, adj_w * band_h, params["gat_w3"]).T)

    Gat_hsum = jnp.stack(Gh3) + jnp.stack(Ghall)     # (B, C, W)
    Gat_wsum = jnp.stack(Gw3) + jnp.stack(Gwall)     # (B, C, H)
    Gat = jnp.broadcast_to((Gat_hsum + Gat_wsum)[:, :, None, :], (B, C, H, W))

    g = jnp.transpose(Gat, (0, 2, 3, 1))             # (B, H, W, C)
    mu = jnp.mean(g, axis=-1, keepdims=True)
    var = jnp.mean((g - mu) ** 2, axis=-1, keepdims=True)
    g = (g - mu) / jnp.sqrt(var + LN_EPS) * params["ln_gamma"] + params["ln_beta"]

    f = params["ffn"]
    y = jnp.einsum("bhwc,oc->bhwo", g, f["w1"])
    y = (y - f["bn1_mean"]) * (f["bn1_gamma"] / jnp.sqrt(f["bn1_var"] + BN_EPS)) + f["bn1_beta"]
    y = y * jax.nn.sigmoid(y)
    z = y[..., jnp.arange(C) // 2] * f["w2"]
    z = (z - f["bn2_mean"]) * (f["bn2_gamma"] / jnp.sqrt(f["bn2_var"] + BN_EPS)) + f["bn2_beta"]
    z = z * jax.nn.sigmoid(z)
    return jnp.transpose(z, (0, 3, 1, 2))


if __name__ == "__main__":
    key = jax.random.PRNGKey(0)
    kx, kp = jax.random.split(key)

    # GAT_FeatureHW_try(c1=c2=8, nheads=2, nclass=8); the module requires H == W.
    B, C, H, W = 2, 8, 16, 16
    NHEADS = 2
    x = jax.random.normal(kx, (B, C, H, W), jnp.float32)
    params = init_params(kp, C, NHEADS)

    fwd = jax.jit(gat_featurehw_forward)
    out = jax.block_until_ready(fwd(x, params))
    assert out.shape == (B, C, H, W), out.shape

    ref = jax.block_until_ready(reference_forward(x, params))
    err = float(jnp.max(jnp.abs(out - ref)))
    # Tolerance accounts for bf16 MXU operands (f32 accumulation) in the kernel
    # vs the fully-f32 reference.
    assert jnp.allclose(out, ref, rtol=5e-2, atol=5e-2), f"max abs err {err}"

    print("KERNEL_OK")
</pallas_src>

<mosaic_0001>
module attributes {stable_mosaic.version = 11 : i64} {
  func.func @_gat_ln_ffn_kernel(%arg0: i32, %arg1: memref<1x2x16x8xf32, #tpu.memory_space<vmem>>, %arg2: memref<2x8x20xbf16, #tpu.memory_space<vmem>>, %arg3: memref<2x4x8xbf16, #tpu.memory_space<vmem>>, %arg4: memref<2x2x2x4x9xbf16, #tpu.memory_space<vmem>>, %arg5: memref<2x2x2x1x4xbf16, #tpu.memory_space<vmem>>, %arg6: memref<1x8xf32, #tpu.memory_space<vmem>>, %arg7: memref<1x8xf32, #tpu.memory_space<vmem>>, %arg8: memref<8x4xbf16, #tpu.memory_space<vmem>>, %arg9: memref<1x4xf32, #tpu.memory_space<vmem>>, %arg10: memref<1x4xf32, #tpu.memory_space<vmem>>, %arg11: memref<4x8xbf16, #tpu.memory_space<vmem>>, %arg12: memref<1x8xf32, #tpu.memory_space<vmem>>, %arg13: memref<1x8xf32, #tpu.memory_space<vmem>>, %arg14: memref<1x16x8xf32, #tpu.memory_space<vmem>>) attributes {dimension_semantics = [#tpu.dimension_semantics<parallel>], iteration_bounds = array<i64: 2>, scalar_prefetch = 0 : i64, scratch_operands = 0 : i64, tpu.core_type = #tpu.core_type<tc>, window_params = [{transform_indices = @transform_0, window_bounds = array<i64: 1, 2, 16, 8>}, {pipeline_mode = #tpu.pipeline_mode<synchronous>, transform_indices = @transform_1, window_bounds = array<i64: 2, 8, 20>}, {pipeline_mode = #tpu.pipeline_mode<synchronous>, transform_indices = @transform_2, window_bounds = array<i64: 2, 4, 8>}, {pipeline_mode = #tpu.pipeline_mode<synchronous>, transform_indices = @transform_3, window_bounds = array<i64: 2, 2, 2, 4, 9>}, {pipeline_mode = #tpu.pipeline_mode<synchronous>, transform_indices = @transform_4, window_bounds = array<i64: 2, 2, 2, 1, 4>}, {pipeline_mode = #tpu.pipeline_mode<synchronous>, transform_indices = @transform_5, window_bounds = array<i64: 1, 8>}, {pipeline_mode = #tpu.pipeline_mode<synchronous>, transform_indices = @transform_6, window_bounds = array<i64: 1, 8>}, {pipeline_mode = #tpu.pipeline_mode<synchronous>, transform_indices = @transform_7, window_bounds = array<i64: 8, 4>}, {pipeline_mode = #tpu.pipeline_mode<synchronous>, transform_indices = @transform_8, window_bounds = array<i64: 1, 4>}, {pipeline_mode = #tpu.pipeline_mode<synchronous>, transform_indices = @transform_9, window_bounds = array<i64: 1, 4>}, {pipeline_mode = #tpu.pipeline_mode<synchronous>, transform_indices = @transform_10, window_bounds = array<i64: 4, 8>}, {pipeline_mode = #tpu.pipeline_mode<synchronous>, transform_indices = @transform_11, window_bounds = array<i64: 1, 8>}, {pipeline_mode = #tpu.pipeline_mode<synchronous>, transform_indices = @transform_12, window_bounds = array<i64: 1, 8>}, {transform_indices = @transform_13, window_bounds = array<i64: 1, 16, 8>}]} {
    %0 = tpu.iota {dimensions = array<i32: 0>} : vector<16x16xi32>
    %1 = tpu.iota {dimensions = array<i32: 1>} : vector<16x16xi32>
    %2 = arith.subi %0, %1 : vector<16x16xi32>
    %3 = math.absi %2 : vector<16x16xi32>
    %c1_i32 = arith.constant 1 : i32
    %4 = vector.broadcast %c1_i32 : i32 to vector<16x16xi32>
    %5 = arith.cmpi sle, %3, %4 : vector<16x16xi32>
    %cst = arith.constant 0.000000e+00 : f32
    %6 = vector.broadcast %cst : f32 to vector<16x8xf32>
    %c0 = arith.constant 0 : index
    %c0_0 = arith.constant 0 : index
    %c0_1 = arith.constant 0 : index
    %c0_2 = arith.constant 0 : index
    %7 = vector.load %arg1[%c0, %c0_0, %c0_1, %c0_2] : memref<1x2x16x8xf32, #tpu.memory_space<vmem>>, vector<1x1x16x8xf32>
    %8 = vector.shape_cast %7 : vector<1x1x16x8xf32> to vector<16x8xf32>
    %9 = arith.truncf %8 : vector<16x8xf32> to vector<16x8xbf16>
    %cst_3 = arith.constant dense<0.000000e+00> : vector<16x16xf32>
    %10 = tpu.matmul %8, %8, %cst_3 {dimension_numbers = #tpu.dot_dimension_numbers<[1], [1], [0], [0], [0, 0, 1, 0], [], []>} : vector<16x8xf32>, vector<16x8xf32>, vector<16x16xf32> -> vector<16x16xf32>
    %cst_4 = arith.constant 0.000000e+00 : f32
    %11 = vector.broadcast %cst_4 : f32 to vector<16x16xf32>
    %12 = arith.cmpf ogt, %10, %11 : vector<16x16xf32>
    %13 = arith.andi %12, %5 : vector<16x16xi1>
    %c0_5 = arith.constant 0 : index
    %c0_6 = arith.constant 0 : index
    %c0_7 = arith.constant 0 : index
    %14 = vector.load %arg2[%c0_5, %c0_6, %c0_7] : memref<2x8x20xbf16, #tpu.memory_space<vmem>>, vector<1x8x20xbf16>
    %15 = vector.shape_cast %14 : vector<1x8x20xbf16> to vector<8x20xbf16>
    %cst_8 = arith.constant dense<0.000000e+00> : vector<16x20xf32>
    %16 = tpu.matmul %9, %15, %cst_8 {dimension_numbers = #tpu.dot_dimension_numbers<[1], [0], [0], [1], [0, 0, 1, 1], [], []>} : vector<16x8xbf16>, vector<8x20xbf16>, vector<16x20xf32> -> vector<16x20xf32>
    %17 = vector.extract_strided_slice %16 {offsets = [0, 0], sizes = [16, 16], strides = [1, 1]} : vector<16x20xf32> to vector<16x16xf32>
    %18 = vector.extract_strided_slice %16 {offsets = [0, 16], sizes = [16, 4], strides = [1, 1]} : vector<16x20xf32> to vector<16x4xf32>
    %c0_9 = arith.constant 0 : index
    %c0_10 = arith.constant 0 : index
    %c0_11 = arith.constant 0 : index
    %19 = vector.load %arg3[%c0_9, %c0_10, %c0_11] : memref<2x4x8xbf16, #tpu.memory_space<vmem>>, vector<1x4x8xbf16>
    %20 = vector.shape_cast %19 : vector<1x4x8xbf16> to vector<4x8xbf16>
    %cst_12 = arith.constant dense<0.000000e+00> : vector<4x16xf32>
    %21 = tpu.matmul %20, %9, %cst_12 {dimension_numbers = #tpu.dot_dimension_numbers<[1], [1], [0], [0], [0, 0, 1, 0], [], []>} : vector<4x8xbf16>, vector<16x8xbf16>, vector<4x16xf32> -> vector<4x16xf32>
    %cst_13 = arith.constant 0.000000e+00 : f32
    %22 = vector.broadcast %cst_13 : f32 to vector<16x9xf32>
    %cst_14 = arith.constant 0.000000e+00 : f32
    %23 = vector.broadcast %cst_14 : f32 to vector<1x16xf32>
    %24 = vector.extract_strided_slice %18 {offsets = [0, 0], sizes = [16, 1], strides = [1, 1]} : vector<16x4xf32> to vector<16x1xf32>
    %25 = vector.extract_strided_slice %21 {offsets = [0, 0], sizes = [1, 16], strides = [1, 1]} : vector<4x16xf32> to vector<1x16xf32>
    %26 = vector.broadcast %24 : vector<16x1xf32> to vector<16x16xf32>
    %27 = vector.broadcast %25 : vector<1x16xf32> to vector<16x16xf32>
    %28 = arith.addf %26, %27 : vector<16x16xf32>
    %cst_15 = arith.constant 2.000000e-01 : f32
    %29 = vector.broadcast %cst_15 : f32 to vector<16x16xf32>
    %30 = arith.mulf %29, %28 : vector<16x16xf32>
    %31 = arith.maximumf %28, %30 : vector<16x16xf32>
    %cst_16 = arith.constant -9.000000e+15 : f32
    %32 = vector.broadcast %cst_16 : f32 to vector<16x16xf32>
    %33 = arith.select %13, %31, %32 : vector<16x16xi1>, vector<16x16xf32>
    %cst_17 = arith.constant dense<0xFF800000> : vector<16xf32>
    %34 = vector.multi_reduction <maximumf>, %33, %cst_17 [1] : vector<16x16xf32> to vector<16xf32>
    %35 = vector.shape_cast %34 : vector<16xf32> to vector<16x1xf32>
    %36 = vector.broadcast %35 : vector<16x1xf32> to vector<16x16xf32>
    %37 = arith.subf %33, %36 : vector<16x16xf32>
    %38 = math.exp %37 : vector<16x16xf32>
    %cst_18 = arith.constant dense<0.000000e+00> : vector<16xf32>
    %39 = vector.multi_reduction <add>, %38, %cst_18 [1] : vector<16x16xf32> to vector<16xf32>
    %40 = vector.shape_cast %39 : vector<16xf32> to vector<16x1xf32>
    %41 = tpu.reciprocal %40 {approx = true} : vector<16x1xf32> -> vector<16x1xf32>
    %42 = vector.broadcast %41 : vector<16x1xf32> to vector<16x16xf32>
    %43 = arith.mulf %38, %42 : vector<16x16xf32>
    %44 = vector.extract_strided_slice %17 {offsets = [0, 0], sizes = [16, 4], strides = [1, 1]} : vector<16x16xf32> to vector<16x4xf32>
    %45 = arith.truncf %43 : vector<16x16xf32> to vector<16x16xbf16>
    %46 = arith.truncf %44 : vector<16x4xf32> to vector<16x4xbf16>
    %cst_19 = arith.constant dense<0.000000e+00> : vector<16x4xf32>
    %47 = tpu.matmul %45, %46, %cst_19 {dimension_numbers = #tpu.dot_dimension_numbers<[1], [0], [0], [1], [0, 0, 1, 1], [], []>} : vector<16x16xbf16>, vector<16x4xbf16>, vector<16x4xf32> -> vector<16x4xf32>
    %cst_20 = arith.constant 0.000000e+00 : f32
    %48 = vector.broadcast %cst_20 : f32 to vector<16x4xf32>
    %49 = arith.cmpf ogt, %47, %48 : vector<16x4xf32>
    %50 = math.exp %47 : vector<16x4xf32>
    %cst_21 = arith.constant 1.000000e+00 : f32
    %51 = vector.broadcast %cst_21 : f32 to vector<16x4xf32>
    %52 = arith.subf %50, %51 : vector<16x4xf32>
    %53 = arith.select %49, %47, %52 : vector<16x4xi1>, vector<16x4xf32>
    %54 = arith.truncf %53 : vector<16x4xf32> to vector<16x4xbf16>
    %c0_22 = arith.constant 0 : index
    %c0_23 = arith.constant 0 : index
    %c0_24 = arith.constant 0 : index
    %c0_25 = arith.constant 0 : index
    %c0_26 = arith.constant 0 : index
    %55 = vector.load %arg4[%c0_22, %c0_23, %c0_24, %c0_25, %c0_26] : memref<2x2x2x4x9xbf16, #tpu.memory_space<vmem>>, vector<1x1x1x4x9xbf16>
    %56 = vector.shape_cast %55 : vector<1x1x1x4x9xbf16> to vector<4x9xbf16>
    %cst_27 = arith.constant dense<0.000000e+00> : vector<16x9xf32>
    %57 = tpu.matmul %54, %56, %cst_27 {dimension_numbers = #tpu.dot_dimension_numbers<[1], [0], [0], [1], [0, 0, 1, 1], [], []>} : vector<16x4xbf16>, vector<4x9xbf16>, vector<16x9xf32> -> vector<16x9xf32>
    %58 = arith.addf %22, %57 : vector<16x9xf32>
    %c0_28 = arith.constant 0 : index
    %c0_29 = arith.constant 0 : index
    %c0_30 = arith.constant 0 : index
    %c0_31 = arith.constant 0 : index
    %c0_32 = arith.constant 0 : index
    %59 = vector.load %arg5[%c0_28, %c0_29, %c0_30, %c0_31, %c0_32] : memref<2x2x2x1x4xbf16, #tpu.memory_space<vmem>>, vector<1x1x1x1x4xbf16>
    %60 = vector.shape_cast %59 : vector<1x1x1x1x4xbf16> to vector<1x4xbf16>
    %cst_33 = arith.constant dense<0.000000e+00> : vector<1x16xf32>
    %61 = tpu.matmul %60, %54, %cst_33 {dimension_numbers = #tpu.dot_dimension_numbers<[1], [1], [0], [0], [0, 0, 1, 0], [], []>} : vector<1x4xbf16>, vector<16x4xbf16>, vector<1x16xf32> -> vector<1x16xf32>
    %62 = arith.addf %23, %61 : vector<1x16xf32>
    %63 = vector.extract_strided_slice %18 {offsets = [0, 1], sizes = [16, 1], strides = [1, 1]} : vector<16x4xf32> to vector<16x1xf32>
    %64 = vector.extract_strided_slice %21 {offsets = [1, 0], sizes = [1, 16], strides = [1, 1]} : vector<4x16xf32> to vector<1x16xf32>
    %65 = vector.broadcast %63 : vector<16x1xf32> to vector<16x16xf32>
    %66 = vector.broadcast %64 : vector<1x16xf32> to vector<16x16xf32>
    %67 = arith.addf %65, %66 : vector<16x16xf32>
    %cst_34 = arith.constant 2.000000e-01 : f32
    %68 = vector.broadcast %cst_34 : f32 to vector<16x16xf32>
    %69 = arith.mulf %68, %67 : vector<16x16xf32>
    %70 = arith.maximumf %67, %69 : vector<16x16xf32>
    %cst_35 = arith.constant -9.000000e+15 : f32
    %71 = vector.broadcast %cst_35 : f32 to vector<16x16xf32>
    %72 = arith.select %13, %70, %71 : vector<16x16xi1>, vector<16x16xf32>
    %cst_36 = arith.constant dense<0xFF800000> : vector<16xf32>
    %73 = vector.multi_reduction <maximumf>, %72, %cst_36 [1] : vector<16x16xf32> to vector<16xf32>
    %74 = vector.shape_cast %73 : vector<16xf32> to vector<16x1xf32>
    %75 = vector.broadcast %74 : vector<16x1xf32> to vector<16x16xf32>
    %76 = arith.subf %72, %75 : vector<16x16xf32>
    %77 = math.exp %76 : vector<16x16xf32>
    %cst_37 = arith.constant dense<0.000000e+00> : vector<16xf32>
    %78 = vector.multi_reduction <add>, %77, %cst_37 [1] : vector<16x16xf32> to vector<16xf32>
    %79 = vector.shape_cast %78 : vector<16xf32> to vector<16x1xf32>
    %80 = tpu.reciprocal %79 {approx = true} : vector<16x1xf32> -> vector<16x1xf32>
    %81 = vector.broadcast %80 : vector<16x1xf32> to vector<16x16xf32>
    %82 = arith.mulf %77, %81 : vector<16x16xf32>
    %83 = vector.extract_strided_slice %17 {offsets = [0, 4], sizes = [16, 4], strides = [1, 1]} : vector<16x16xf32> to vector<16x4xf32>
    %84 = arith.truncf %82 : vector<16x16xf32> to vector<16x16xbf16>
    %85 = arith.truncf %83 : vector<16x4xf32> to vector<16x4xbf16>
    %cst_38 = arith.constant dense<0.000000e+00> : vector<16x4xf32>
    %86 = tpu.matmul %84, %85, %cst_38 {dimension_numbers = #tpu.dot_dimension_numbers<[1], [0], [0], [1], [0, 0, 1, 1], [], []>} : vector<16x16xbf16>, vector<16x4xbf16>, vector<16x4xf32> -> vector<16x4xf32>
    %cst_39 = arith.constant 0.000000e+00 : f32
    %87 = vector.broadcast %cst_39 : f32 to vector<16x4xf32>
    %88 = arith.cmpf ogt, %86, %87 : vector<16x4xf32>
    %89 = math.exp %86 : vector<16x4xf32>
    %cst_40 = arith.constant 1.000000e+00 : f32
    %90 = vector.broadcast %cst_40 : f32 to vector<16x4xf32>
    %91 = arith.subf %89, %90 : vector<16x4xf32>
    %92 = arith.select %88, %86, %91 : vector<16x4xi1>, vector<16x4xf32>
    %93 = arith.truncf %92 : vector<16x4xf32> to vector<16x4xbf16>
    %c0_41 = arith.constant 0 : index
    %c0_42 = arith.constant 0 : index
    %c1 = arith.constant 1 : index
    %c0_43 = arith.constant 0 : index
    %c0_44 = arith.constant 0 : index
    %94 = vector.load %arg4[%c0_41, %c0_42, %c1, %c0_43, %c0_44] : memref<2x2x2x4x9xbf16, #tpu.memory_space<vmem>>, vector<1x1x1x4x9xbf16>
    %95 = vector.shape_cast %94 : vector<1x1x1x4x9xbf16> to vector<4x9xbf16>
    %cst_45 = arith.constant dense<0.000000e+00> : vector<16x9xf32>
    %96 = tpu.matmul %93, %95, %cst_45 {dimension_numbers = #tpu.dot_dimension_numbers<[1], [0], [0], [1], [0, 0, 1, 1], [], []>} : vector<16x4xbf16>, vector<4x9xbf16>, vector<16x9xf32> -> vector<16x9xf32>
    %97 = arith.addf %58, %96 : vector<16x9xf32>
    %c0_46 = arith.constant 0 : index
    %c0_47 = arith.constant 0 : index
    %c1_48 = arith.constant 1 : index
    %c0_49 = arith.constant 0 : index
    %c0_50 = arith.constant 0 : index
    %98 = vector.load %arg5[%c0_46, %c0_47, %c1_48, %c0_49, %c0_50] : memref<2x2x2x1x4xbf16, #tpu.memory_space<vmem>>, vector<1x1x1x1x4xbf16>
    %99 = vector.shape_cast %98 : vector<1x1x1x1x4xbf16> to vector<1x4xbf16>
    %cst_51 = arith.constant dense<0.000000e+00> : vector<1x16xf32>
    %100 = tpu.matmul %99, %93, %cst_51 {dimension_numbers = #tpu.dot_dimension_numbers<[1], [1], [0], [0], [0, 0, 1, 0], [], []>} : vector<1x4xbf16>, vector<16x4xbf16>, vector<1x16xf32> -> vector<1x16xf32>
    %101 = arith.addf %62, %100 : vector<1x16xf32>
    %102 = vector.extract_strided_slice %97 {offsets = [0, 0], sizes = [16, 8], strides = [1, 1]} : vector<16x9xf32> to vector<16x8xf32>
    %103 = vector.extract_strided_slice %97 {offsets = [0, 8], sizes = [16, 1], strides = [1, 1]} : vector<16x9xf32> to vector<16x1xf32>
    %104 = vector.broadcast %103 : vector<16x1xf32> to vector<16x16xf32>
    %105 = vector.broadcast %101 : vector<1x16xf32> to vector<16x16xf32>
    %106 = arith.addf %104, %105 : vector<16x16xf32>
    %cst_52 = arith.constant 2.000000e-01 : f32
    %107 = vector.broadcast %cst_52 : f32 to vector<16x16xf32>
    %108 = arith.mulf %107, %106 : vector<16x16xf32>
    %109 = arith.maximumf %106, %108 : vector<16x16xf32>
    %cst_53 = arith.constant -9.000000e+15 : f32
    %110 = vector.broadcast %cst_53 : f32 to vector<16x16xf32>
    %111 = arith.select %13, %109, %110 : vector<16x16xi1>, vector<16x16xf32>
    %cst_54 = arith.constant dense<0xFF800000> : vector<16xf32>
    %112 = vector.multi_reduction <maximumf>, %111, %cst_54 [1] : vector<16x16xf32> to vector<16xf32>
    %113 = vector.shape_cast %112 : vector<16xf32> to vector<16x1xf32>
    %114 = vector.broadcast %113 : vector<16x1xf32> to vector<16x16xf32>
    %115 = arith.subf %111, %114 : vector<16x16xf32>
    %116 = math.exp %115 : vector<16x16xf32>
    %cst_55 = arith.constant dense<0.000000e+00> : vector<16xf32>
    %117 = vector.multi_reduction <add>, %116, %cst_55 [1] : vector<16x16xf32> to vector<16xf32>
    %118 = vector.shape_cast %117 : vector<16xf32> to vector<16x1xf32>
    %119 = tpu.reciprocal %118 {approx = true} : vector<16x1xf32> -> vector<16x1xf32>
    %120 = vector.broadcast %119 : vector<16x1xf32> to vector<16x16xf32>
    %121 = arith.mulf %116, %120 : vector<16x16xf32>
    %122 = arith.truncf %121 : vector<16x16xf32> to vector<16x16xbf16>
    %123 = arith.truncf %102 : vector<16x8xf32> to vector<16x8xbf16>
    %cst_56 = arith.constant dense<0.000000e+00> : vector<16x8xf32>
    %124 = tpu.matmul %122, %123, %cst_56 {dimension_numbers = #tpu.dot_dimension_numbers<[1], [0], [0], [1], [0, 0, 1, 1], [], []>} : vector<16x16xbf16>, vector<16x8xbf16>, vector<16x8xf32> -> vector<16x8xf32>
    %cst_57 = arith.constant 0.000000e+00 : f32
    %125 = vector.broadcast %cst_57 : f32 to vector<16x8xf32>
    %126 = arith.cmpf ogt, %124, %125 : vector<16x8xf32>
    %127 = math.exp %124 : vector<16x8xf32>
    %cst_58 = arith.constant 1.000000e+00 : f32
    %128 = vector.broadcast %cst_58 : f32 to vector<16x8xf32>
    %129 = arith.subf %127, %128 : vector<16x8xf32>
    %130 = arith.select %126, %124, %129 : vector<16x8xi1>, vector<16x8xf32>
    %131 = arith.addf %6, %130 : vector<16x8xf32>
    %cst_59 = arith.constant 0.000000e+00 : f32
    %132 = vector.broadcast %cst_59 : f32 to vector<16x9xf32>
    %cst_60 = arith.constant 0.000000e+00 : f32
    %133 = vector.broadcast %cst_60 : f32 to vector<1x16xf32>
    %134 = vector.extract_strided_slice %18 {offsets = [0, 2], sizes = [16, 1], strides = [1, 1]} : vector<16x4xf32> to vector<16x1xf32>
    %135 = vector.extract_strided_slice %21 {offsets = [2, 0], sizes = [1, 16], strides = [1, 1]} : vector<4x16xf32> to vector<1x16xf32>
    %136 = vector.broadcast %134 : vector<16x1xf32> to vector<16x16xf32>
    %137 = vector.broadcast %135 : vector<1x16xf32> to vector<16x16xf32>
    %138 = arith.addf %136, %137 : vector<16x16xf32>
    %cst_61 = arith.constant 2.000000e-01 : f32
    %139 = vector.broadcast %cst_61 : f32 to vector<16x16xf32>
    %140 = arith.mulf %139, %138 : vector<16x16xf32>
    %141 = arith.maximumf %138, %140 : vector<16x16xf32>
    %cst_62 = arith.constant -9.000000e+15 : f32
    %142 = vector.broadcast %cst_62 : f32 to vector<16x16xf32>
    %143 = arith.select %12, %141, %142 : vector<16x16xi1>, vector<16x16xf32>
    %cst_63 = arith.constant dense<0xFF800000> : vector<16xf32>
    %144 = vector.multi_reduction <maximumf>, %143, %cst_63 [1] : vector<16x16xf32> to vector<16xf32>
    %145 = vector.shape_cast %144 : vector<16xf32> to vector<16x1xf32>
    %146 = vector.broadcast %145 : vector<16x1xf32> to vector<16x16xf32>
    %147 = arith.subf %143, %146 : vector<16x16xf32>
    %148 = math.exp %147 : vector<16x16xf32>
    %cst_64 = arith.constant dense<0.000000e+00> : vector<16xf32>
    %149 = vector.multi_reduction <add>, %148, %cst_64 [1] : vector<16x16xf32> to vector<16xf32>
    %150 = vector.shape_cast %149 : vector<16xf32> to vector<16x1xf32>
    %151 = tpu.reciprocal %150 {approx = true} : vector<16x1xf32> -> vector<16x1xf32>
    %152 = vector.broadcast %151 : vector<16x1xf32> to vector<16x16xf32>
    %153 = arith.mulf %148, %152 : vector<16x16xf32>
    %154 = vector.extract_strided_slice %17 {offsets = [0, 8], sizes = [16, 4], strides = [1, 1]} : vector<16x16xf32> to vector<16x4xf32>
    %155 = arith.truncf %153 : vector<16x16xf32> to vector<16x16xbf16>
    %156 = arith.truncf %154 : vector<16x4xf32> to vector<16x4xbf16>
    %cst_65 = arith.constant dense<0.000000e+00> : vector<16x4xf32>
    %157 = tpu.matmul %155, %156, %cst_65 {dimension_numbers = #tpu.dot_dimension_numbers<[1], [0], [0], [1], [0, 0, 1, 1], [], []>} : vector<16x16xbf16>, vector<16x4xbf16>, vector<16x4xf32> -> vector<16x4xf32>
    %cst_66 = arith.constant 0.000000e+00 : f32
    %158 = vector.broadcast %cst_66 : f32 to vector<16x4xf32>
    %159 = arith.cmpf ogt, %157, %158 : vector<16x4xf32>
    %160 = math.exp %157 : vector<16x4xf32>
    %cst_67 = arith.constant 1.000000e+00 : f32
    %161 = vector.broadcast %cst_67 : f32 to vector<16x4xf32>
    %162 = arith.subf %160, %161 : vector<16x4xf32>
    %163 = arith.select %159, %157, %162 : vector<16x4xi1>, vector<16x4xf32>
    %164 = arith.truncf %163 : vector<16x4xf32> to vector<16x4xbf16>
    %c0_68 = arith.constant 0 : index
    %c1_69 = arith.constant 1 : index
    %c0_70 = arith.constant 0 : index
    %c0_71 = arith.constant 0 : index
    %c0_72 = arith.constant 0 : index
    %165 = vector.load %arg4[%c0_68, %c1_69, %c0_70, %c0_71, %c0_72] : memref<2x2x2x4x9xbf16, #tpu.memory_space<vmem>>, vector<1x1x1x4x9xbf16>
    %166 = vector.shape_cast %165 : vector<1x1x1x4x9xbf16> to vector<4x9xbf16>
    %cst_73 = arith.constant dense<0.000000e+00> : vector<16x9xf32>
    %167 = tpu.matmul %164, %166, %cst_73 {dimension_numbers = #tpu.dot_dimension_numbers<[1], [0], [0], [1], [0, 0, 1, 1], [], []>} : vector<16x4xbf16>, vector<4x9xbf16>, vector<16x9xf32> -> vector<16x9xf32>
    %168 = arith.addf %132, %167 : vector<16x9xf32>
    %c0_74 = arith.constant 0 : index
    %c1_75 = arith.constant 1 : index
    %c0_76 = arith.constant 0 : index
    %c0_77 = arith.constant 0 : index
    %c0_78 = arith.constant 0 : index
    %169 = vector.load %arg5[%c0_74, %c1_75, %c0_76, %c0_77, %c0_78] : memref<2x2x2x1x4xbf16, #tpu.memory_space<vmem>>, vector<1x1x1x1x4xbf16>
    %170 = vector.shape_cast %169 : vector<1x1x1x1x4xbf16> to vector<1x4xbf16>
    %cst_79 = arith.constant dense<0.000000e+00> : vector<1x16xf32>
    %171 = tpu.matmul %170, %164, %cst_79 {dimension_numbers = #tpu.dot_dimension_numbers<[1], [1], [0], [0], [0, 0, 1, 0], [], []>} : vector<1x4xbf16>, vector<16x4xbf16>, vector<1x16xf32> -> vector<1x16xf32>
    %172 = arith.addf %133, %171 : vector<1x16xf32>
    %173 = vector.extract_strided_slice %18 {offsets = [0, 3], sizes = [16, 1], strides = [1, 1]} : vector<16x4xf32> to vector<16x1xf32>
    %174 = vector.extract_strided_slice %21 {offsets = [3, 0], sizes = [1, 16], strides = [1, 1]} : vector<4x16xf32> to vector<1x16xf32>
    %175 = vector.broadcast %173 : vector<16x1xf32> to vector<16x16xf32>
    %176 = vector.broadcast %174 : vector<1x16xf32> to vector<16x16xf32>
    %177 = arith.addf %175, %176 : vector<16x16xf32>
    %cst_80 = arith.constant 2.000000e-01 : f32
    %178 = vector.broadcast %cst_80 : f32 to vector<16x16xf32>
    %179 = arith.mulf %178, %177 : vector<16x16xf32>
    %180 = arith.maximumf %177, %179 : vector<16x16xf32>
    %cst_81 = arith.constant -9.000000e+15 : f32
    %181 = vector.broadcast %cst_81 : f32 to vector<16x16xf32>
    %182 = arith.select %12, %180, %181 : vector<16x16xi1>, vector<16x16xf32>
    %cst_82 = arith.constant dense<0xFF800000> : vector<16xf32>
    %183 = vector.multi_reduction <maximumf>, %182, %cst_82 [1] : vector<16x16xf32> to vector<16xf32>
    %184 = vector.shape_cast %183 : vector<16xf32> to vector<16x1xf32>
    %185 = vector.broadcast %184 : vector<16x1xf32> to vector<16x16xf32>
    %186 = arith.subf %182, %185 : vector<16x16xf32>
    %187 = math.exp %186 : vector<16x16xf32>
    %cst_83 = arith.constant dense<0.000000e+00> : vector<16xf32>
    %188 = vector.multi_reduction <add>, %187, %cst_83 [1] : vector<16x16xf32> to vector<16xf32>
    %189 = vector.shape_cast %188 : vector<16xf32> to vector<16x1xf32>
    %190 = tpu.reciprocal %189 {approx = true} : vector<16x1xf32> -> vector<16x1xf32>
    %191 = vector.broadcast %190 : vector<16x1xf32> to vector<16x16xf32>
    %192 = arith.mulf %187, %191 : vector<16x16xf32>
    %193 = vector.extract_strided_slice %17 {offsets = [0, 12], sizes = [16, 4], strides = [1, 1]} : vector<16x16xf32> to vector<16x4xf32>
    %194 = arith.truncf %192 : vector<16x16xf32> to vector<16x16xbf16>
    %195 = arith.truncf %193 : vector<16x4xf32> to vector<16x4xbf16>
    %cst_84 = arith.constant dense<0.000000e+00> : vector<16x4xf32>
    %196 = tpu.matmul %194, %195, %cst_84 {dimension_numbers = #tpu.dot_dimension_numbers<[1], [0], [0], [1], [0, 0, 1, 1], [], []>} : vector<16x16xbf16>, vector<16x4xbf16>, vector<16x4xf32> -> vector<16x4xf32>
    %cst_85 = arith.constant 0.000000e+00 : f32
    %197 = vector.broadcast %cst_85 : f32 to vector<16x4xf32>
    %198 = arith.cmpf ogt, %196, %197 : vector<16x4xf32>
    %199 = math.exp %196 : vector<16x4xf32>
    %cst_86 = arith.constant 1.000000e+00 : f32
    %200 = vector.broadcast %cst_86 : f32 to vector<16x4xf32>
    %201 = arith.subf %199, %200 : vector<16x4xf32>
    %202 = arith.select %198, %196, %201 : vector<16x4xi1>, vector<16x4xf32>
    %203 = arith.truncf %202 : vector<16x4xf32> to vector<16x4xbf16>
    %c0_87 = arith.constant 0 : index
    %c1_88 = arith.constant 1 : index
    %c1_89 = arith.constant 1 : index
    %c0_90 = arith.constant 0 : index
    %c0_91 = arith.constant 0 : index
    %204 = vector.load %arg4[%c0_87, %c1_88, %c1_89, %c0_90, %c0_91] : memref<2x2x2x4x9xbf16, #tpu.memory_space<vmem>>, vector<1x1x1x4x9xbf16>
    %205 = vector.shape_cast %204 : vector<1x1x1x4x9xbf16> to vector<4x9xbf16>
    %cst_92 = arith.constant dense<0.000000e+00> : vector<16x9xf32>
    %206 = tpu.matmul %203, %205, %cst_92 {dimension_numbers = #tpu.dot_dimension_numbers<[1], [0], [0], [1], [0, 0, 1, 1], [], []>} : vector<16x4xbf16>, vector<4x9xbf16>, vector<16x9xf32> -> vector<16x9xf32>
    %207 = arith.addf %168, %206 : vector<16x9xf32>
    %c0_93 = arith.constant 0 : index
    %c1_94 = arith.constant 1 : index
    %c1_95 = arith.constant 1 : index
    %c0_96 = arith.constant 0 : index
    %c0_97 = arith.constant 0 : index
    %208 = vector.load %arg5[%c0_93, %c1_94, %c1_95, %c0_96, %c0_97] : memref<2x2x2x1x4xbf16, #tpu.memory_space<vmem>>, vector<1x1x1x1x4xbf16>
    %209 = vector.shape_cast %208 : vector<1x1x1x1x4xbf16> to vector<1x4xbf16>
    %cst_98 = arith.constant dense<0.000000e+00> : vector<1x16xf32>
    %210 = tpu.matmul %209, %203, %cst_98 {dimension_numbers = #tpu.dot_dimension_numbers<[1], [1], [0], [0], [0, 0, 1, 0], [], []>} : vector<1x4xbf16>, vector<16x4xbf16>, vector<1x16xf32> -> vector<1x16xf32>
    %211 = arith.addf %172, %210 : vector<1x16xf32>
    %212 = vector.extract_strided_slice %207 {offsets = [0, 0], sizes = [16, 8], strides = [1, 1]} : vector<16x9xf32> to vector<16x8xf32>
    %213 = vector.extract_strided_slice %207 {offsets = [0, 8], sizes = [16, 1], strides = [1, 1]} : vector<16x9xf32> to vector<16x1xf32>
    %214 = vector.broadcast %213 : vector<16x1xf32> to vector<16x16xf32>
    %215 = vector.broadcast %211 : vector<1x16xf32> to vector<16x16xf32>
    %216 = arith.addf %214, %215 : vector<16x16xf32>
    %cst_99 = arith.constant 2.000000e-01 : f32
    %217 = vector.broadcast %cst_99 : f32 to vector<16x16xf32>
    %218 = arith.mulf %217, %216 : vector<16x16xf32>
    %219 = arith.maximumf %216, %218 : vector<16x16xf32>
    %cst_100 = arith.constant -9.000000e+15 : f32
    %220 = vector.broadcast %cst_100 : f32 to vector<16x16xf32>
    %221 = arith.select %12, %219, %220 : vector<16x16xi1>, vector<16x16xf32>
    %cst_101 = arith.constant dense<0xFF800000> : vector<16xf32>
    %222 = vector.multi_reduction <maximumf>, %221, %cst_101 [1] : vector<16x16xf32> to vector<16xf32>
    %223 = vector.shape_cast %222 : vector<16xf32> to vector<16x1xf32>
    %224 = vector.broadcast %223 : vector<16x1xf32> to vector<16x16xf32>
    %225 = arith.subf %221, %224 : vector<16x16xf32>
    %226 = math.exp %225 : vector<16x16xf32>
    %cst_102 = arith.constant dense<0.000000e+00> : vector<16xf32>
    %227 = vector.multi_reduction <add>, %226, %cst_102 [1] : vector<16x16xf32> to vector<16xf32>
    %228 = vector.shape_cast %227 : vector<16xf32> to vector<16x1xf32>
    %229 = tpu.reciprocal %228 {approx = true} : vector<16x1xf32> -> vector<16x1xf32>
    %230 = vector.broadcast %229 : vector<16x1xf32> to vector<16x16xf32>
    %231 = arith.mulf %226, %230 : vector<16x16xf32>
    %232 = arith.truncf %231 : vector<16x16xf32> to vector<16x16xbf16>
    %233 = arith.truncf %212 : vector<16x8xf32> to vector<16x8xbf16>
    %cst_103 = arith.constant dense<0.000000e+00> : vector<16x8xf32>
    %234 = tpu.matmul %232, %233, %cst_103 {dimension_numbers = #tpu.dot_dimension_numbers<[1], [0], [0], [1], [0, 0, 1, 1], [], []>} : vector<16x16xbf16>, vector<16x8xbf16>, vector<16x8xf32> -> vector<16x8xf32>
    %cst_104 = arith.constant 0.000000e+00 : f32
    %235 = vector.broadcast %cst_104 : f32 to vector<16x8xf32>
    %236 = arith.cmpf ogt, %234, %235 : vector<16x8xf32>
    %237 = math.exp %234 : vector<16x8xf32>
    %cst_105 = arith.constant 1.000000e+00 : f32
    %238 = vector.broadcast %cst_105 : f32 to vector<16x8xf32>
    %239 = arith.subf %237, %238 : vector<16x8xf32>
    %240 = arith.select %236, %234, %239 : vector<16x8xi1>, vector<16x8xf32>
    %241 = arith.addf %131, %240 : vector<16x8xf32>
    %c0_106 = arith.constant 0 : index
    %c1_107 = arith.constant 1 : index
    %c0_108 = arith.constant 0 : index
    %c0_109 = arith.constant 0 : index
    %242 = vector.load %arg1[%c0_106, %c1_107, %c0_108, %c0_109] : memref<1x2x16x8xf32, #tpu.memory_space<vmem>>, vector<1x1x16x8xf32>
    %243 = vector.shape_cast %242 : vector<1x1x16x8xf32> to vector<16x8xf32>
    %244 = arith.truncf %243 : vector<16x8xf32> to vector<16x8xbf16>
    %cst_110 = arith.constant dense<0.000000e+00> : vector<16x16xf32>
    %245 = tpu.matmul %243, %243, %cst_110 {dimension_numbers = #tpu.dot_dimension_numbers<[1], [1], [0], [0], [0, 0, 1, 0], [], []>} : vector<16x8xf32>, vector<16x8xf32>, vector<16x16xf32> -> vector<16x16xf32>
    %cst_111 = arith.constant 0.000000e+00 : f32
    %246 = vector.broadcast %cst_111 : f32 to vector<16x16xf32>
    %247 = arith.cmpf ogt, %245, %246 : vector<16x16xf32>
    %248 = arith.andi %247, %5 : vector<16x16xi1>
    %c1_112 = arith.constant 1 : index
    %c0_113 = arith.constant 0 : index
    %c0_114 = arith.constant 0 : index
    %249 = vector.load %arg2[%c1_112, %c0_113, %c0_114] : memref<2x8x20xbf16, #tpu.memory_space<vmem>>, vector<1x8x20xbf16>
    %250 = vector.shape_cast %249 : vector<1x8x20xbf16> to vector<8x20xbf16>
    %cst_115 = arith.constant dense<0.000000e+00> : vector<16x20xf32>
    %251 = tpu.matmul %244, %250, %cst_115 {dimension_numbers = #tpu.dot_dimension_numbers<[1], [0], [0], [1], [0, 0, 1, 1], [], []>} : vector<16x8xbf16>, vector<8x20xbf16>, vector<16x20xf32> -> vector<16x20xf32>
    %252 = vector.extract_strided_slice %251 {offsets = [0, 0], sizes = [16, 16], strides = [1, 1]} : vector<16x20xf32> to vector<16x16xf32>
    %253 = vector.extract_strided_slice %251 {offsets = [0, 16], sizes = [16, 4], strides = [1, 1]} : vector<16x20xf32> to vector<16x4xf32>
    %c1_116 = arith.constant 1 : index
    %c0_117 = arith.constant 0 : index
    %c0_118 = arith.constant 0 : index
    %254 = vector.load %arg3[%c1_116, %c0_117, %c0_118] : memref<2x4x8xbf16, #tpu.memory_space<vmem>>, vector<1x4x8xbf16>
    %255 = vector.shape_cast %254 : vector<1x4x8xbf16> to vector<4x8xbf16>
    %cst_119 = arith.constant dense<0.000000e+00> : vector<4x16xf32>
    %256 = tpu.matmul %255, %244, %cst_119 {dimension_numbers = #tpu.dot_dimension_numbers<[1], [1], [0], [0], [0, 0, 1, 0], [], []>} : vector<4x8xbf16>, vector<16x8xbf16>, vector<4x16xf32> -> vector<4x16xf32>
    %cst_120 = arith.constant 0.000000e+00 : f32
    %257 = vector.broadcast %cst_120 : f32 to vector<16x9xf32>
    %cst_121 = arith.constant 0.000000e+00 : f32
    %258 = vector.broadcast %cst_121 : f32 to vector<1x16xf32>
    %259 = vector.extract_strided_slice %253 {offsets = [0, 0], sizes = [16, 1], strides = [1, 1]} : vector<16x4xf32> to vector<16x1xf32>
    %260 = vector.extract_strided_slice %256 {offsets = [0, 0], sizes = [1, 16], strides = [1, 1]} : vector<4x16xf32> to vector<1x16xf32>
    %261 = vector.broadcast %259 : vector<16x1xf32> to vector<16x16xf32>
    %262 = vector.broadcast %260 : vector<1x16xf32> to vector<16x16xf32>
    %263 = arith.addf %261, %262 : vector<16x16xf32>
    %cst_122 = arith.constant 2.000000e-01 : f32
    %264 = vector.broadcast %cst_122 : f32 to vector<16x16xf32>
    %265 = arith.mulf %264, %263 : vector<16x16xf32>
    %266 = arith.maximumf %263, %265 : vector<16x16xf32>
    %cst_123 = arith.constant -9.000000e+15 : f32
    %267 = vector.broadcast %cst_123 : f32 to vector<16x16xf32>
    %268 = arith.select %248, %266, %267 : vector<16x16xi1>, vector<16x16xf32>
    %cst_124 = arith.constant dense<0xFF800000> : vector<16xf32>
    %269 = vector.multi_reduction <maximumf>, %268, %cst_124 [1] : vector<16x16xf32> to vector<16xf32>
    %270 = vector.shape_cast %269 : vector<16xf32> to vector<16x1xf32>
    %271 = vector.broadcast %270 : vector<16x1xf32> to vector<16x16xf32>
    %272 = arith.subf %268, %271 : vector<16x16xf32>
    %273 = math.exp %272 : vector<16x16xf32>
    %cst_125 = arith.constant dense<0.000000e+00> : vector<16xf32>
    %274 = vector.multi_reduction <add>, %273, %cst_125 [1] : vector<16x16xf32> to vector<16xf32>
    %275 = vector.shape_cast %274 : vector<16xf32> to vector<16x1xf32>
    %276 = tpu.reciprocal %275 {approx = true} : vector<16x1xf32> -> vector<16x1xf32>
    %277 = vector.broadcast %276 : vector<16x1xf32> to vector<16x16xf32>
    %278 = arith.mulf %273, %277 : vector<16x16xf32>
    %279 = vector.extract_strided_slice %252 {offsets = [0, 0], sizes = [16, 4], strides = [1, 1]} : vector<16x16xf32> to vector<16x4xf32>
    %280 = arith.truncf %278 : vector<16x16xf32> to vector<16x16xbf16>
    %281 = arith.truncf %279 : vector<16x4xf32> to vector<16x4xbf16>
    %cst_126 = arith.constant dense<0.000000e+00> : vector<16x4xf32>
    %282 = tpu.matmul %280, %281, %cst_126 {dimension_numbers = #tpu.dot_dimension_numbers<[1], [0], [0], [1], [0, 0, 1, 1], [], []>} : vector<16x16xbf16>, vector<16x4xbf16>, vector<16x4xf32> -> vector<16x4xf32>
    %cst_127 = arith.constant 0.000000e+00 : f32
    %283 = vector.broadcast %cst_127 : f32 to vector<16x4xf32>
    %284 = arith.cmpf ogt, %282, %283 : vector<16x4xf32>
    %285 = math.exp %282 : vector<16x4xf32>
    %cst_128 = arith.constant 1.000000e+00 : f32
    %286 = vector.broadcast %cst_128 : f32 to vector<16x4xf32>
    %287 = arith.subf %285, %286 : vector<16x4xf32>
    %288 = arith.select %284, %282, %287 : vector<16x4xi1>, vector<16x4xf32>
    %289 = arith.truncf %288 : vector<16x4xf32> to vector<16x4xbf16>
    %c1_129 = arith.constant 1 : index
    %c0_130 = arith.constant 0 : index
    %c0_131 = arith.constant 0 : index
    %c0_132 = arith.constant 0 : index
    %c0_133 = arith.constant 0 : index
    %290 = vector.load %arg4[%c1_129, %c0_130, %c0_131, %c0_132, %c0_133] : memref<2x2x2x4x9xbf16, #tpu.memory_space<vmem>>, vector<1x1x1x4x9xbf16>
    %291 = vector.shape_cast %290 : vector<1x1x1x4x9xbf16> to vector<4x9xbf16>
    %cst_134 = arith.constant dense<0.000000e+00> : vector<16x9xf32>
    %292 = tpu.matmul %289, %291, %cst_134 {dimension_numbers = #tpu.dot_dimension_numbers<[1], [0], [0], [1], [0, 0, 1, 1], [], []>} : vector<16x4xbf16>, vector<4x9xbf16>, vector<16x9xf32> -> vector<16x9xf32>
    %293 = arith.addf %257, %292 : vector<16x9xf32>
    %c1_135 = arith.constant 1 : index
    %c0_136 = arith.constant 0 : index
    %c0_137 = arith.constant 0 : index
    %c0_138 = arith.constant 0 : index
    %c0_139 = arith.constant 0 : index
    %294 = vector.load %arg5[%c1_135, %c0_136, %c0_137, %c0_138, %c0_139] : memref<2x2x2x1x4xbf16, #tpu.memory_space<vmem>>, vector<1x1x1x1x4xbf16>
    %295 = vector.shape_cast %294 : vector<1x1x1x1x4xbf16> to vector<1x4xbf16>
    %cst_140 = arith.constant dense<0.000000e+00> : vector<1x16xf32>
    %296 = tpu.matmul %295, %289, %cst_140 {dimension_numbers = #tpu.dot_dimension_numbers<[1], [1], [0], [0], [0, 0, 1, 0], [], []>} : vector<1x4xbf16>, vector<16x4xbf16>, vector<1x16xf32> -> vector<1x16xf32>
    %297 = arith.addf %258, %296 : vector<1x16xf32>
    %298 = vector.extract_strided_slice %253 {offsets = [0, 1], sizes = [16, 1], strides = [1, 1]} : vector<16x4xf32> to vector<16x1xf32>
    %299 = vector.extract_strided_slice %256 {offsets = [1, 0], sizes = [1, 16], strides = [1, 1]} : vector<4x16xf32> to vector<1x16xf32>
    %300 = vector.broadcast %298 : vector<16x1xf32> to vector<16x16xf32>
    %301 = vector.broadcast %299 : vector<1x16xf32> to vector<16x16xf32>
    %302 = arith.addf %300, %301 : vector<16x16xf32>
    %cst_141 = arith.constant 2.000000e-01 : f32
    %303 = vector.broadcast %cst_141 : f32 to vector<16x16xf32>
    %304 = arith.mulf %303, %302 : vector<16x16xf32>
    %305 = arith.maximumf %302, %304 : vector<16x16xf32>
    %cst_142 = arith.constant -9.000000e+15 : f32
    %306 = vector.broadcast %cst_142 : f32 to vector<16x16xf32>
    %307 = arith.select %248, %305, %306 : vector<16x16xi1>, vector<16x16xf32>
    %cst_143 = arith.constant dense<0xFF800000> : vector<16xf32>
    %308 = vector.multi_reduction <maximumf>, %307, %cst_143 [1] : vector<16x16xf32> to vector<16xf32>
    %309 = vector.shape_cast %308 : vector<16xf32> to vector<16x1xf32>
    %310 = vector.broadcast %309 : vector<16x1xf32> to vector<16x16xf32>
    %311 = arith.subf %307, %310 : vector<16x16xf32>
    %312 = math.exp %311 : vector<16x16xf32>
    %cst_144 = arith.constant dense<0.000000e+00> : vector<16xf32>
    %313 = vector.multi_reduction <add>, %312, %cst_144 [1] : vector<16x16xf32> to vector<16xf32>
    %314 = vector.shape_cast %313 : vector<16xf32> to vector<16x1xf32>
    %315 = tpu.reciprocal %314 {approx = true} : vector<16x1xf32> -> vector<16x1xf32>
    %316 = vector.broadcast %315 : vector<16x1xf32> to vector<16x16xf32>
    %317 = arith.mulf %312, %316 : vector<16x16xf32>
    %318 = vector.extract_strided_slice %252 {offsets = [0, 4], sizes = [16, 4], strides = [1, 1]} : vector<16x16xf32> to vector<16x4xf32>
    %319 = arith.truncf %317 : vector<16x16xf32> to vector<16x16xbf16>
    %320 = arith.truncf %318 : vector<16x4xf32> to vector<16x4xbf16>
    %cst_145 = arith.constant dense<0.000000e+00> : vector<16x4xf32>
    %321 = tpu.matmul %319, %320, %cst_145 {dimension_numbers = #tpu.dot_dimension_numbers<[1], [0], [0], [1], [0, 0, 1, 1], [], []>} : vector<16x16xbf16>, vector<16x4xbf16>, vector<16x4xf32> -> vector<16x4xf32>
    %cst_146 = arith.constant 0.000000e+00 : f32
    %322 = vector.broadcast %cst_146 : f32 to vector<16x4xf32>
    %323 = arith.cmpf ogt, %321, %322 : vector<16x4xf32>
    %324 = math.exp %321 : vector<16x4xf32>
    %cst_147 = arith.constant 1.000000e+00 : f32
    %325 = vector.broadcast %cst_147 : f32 to vector<16x4xf32>
    %326 = arith.subf %324, %325 : vector<16x4xf32>
    %327 = arith.select %323, %321, %326 : vector<16x4xi1>, vector<16x4xf32>
    %328 = arith.truncf %327 : vector<16x4xf32> to vector<16x4xbf16>
    %c1_148 = arith.constant 1 : index
    %c0_149 = arith.constant 0 : index
    %c1_150 = arith.constant 1 : index
    %c0_151 = arith.constant 0 : index
    %c0_152 = arith.constant 0 : index
    %329 = vector.load %arg4[%c1_148, %c0_149, %c1_150, %c0_151, %c0_152] : memref<2x2x2x4x9xbf16, #tpu.memory_space<vmem>>, vector<1x1x1x4x9xbf16>
    %330 = vector.shape_cast %329 : vector<1x1x1x4x9xbf16> to vector<4x9xbf16>
    %cst_153 = arith.constant dense<0.000000e+00> : vector<16x9xf32>
    %331 = tpu.matmul %328, %330, %cst_153 {dimension_numbers = #tpu.dot_dimension_numbers<[1], [0], [0], [1], [0, 0, 1, 1], [], []>} : vector<16x4xbf16>, vector<4x9xbf16>, vector<16x9xf32> -> vector<16x9xf32>
    %332 = arith.addf %293, %331 : vector<16x9xf32>
    %c1_154 = arith.constant 1 : index
    %c0_155 = arith.constant 0 : index
    %c1_156 = arith.constant 1 : index
    %c0_157 = arith.constant 0 : index
    %c0_158 = arith.constant 0 : index
    %333 = vector.load %arg5[%c1_154, %c0_155, %c1_156, %c0_157, %c0_158] : memref<2x2x2x1x4xbf16, #tpu.memory_space<vmem>>, vector<1x1x1x1x4xbf16>
    %334 = vector.shape_cast %333 : vector<1x1x1x1x4xbf16> to vector<1x4xbf16>
    %cst_159 = arith.constant dense<0.000000e+00> : vector<1x16xf32>
    %335 = tpu.matmul %334, %328, %cst_159 {dimension_numbers = #tpu.dot_dimension_numbers<[1], [1], [0], [0], [0, 0, 1, 0], [], []>} : vector<1x4xbf16>, vector<16x4xbf16>, vector<1x16xf32> -> vector<1x16xf32>
    %336 = arith.addf %297, %335 : vector<1x16xf32>
    %337 = vector.extract_strided_slice %332 {offsets = [0, 0], sizes = [16, 8], strides = [1, 1]} : vector<16x9xf32> to vector<16x8xf32>
    %338 = vector.extract_strided_slice %332 {offsets = [0, 8], sizes = [16, 1], strides = [1, 1]} : vector<16x9xf32> to vector<16x1xf32>
    %339 = vector.broadcast %338 : vector<16x1xf32> to vector<16x16xf32>
    %340 = vector.broadcast %336 : vector<1x16xf32> to vector<16x16xf32>
    %341 = arith.addf %339, %340 : vector<16x16xf32>
    %cst_160 = arith.constant 2.000000e-01 : f32
    %342 = vector.broadcast %cst_160 : f32 to vector<16x16xf32>
    %343 = arith.mulf %342, %341 : vector<16x16xf32>
    %344 = arith.maximumf %341, %343 : vector<16x16xf32>
    %cst_161 = arith.constant -9.000000e+15 : f32
    %345 = vector.broadcast %cst_161 : f32 to vector<16x16xf32>
    %346 = arith.select %248, %344, %345 : vector<16x16xi1>, vector<16x16xf32>
    %cst_162 = arith.constant dense<0xFF800000> : vector<16xf32>
    %347 = vector.multi_reduction <maximumf>, %346, %cst_162 [1] : vector<16x16xf32> to vector<16xf32>
    %348 = vector.shape_cast %347 : vector<16xf32> to vector<16x1xf32>
    %349 = vector.broadcast %348 : vector<16x1xf32> to vector<16x16xf32>
    %350 = arith.subf %346, %349 : vector<16x16xf32>
    %351 = math.exp %350 : vector<16x16xf32>
    %cst_163 = arith.constant dense<0.000000e+00> : vector<16xf32>
    %352 = vector.multi_reduction <add>, %351, %cst_163 [1] : vector<16x16xf32> to vector<16xf32>
    %353 = vector.shape_cast %352 : vector<16xf32> to vector<16x1xf32>
    %354 = tpu.reciprocal %353 {approx = true} : vector<16x1xf32> -> vector<16x1xf32>
    %355 = vector.broadcast %354 : vector<16x1xf32> to vector<16x16xf32>
    %356 = arith.mulf %351, %355 : vector<16x16xf32>
    %357 = arith.truncf %356 : vector<16x16xf32> to vector<16x16xbf16>
    %358 = arith.truncf %337 : vector<16x8xf32> to vector<16x8xbf16>
    %cst_164 = arith.constant dense<0.000000e+00> : vector<16x8xf32>
    %359 = tpu.matmul %357, %358, %cst_164 {dimension_numbers = #tpu.dot_dimension_numbers<[1], [0], [0], [1], [0, 0, 1, 1], [], []>} : vector<16x16xbf16>, vector<16x8xbf16>, vector<16x8xf32> -> vector<16x8xf32>
    %cst_165 = arith.constant 0.000000e+00 : f32
    %360 = vector.broadcast %cst_165 : f32 to vector<16x8xf32>
    %361 = arith.cmpf ogt, %359, %360 : vector<16x8xf32>
    %362 = math.exp %359 : vector<16x8xf32>
    %cst_166 = arith.constant 1.000000e+00 : f32
    %363 = vector.broadcast %cst_166 : f32 to vector<16x8xf32>
    %364 = arith.subf %362, %363 : vector<16x8xf32>
    %365 = arith.select %361, %359, %364 : vector<16x8xi1>, vector<16x8xf32>
    %366 = arith.addf %241, %365 : vector<16x8xf32>
    %cst_167 = arith.constant 0.000000e+00 : f32
    %367 = vector.broadcast %cst_167 : f32 to vector<16x9xf32>
    %cst_168 = arith.constant 0.000000e+00 : f32
    %368 = vector.broadcast %cst_168 : f32 to vector<1x16xf32>
    %369 = vector.extract_strided_slice %253 {offsets = [0, 2], sizes = [16, 1], strides = [1, 1]} : vector<16x4xf32> to vector<16x1xf32>
    %370 = vector.extract_strided_slice %256 {offsets = [2, 0], sizes = [1, 16], strides = [1, 1]} : vector<4x16xf32> to vector<1x16xf32>
    %371 = vector.broadcast %369 : vector<16x1xf32> to vector<16x16xf32>
    %372 = vector.broadcast %370 : vector<1x16xf32> to vector<16x16xf32>
    %373 = arith.addf %371, %372 : vector<16x16xf32>
    %cst_169 = arith.constant 2.000000e-01 : f32
    %374 = vector.broadcast %cst_169 : f32 to vector<16x16xf32>
    %375 = arith.mulf %374, %373 : vector<16x16xf32>
    %376 = arith.maximumf %373, %375 : vector<16x16xf32>
    %cst_170 = arith.constant -9.000000e+15 : f32
    %377 = vector.broadcast %cst_170 : f32 to vector<16x16xf32>
    %378 = arith.select %247, %376, %377 : vector<16x16xi1>, vector<16x16xf32>
    %cst_171 = arith.constant dense<0xFF800000> : vector<16xf32>
    %379 = vector.multi_reduction <maximumf>, %378, %cst_171 [1] : vector<16x16xf32> to vector<16xf32>
    %380 = vector.shape_cast %379 : vector<16xf32> to vector<16x1xf32>
    %381 = vector.broadcast %380 : vector<16x1xf32> to vector<16x16xf32>
    %382 = arith.subf %378, %381 : vector<16x16xf32>
    %383 = math.exp %382 : vector<16x16xf32>
    %cst_172 = arith.constant dense<0.000000e+00> : vector<16xf32>
    %384 = vector.multi_reduction <add>, %383, %cst_172 [1] : vector<16x16xf32> to vector<16xf32>
    %385 = vector.shape_cast %384 : vector<16xf32> to vector<16x1xf32>
    %386 = tpu.reciprocal %385 {approx = true} : vector<16x1xf32> -> vector<16x1xf32>
    %387 = vector.broadcast %386 : vector<16x1xf32> to vector<16x16xf32>
    %388 = arith.mulf %383, %387 : vector<16x16xf32>
    %389 = vector.extract_strided_slice %252 {offsets = [0, 8], sizes = [16, 4], strides = [1, 1]} : vector<16x16xf32> to vector<16x4xf32>
    %390 = arith.truncf %388 : vector<16x16xf32> to vector<16x16xbf16>
    %391 = arith.truncf %389 : vector<16x4xf32> to vector<16x4xbf16>
    %cst_173 = arith.constant dense<0.000000e+00> : vector<16x4xf32>
    %392 = tpu.matmul %390, %391, %cst_173 {dimension_numbers = #tpu.dot_dimension_numbers<[1], [0], [0], [1], [0, 0, 1, 1], [], []>} : vector<16x16xbf16>, vector<16x4xbf16>, vector<16x4xf32> -> vector<16x4xf32>
    %cst_174 = arith.constant 0.000000e+00 : f32
    %393 = vector.broadcast %cst_174 : f32 to vector<16x4xf32>
    %394 = arith.cmpf ogt, %392, %393 : vector<16x4xf32>
    %395 = math.exp %392 : vector<16x4xf32>
    %cst_175 = arith.constant 1.000000e+00 : f32
    %396 = vector.broadcast %cst_175 : f32 to vector<16x4xf32>
    %397 = arith.subf %395, %396 : vector<16x4xf32>
    %398 = arith.select %394, %392, %397 : vector<16x4xi1>, vector<16x4xf32>
    %399 = arith.truncf %398 : vector<16x4xf32> to vector<16x4xbf16>
    %c1_176 = arith.constant 1 : index
    %c1_177 = arith.constant 1 : index
    %c0_178 = arith.constant 0 : index
    %c0_179 = arith.constant 0 : index
    %c0_180 = arith.constant 0 : index
    %400 = vector.load %arg4[%c1_176, %c1_177, %c0_178, %c0_179, %c0_180] : memref<2x2x2x4x9xbf16, #tpu.memory_space<vmem>>, vector<1x1x1x4x9xbf16>
    %401 = vector.shape_cast %400 : vector<1x1x1x4x9xbf16> to vector<4x9xbf16>
    %cst_181 = arith.constant dense<0.000000e+00> : vector<16x9xf32>
    %402 = tpu.matmul %399, %401, %cst_181 {dimension_numbers = #tpu.dot_dimension_numbers<[1], [0], [0], [1], [0, 0, 1, 1], [], []>} : vector<16x4xbf16>, vector<4x9xbf16>, vector<16x9xf32> -> vector<16x9xf32>
    %403 = arith.addf %367, %402 : vector<16x9xf32>
    %c1_182 = arith.constant 1 : index
    %c1_183 = arith.constant 1 : index
    %c0_184 = arith.constant 0 : index
    %c0_185 = arith.constant 0 : index
    %c0_186 = arith.constant 0 : index
    %404 = vector.load %arg5[%c1_182, %c1_183, %c0_184, %c0_185, %c0_186] : memref<2x2x2x1x4xbf16, #tpu.memory_space<vmem>>, vector<1x1x1x1x4xbf16>
    %405 = vector.shape_cast %404 : vector<1x1x1x1x4xbf16> to vector<1x4xbf16>
    %cst_187 = arith.constant dense<0.000000e+00> : vector<1x16xf32>
    %406 = tpu.matmul %405, %399, %cst_187 {dimension_numbers = #tpu.dot_dimension_numbers<[1], [1], [0], [0], [0, 0, 1, 0], [], []>} : vector<1x4xbf16>, vector<16x4xbf16>, vector<1x16xf32> -> vector<1x16xf32>
    %407 = arith.addf %368, %406 : vector<1x16xf32>
    %408 = vector.extract_strided_slice %253 {offsets = [0, 3], sizes = [16, 1], strides = [1, 1]} : vector<16x4xf32> to vector<16x1xf32>
    %409 = vector.extract_strided_slice %256 {offsets = [3, 0], sizes = [1, 16], strides = [1, 1]} : vector<4x16xf32> to vector<1x16xf32>
    %410 = vector.broadcast %408 : vector<16x1xf32> to vector<16x16xf32>
    %411 = vector.broadcast %409 : vector<1x16xf32> to vector<16x16xf32>
    %412 = arith.addf %410, %411 : vector<16x16xf32>
    %cst_188 = arith.constant 2.000000e-01 : f32
    %413 = vector.broadcast %cst_188 : f32 to vector<16x16xf32>
    %414 = arith.mulf %413, %412 : vector<16x16xf32>
    %415 = arith.maximumf %412, %414 : vector<16x16xf32>
    %cst_189 = arith.constant -9.000000e+15 : f32
    %416 = vector.broadcast %cst_189 : f32 to vector<16x16xf32>
    %417 = arith.select %247, %415, %416 : vector<16x16xi1>, vector<16x16xf32>
    %cst_190 = arith.constant dense<0xFF800000> : vector<16xf32>
    %418 = vector.multi_reduction <maximumf>, %417, %cst_190 [1] : vector<16x16xf32> to vector<16xf32>
    %419 = vector.shape_cast %418 : vector<16xf32> to vector<16x1xf32>
    %420 = vector.broadcast %419 : vector<16x1xf32> to vector<16x16xf32>
    %421 = arith.subf %417, %420 : vector<16x16xf32>
    %422 = math.exp %421 : vector<16x16xf32>
    %cst_191 = arith.constant dense<0.000000e+00> : vector<16xf32>
    %423 = vector.multi_reduction <add>, %422, %cst_191 [1] : vector<16x16xf32> to vector<16xf32>
    %424 = vector.shape_cast %423 : vector<16xf32> to vector<16x1xf32>
    %425 = tpu.reciprocal %424 {approx = true} : vector<16x1xf32> -> vector<16x1xf32>
    %426 = vector.broadcast %425 : vector<16x1xf32> to vector<16x16xf32>
    %427 = arith.mulf %422, %426 : vector<16x16xf32>
    %428 = vector.extract_strided_slice %252 {offsets = [0, 12], sizes = [16, 4], strides = [1, 1]} : vector<16x16xf32> to vector<16x4xf32>
    %429 = arith.truncf %427 : vector<16x16xf32> to vector<16x16xbf16>
    %430 = arith.truncf %428 : vector<16x4xf32> to vector<16x4xbf16>
    %cst_192 = arith.constant dense<0.000000e+00> : vector<16x4xf32>
    %431 = tpu.matmul %429, %430, %cst_192 {dimension_numbers = #tpu.dot_dimension_numbers<[1], [0], [0], [1], [0, 0, 1, 1], [], []>} : vector<16x16xbf16>, vector<16x4xbf16>, vector<16x4xf32> -> vector<16x4xf32>
    %cst_193 = arith.constant 0.000000e+00 : f32
    %432 = vector.broadcast %cst_193 : f32 to vector<16x4xf32>
    %433 = arith.cmpf ogt, %431, %432 : vector<16x4xf32>
    %434 = math.exp %431 : vector<16x4xf32>
    %cst_194 = arith.constant 1.000000e+00 : f32
    %435 = vector.broadcast %cst_194 : f32 to vector<16x4xf32>
    %436 = arith.subf %434, %435 : vector<16x4xf32>
    %437 = arith.select %433, %431, %436 : vector<16x4xi1>, vector<16x4xf32>
    %438 = arith.truncf %437 : vector<16x4xf32> to vector<16x4xbf16>
    %c1_195 = arith.constant 1 : index
    %c1_196 = arith.constant 1 : index
    %c1_197 = arith.constant 1 : index
    %c0_198 = arith.constant 0 : index
    %c0_199 = arith.constant 0 : index
    %439 = vector.load %arg4[%c1_195, %c1_196, %c1_197, %c0_198, %c0_199] : memref<2x2x2x4x9xbf16, #tpu.memory_space<vmem>>, vector<1x1x1x4x9xbf16>
    %440 = vector.shape_cast %439 : vector<1x1x1x4x9xbf16> to vector<4x9xbf16>
    %cst_200 = arith.constant dense<0.000000e+00> : vector<16x9xf32>
    %441 = tpu.matmul %438, %440, %cst_200 {dimension_numbers = #tpu.dot_dimension_numbers<[1], [0], [0], [1], [0, 0, 1, 1], [], []>} : vector<16x4xbf16>, vector<4x9xbf16>, vector<16x9xf32> -> vector<16x9xf32>
    %442 = arith.addf %403, %441 : vector<16x9xf32>
    %c1_201 = arith.constant 1 : index
    %c1_202 = arith.constant 1 : index
    %c1_203 = arith.constant 1 : index
    %c0_204 = arith.constant 0 : index
    %c0_205 = arith.constant 0 : index
    %443 = vector.load %arg5[%c1_201, %c1_202, %c1_203, %c0_204, %c0_205] : memref<2x2x2x1x4xbf16, #tpu.memory_space<vmem>>, vector<1x1x1x1x4xbf16>
    %444 = vector.shape_cast %443 : vector<1x1x1x1x4xbf16> to vector<1x4xbf16>
    %cst_206 = arith.constant dense<0.000000e+00> : vector<1x16xf32>
    %445 = tpu.matmul %444, %438, %cst_206 {dimension_numbers = #tpu.dot_dimension_numbers<[1], [1], [0], [0], [0, 0, 1, 0], [], []>} : vector<1x4xbf16>, vector<16x4xbf16>, vector<1x16xf32> -> vector<1x16xf32>
    %446 = arith.addf %407, %445 : vector<1x16xf32>
    %447 = vector.extract_strided_slice %442 {offsets = [0, 0], sizes = [16, 8], strides = [1, 1]} : vector<16x9xf32> to vector<16x8xf32>
    %448 = vector.extract_strided_slice %442 {offsets = [0, 8], sizes = [16, 1], strides = [1, 1]} : vector<16x9xf32> to vector<16x1xf32>
    %449 = vector.broadcast %448 : vector<16x1xf32> to vector<16x16xf32>
    %450 = vector.broadcast %446 : vector<1x16xf32> to vector<16x16xf32>
    %451 = arith.addf %449, %450 : vector<16x16xf32>
    %cst_207 = arith.constant 2.000000e-01 : f32
    %452 = vector.broadcast %cst_207 : f32 to vector<16x16xf32>
    %453 = arith.mulf %452, %451 : vector<16x16xf32>
    %454 = arith.maximumf %451, %453 : vector<16x16xf32>
    %cst_208 = arith.constant -9.000000e+15 : f32
    %455 = vector.broadcast %cst_208 : f32 to vector<16x16xf32>
    %456 = arith.select %247, %454, %455 : vector<16x16xi1>, vector<16x16xf32>
    %cst_209 = arith.constant dense<0xFF800000> : vector<16xf32>
    %457 = vector.multi_reduction <maximumf>, %456, %cst_209 [1] : vector<16x16xf32> to vector<16xf32>
    %458 = vector.shape_cast %457 : vector<16xf32> to vector<16x1xf32>
    %459 = vector.broadcast %458 : vector<16x1xf32> to vector<16x16xf32>
    %460 = arith.subf %456, %459 : vector<16x16xf32>
    %461 = math.exp %460 : vector<16x16xf32>
    %cst_210 = arith.constant dense<0.000000e+00> : vector<16xf32>
    %462 = vector.multi_reduction <add>, %461, %cst_210 [1] : vector<16x16xf32> to vector<16xf32>
    %463 = vector.shape_cast %462 : vector<16xf32> to vector<16x1xf32>
    %464 = tpu.reciprocal %463 {approx = true} : vector<16x1xf32> -> vector<16x1xf32>
    %465 = vector.broadcast %464 : vector<16x1xf32> to vector<16x16xf32>
    %466 = arith.mulf %461, %465 : vector<16x16xf32>
    %467 = arith.truncf %466 : vector<16x16xf32> to vector<16x16xbf16>
    %468 = arith.truncf %447 : vector<16x8xf32> to vector<16x8xbf16>
    %cst_211 = arith.constant dense<0.000000e+00> : vector<16x8xf32>
    %469 = tpu.matmul %467, %468, %cst_211 {dimension_numbers = #tpu.dot_dimension_numbers<[1], [0], [0], [1], [0, 0, 1, 1], [], []>} : vector<16x16xbf16>, vector<16x8xbf16>, vector<16x8xf32> -> vector<16x8xf32>
    %cst_212 = arith.constant 0.000000e+00 : f32
    %470 = vector.broadcast %cst_212 : f32 to vector<16x8xf32>
    %471 = arith.cmpf ogt, %469, %470 : vector<16x8xf32>
    %472 = math.exp %469 : vector<16x8xf32>
    %cst_213 = arith.constant 1.000000e+00 : f32
    %473 = vector.broadcast %cst_213 : f32 to vector<16x8xf32>
    %474 = arith.subf %472, %473 : vector<16x8xf32>
    %475 = arith.select %471, %469, %474 : vector<16x8xi1>, vector<16x8xf32>
    %476 = arith.addf %366, %475 : vector<16x8xf32>
    %cst_214 = arith.constant dense<0.000000e+00> : vector<16xf32>
    %477 = vector.multi_reduction <add>, %476, %cst_214 [1] : vector<16x8xf32> to vector<16xf32>
    %478 = vector.shape_cast %477 : vector<16xf32> to vector<16x1xf32>
    %cst_215 = arith.constant 8.000000e+00 : f32
    %479 = vector.broadcast %cst_215 : f32 to vector<16x1xf32>
    %480 = arith.divf %478, %479 : vector<16x1xf32>
    %481 = vector.broadcast %480 : vector<16x1xf32> to vector<16x8xf32>
    %482 = arith.subf %476, %481 : vector<16x8xf32>
    %483 = arith.mulf %482, %482 : vector<16x8xf32>
    %cst_216 = arith.constant dense<0.000000e+00> : vector<16xf32>
    %484 = vector.multi_reduction <add>, %483, %cst_216 [1] : vector<16x8xf32> to vector<16xf32>
    %485 = vector.shape_cast %484 : vector<16xf32> to vector<16x1xf32>
    %cst_217 = arith.constant 8.000000e+00 : f32
    %486 = vector.broadcast %cst_217 : f32 to vector<16x1xf32>
    %487 = arith.divf %485, %486 : vector<16x1xf32>
    %cst_218 = arith.constant 9.99999974E-6 : f32
    %488 = vector.broadcast %cst_218 : f32 to vector<16x1xf32>
    %489 = arith.addf %487, %488 : vector<16x1xf32>
    %490 = math.rsqrt %489 : vector<16x1xf32>
    %491 = vector.broadcast %490 : vector<16x1xf32> to vector<16x8xf32>
    %492 = arith.mulf %482, %491 : vector<16x8xf32>
    %c0_219 = arith.constant 0 : index
    %c0_220 = arith.constant 0 : index
    %493 = vector.load %arg6[%c0_219, %c0_220] : memref<1x8xf32, #tpu.memory_space<vmem>>, vector<1x8xf32>
    %494 = vector.broadcast %493 : vector<1x8xf32> to vector<16x8xf32>
    %495 = arith.mulf %492, %494 : vector<16x8xf32>
    %c0_221 = arith.constant 0 : index
    %c0_222 = arith.constant 0 : index
    %496 = vector.load %arg7[%c0_221, %c0_222] : memref<1x8xf32, #tpu.memory_space<vmem>>, vector<1x8xf32>
    %497 = vector.broadcast %496 : vector<1x8xf32> to vector<16x8xf32>
    %498 = arith.addf %495, %497 : vector<16x8xf32>
    %499 = arith.truncf %498 : vector<16x8xf32> to vector<16x8xbf16>
    %c0_223 = arith.constant 0 : index
    %c0_224 = arith.constant 0 : index
    %500 = vector.load %arg8[%c0_223, %c0_224] : memref<8x4xbf16, #tpu.memory_space<vmem>>, vector<8x4xbf16>
    %cst_225 = arith.constant dense<0.000000e+00> : vector<16x4xf32>
    %501 = tpu.matmul %499, %500, %cst_225 {dimension_numbers = #tpu.dot_dimension_numbers<[1], [0], [0], [1], [0, 0, 1, 1], [], []>} : vector<16x8xbf16>, vector<8x4xbf16>, vector<16x4xf32> -> vector<16x4xf32>
    %c0_226 = arith.constant 0 : index
    %c0_227 = arith.constant 0 : index
    %502 = vector.load %arg9[%c0_226, %c0_227] : memref<1x4xf32, #tpu.memory_space<vmem>>, vector<1x4xf32>
    %503 = vector.broadcast %502 : vector<1x4xf32> to vector<16x4xf32>
    %504 = arith.mulf %501, %503 : vector<16x4xf32>
    %c0_228 = arith.constant 0 : index
    %c0_229 = arith.constant 0 : index
    %505 = vector.load %arg10[%c0_228, %c0_229] : memref<1x4xf32, #tpu.memory_space<vmem>>, vector<1x4xf32>
    %506 = vector.broadcast %505 : vector<1x4xf32> to vector<16x4xf32>
    %507 = arith.addf %504, %506 : vector<16x4xf32>
    %508 = arith.negf %507 : vector<16x4xf32>
    %509 = math.exp %508 : vector<16x4xf32>
    %cst_230 = arith.constant 1.000000e+00 : f32
    %510 = vector.broadcast %cst_230 : f32 to vector<16x4xf32>
    %511 = arith.addf %510, %509 : vector<16x4xf32>
    %512 = arith.divf %510, %511 : vector<16x4xf32>
    %513 = arith.mulf %507, %512 : vector<16x4xf32>
    %514 = arith.truncf %513 : vector<16x4xf32> to vector<16x4xbf16>
    %c0_231 = arith.constant 0 : index
    %c0_232 = arith.constant 0 : index
    %515 = vector.load %arg11[%c0_231, %c0_232] : memref<4x8xbf16, #tpu.memory_space<vmem>>, vector<4x8xbf16>
    %cst_233 = arith.constant dense<0.000000e+00> : vector<16x8xf32>
    %516 = tpu.matmul %514, %515, %cst_233 {dimension_numbers = #tpu.dot_dimension_numbers<[1], [0], [0], [1], [0, 0, 1, 1], [], []>} : vector<16x4xbf16>, vector<4x8xbf16>, vector<16x8xf32> -> vector<16x8xf32>
    %c0_234 = arith.constant 0 : index
    %c0_235 = arith.constant 0 : index
    %517 = vector.load %arg12[%c0_234, %c0_235] : memref<1x8xf32, #tpu.memory_space<vmem>>, vector<1x8xf32>
    %518 = vector.broadcast %517 : vector<1x8xf32> to vector<16x8xf32>
    %519 = arith.mulf %516, %518 : vector<16x8xf32>
    %c0_236 = arith.constant 0 : index
    %c0_237 = arith.constant 0 : index
    %520 = vector.load %arg13[%c0_236, %c0_237] : memref<1x8xf32, #tpu.memory_space<vmem>>, vector<1x8xf32>
    %521 = vector.broadcast %520 : vector<1x8xf32> to vector<16x8xf32>
    %522 = arith.addf %519, %521 : vector<16x8xf32>
    %523 = arith.negf %522 : vector<16x8xf32>
    %524 = math.exp %523 : vector<16x8xf32>
    %cst_238 = arith.constant 1.000000e+00 : f32
    %525 = vector.broadcast %cst_238 : f32 to vector<16x8xf32>
    %526 = arith.addf %525, %524 : vector<16x8xf32>
    %527 = arith.divf %525, %526 : vector<16x8xf32>
    %528 = arith.mulf %522, %527 : vector<16x8xf32>
    %c0_239 = arith.constant 0 : index
    %c0_240 = arith.constant 0 : index
    %c0_241 = arith.constant 0 : index
    %529 = vector.load %arg14[%c0_239, %c0_240, %c0_241] : memref<1x16x8xf32, #tpu.memory_space<vmem>>, vector<1x16x8xf32>
    %530 = vector.shape_cast %529 : vector<1x16x8xf32> to vector<16x8xf32>
    %531 = vector.shape_cast %528 : vector<16x8xf32> to vector<1x16x8xf32>
    tpu.vector_store %arg14[%c0_239, %c0_240, %c0_241], %531 {strides = array<i32>} : memref<1x16x8xf32, #tpu.memory_space<vmem>>, vector<1x16x8xf32>,
    return
  }
  func.func @transform_0(%arg0: i32) -> (i32, i32, i32, i32) {
    %c0_i32 = arith.constant 0 : i32
    %c0_i32_0 = arith.constant 0 : i32
    %c0_i32_1 = arith.constant 0 : i32
    %c0_i32_2 = arith.constant 0 : i32
    return %arg0, %c0_i32, %c0_i32_0, %c0_i32_1 : i32, i32, i32, i32
  }
  func.func @transform_1(%arg0: i32) -> (i32, i32, i32) {
    %c0_i32 = arith.constant 0 : i32
    %c0_i32_0 = arith.constant 0 : i32
    %c0_i32_1 = arith.constant 0 : i32
    %c0_i32_2 = arith.constant 0 : i32
    return %c0_i32, %c0_i32_0, %c0_i32_1 : i32, i32, i32
  }
  func.func @transform_2(%arg0: i32) -> (i32, i32, i32) {
    %c0_i32 = arith.constant 0 : i32
    %c0_i32_0 = arith.constant 0 : i32
    %c0_i32_1 = arith.constant 0 : i32
    %c0_i32_2 = arith.constant 0 : i32
    return %c0_i32, %c0_i32_0, %c0_i32_1 : i32, i32, i32
  }
  func.func @transform_3(%arg0: i32) -> (i32, i32, i32, i32, i32) {
    %c0_i32 = arith.constant 0 : i32
    %c0_i32_0 = arith.constant 0 : i32
    %c0_i32_1 = arith.constant 0 : i32
    %c0_i32_2 = arith.constant 0 : i32
    %c0_i32_3 = arith.constant 0 : i32
    %c0_i32_4 = arith.constant 0 : i32
    return %c0_i32, %c0_i32_0, %c0_i32_1, %c0_i32_2, %c0_i32_3 : i32, i32, i32, i32, i32
  }
  func.func @transform_4(%arg0: i32) -> (i32, i32, i32, i32, i32) {
    %c0_i32 = arith.constant 0 : i32
    %c0_i32_0 = arith.constant 0 : i32
    %c0_i32_1 = arith.constant 0 : i32
    %c0_i32_2 = arith.constant 0 : i32
    %c0_i32_3 = arith.constant 0 : i32
    %c0_i32_4 = arith.constant 0 : i32
    return %c0_i32, %c0_i32_0, %c0_i32_1, %c0_i32_2, %c0_i32_3 : i32, i32, i32, i32, i32
  }
  func.func @transform_5(%arg0: i32) -> (i32, i32) {
    %c0_i32 = arith.constant 0 : i32
    %c0_i32_0 = arith.constant 0 : i32
    %c0_i32_1 = arith.constant 0 : i32
    return %c0_i32, %c0_i32_0 : i32, i32
  }
  func.func @transform_6(%arg0: i32) -> (i32, i32) {
    %c0_i32 = arith.constant 0 : i32
    %c0_i32_0 = arith.constant 0 : i32
    %c0_i32_1 = arith.constant 0 : i32
    return %c0_i32, %c0_i32_0 : i32, i32
  }
  func.func @transform_7(%arg0: i32) -> (i32, i32) {
    %c0_i32 = arith.constant 0 : i32
    %c0_i32_0 = arith.constant 0 : i32
    %c0_i32_1 = arith.constant 0 : i32
    return %c0_i32, %c0_i32_0 : i32, i32
  }
  func.func @transform_8(%arg0: i32) -> (i32, i32) {
    %c0_i32 = arith.constant 0 : i32
    %c0_i32_0 = arith.constant 0 : i32
    %c0_i32_1 = arith.constant 0 : i32
    return %c0_i32, %c0_i32_0 : i32, i32
  }
  func.func @transform_9(%arg0: i32) -> (i32, i32) {
    %c0_i32 = arith.constant 0 : i32
    %c0_i32_0 = arith.constant 0 : i32
    %c0_i32_1 = arith.constant 0 : i32
    return %c0_i32, %c0_i32_0 : i32, i32
  }
  func.func @transform_10(%arg0: i32) -> (i32, i32) {
    %c0_i32 = arith.constant 0 : i32
    %c0_i32_0 = arith.constant 0 : i32
    %c0_i32_1 = arith.constant 0 : i32
    return %c0_i32, %c0_i32_0 : i32, i32
  }
  func.func @transform_11(%arg0: i32) -> (i32, i32) {
    %c0_i32 = arith.constant 0 : i32
    %c0_i32_0 = arith.constant 0 : i32
    %c0_i32_1 = arith.constant 0 : i32
    return %c0_i32, %c0_i32_0 : i32, i32
  }
  func.func @transform_12(%arg0: i32) -> (i32, i32) {
    %c0_i32 = arith.constant 0 : i32
    %c0_i32_0 = arith.constant 0 : i32
    %c0_i32_1 = arith.constant 0 : i32
    return %c0_i32, %c0_i32_0 : i32, i32
  }
  func.func @transform_13(%arg0: i32) -> (i32, i32, i32) {
    %c0_i32 = arith.constant 0 : i32
    %c0_i32_0 = arith.constant 0 : i32
    %c0_i32_1 = arith.constant 0 : i32
    return %arg0, %c0_i32, %c0_i32_0 : i32, i32, i32
  }
}

</mosaic_0001>

<llo_original>
// kernel: gat_featurehw_forward.1
$region0: #{gat_featurehw_forward.1}
  #allocation0 [shape = 'u32[]', space=smem, size = 0x4, offset = 0x4, fixed_abs, tag = 'smem constant byte address 0x4 - core index']
  #allocation1 [shape = 'u32[144,128]{1,0:T(1,128)}', space=vmem, size = 0x12000, scoped, tag = 'internal scratch']
  %s0 = inlined_call_operand.vmem [shape: f32[2,2,16,8], index: 0, kind: input, shape index: {}]
  %s1 = inlined_call_operand.vmem [shape: bf16[2,8,20], index: 1, kind: input, shape index: {}]
  %s2 = inlined_call_operand.vmem [shape: bf16[2,4,8], index: 2, kind: input, shape index: {}]
  %s3 = inlined_call_operand.vmem [shape: bf16[2,2,2,4,9], index: 3, kind: input, shape index: {}]
  %s4 = inlined_call_operand.vmem [shape: bf16[2,2,2,1,4], index: 4, kind: input, shape index: {}]
  %s5 = inlined_call_operand.vmem [shape: f32[1,8], index: 5, kind: input, shape index: {}]
  %s6 = inlined_call_operand.vmem [shape: f32[1,8], index: 6, kind: input, shape index: {}]
  %s7 = inlined_call_operand.vmem [shape: bf16[8,4], index: 7, kind: input, shape index: {}]
  %s8 = inlined_call_operand.vmem [shape: f32[1,4], index: 8, kind: input, shape index: {}]
  %s9 = inlined_call_operand.vmem [shape: f32[1,4], index: 9, kind: input, shape index: {}]
  %s10 = inlined_call_operand.vmem [shape: bf16[4,8], index: 10, kind: input, shape index: {}]
  %s11 = inlined_call_operand.vmem [shape: f32[1,8], index: 11, kind: input, shape index: {}]
  %s12 = inlined_call_operand.vmem [shape: f32[1,8], index: 12, kind: input, shape index: {}]
  %s13 = inlined_call_operand.vmem [shape: f32[2,16,8], index: 13, kind: output, shape index: {}]
  %s14 = sld [smem:[#allocation0]]
  $region85: #{gat_featurehw_forward.1} parent=0
    _
  %s16 = ssub.s32 1, %s14
  %s17 = scalar_select 0, %s16, %s14
  loop: start=0, step=1, limit=4
  $region2: #{gat_featurehw_forward.1} parent=0 // loop_pre_header
    _
  $region3: #{gat_featurehw_forward.1} parent=0 // loop_header
    %s19 = sphi 0, %s23
    %p20 = scmp.ge.s32.totalorder %s19, 4
    %s29 = sphi 0, %s31
    %s32 = sphi 0, %s29
    %s33 = sphi 0, %s32
    %s49 = sphi 0, %s33
    %s53 = sphi 0, %s53
    %s55 = sphi 0, %s53
    %s56 = sphi 0, %s55
    %s70 = sphi 0, %s56
    %s74 = sphi 0, %s74
    %s76 = sphi 0, %s74
    %s77 = sphi 0, %s76
    %s91 = sphi 0, %s77
    %s95 = sphi 0, %s95
    %s97 = sphi 0, %s95
    %s98 = sphi 0, %s97
    %s112 = sphi 0, %s98
    %s116 = sphi 0, %s116
    %s118 = sphi 0, %s116
    %s119 = sphi 0, %s118
    %s133 = sphi 0, %s119
    %s137 = sphi 0, %s137
    %s139 = sphi 0, %s137
    %s140 = sphi 0, %s139
    %s154 = sphi 0, %s140
    %s158 = sphi 0, %s158
    %s160 = sphi 0, %s158
    %s161 = sphi 0, %s160
    %s175 = sphi 0, %s161
    %s179 = sphi 0, %s179
    %s181 = sphi 0, %s179
    %s182 = sphi 0, %s181
    %s196 = sphi 0, %s182
    %s200 = sphi 0, %s200
    %s202 = sphi 0, %s200
    %s203 = sphi 0, %s202
    %s217 = sphi 0, %s203
    %s221 = sphi 0, %s221
    %s223 = sphi 0, %s221
    %s224 = sphi 0, %s223
    %s238 = sphi 0, %s224
    %s242 = sphi 0, %s242
    %s244 = sphi 0, %s242
    %s245 = sphi 0, %s244
    %s259 = sphi 0, %s245
    %s263 = sphi 0, %s263
    %s265 = sphi 0, %s263
    %s266 = sphi 0, %s265
    %s280 = sphi 0, %s266
    %s284 = sphi 0, %s284
    %s286 = sphi 0, %s284
    %s287 = sphi 0, %s286
    %s301 = sphi 0, %s287
    %s307 = sphi 0, %s309
    %s310 = sphi 0, %s307
    %s311 = sphi 0, %s310
    %s327 = sphi 0, %s311
  $region4: #{gat_featurehw_forward.1} parent=0 // loop_header_branch
    %22 = sbr.rel (%p20) target = $region8
  $region5: #{gat_featurehw_forward.1} parent=0 // loop_body
    %s24 = ssub.s32 %s19, 1
    %s25 = ssub.s32 %s19, 2
    %s26 = sadd.s32 %s19, 1
    %s27 = ssub.s32 %s19, %s26
    %p28 = scmp.eq.s32.totalorder %s27, 0
    %s30 = sadd.s32 %s29, 1
    %s31 = scalar_select %p28, %s29, %s30
    %p34 = pneg %p28
    %p35 = scmp.eq.s32.totalorder %s19, 1
    %p36 = por %p34, %p35
    %p37 = scmp.ne.s32.totalorder %s29, %s32
    %p38 = scmp.eq.s32.totalorder %s19, 0
    %p39 = por %p37, %p38
    %p40 = scmp.ne.s32.totalorder %s29, %s32
    %p41 = scmp.eq.s32.totalorder %s24, 1
    %p42 = por %p40, %p41
    %p43 = scmp.ne.s32.totalorder %s32, %s33
    %p44 = scmp.eq.s32.totalorder %s24, 0
    %p45 = por %p43, %p44
    %p46 = scmp.ne.s32.totalorder %s32, %s33
    %p47 = scmp.eq.s32.totalorder %s25, 1
    %p48 = por %p46, %p47
    %p50 = scmp.ne.s32.totalorder %s33, %s49
    %p51 = scmp.eq.s32.totalorder %s25, 0
    %p52 = por %p50, %p51
    %s54 = sadd.s32 %s53, 1
    %p57 = scmp.eq.s32.totalorder %s19, 1
    %p58 = scmp.ne.s32.totalorder %s53, %s55
    %p59 = scmp.eq.s32.totalorder %s19, 0
    %p60 = por %p58, %p59
    %p61 = scmp.ne.s32.totalorder %s53, %s55
    %p62 = scmp.eq.s32.totalorder %s24, 1
    %p63 = por %p61, %p62
    %p64 = scmp.ne.s32.totalorder %s55, %s56
    %p65 = scmp.eq.s32.totalorder %s24, 0
    %p66 = por %p64, %p65
    %p67 = scmp.ne.s32.totalorder %s55, %s56
    %p68 = scmp.eq.s32.totalorder %s25, 1
    %p69 = por %p67, %p68
    %p71 = scmp.ne.s32.totalorder %s56, %s70
    %p72 = scmp.eq.s32.totalorder %s25, 0
    %p73 = por %p71, %p72
    %s75 = sadd.s32 %s74, 1
    %p78 = scmp.eq.s32.totalorder %s19, 1
    %p79 = scmp.ne.s32.totalorder %s74, %s76
    %p80 = scmp.eq.s32.totalorder %s19, 0
    %p81 = por %p79, %p80
    %p82 = scmp.ne.s32.totalorder %s74, %s76
    %p83 = scmp.eq.s32.totalorder %s24, 1
    %p84 = por %p82, %p83
    %p85 = scmp.ne.s32.totalorder %s76, %s77
    %p86 = scmp.eq.s32.totalorder %s24, 0
    %p87 = por %p85, %p86
    %p88 = scmp.ne.s32.totalorder %s76, %s77
    %p89 = scmp.eq.s32.totalorder %s25, 1
    %p90 = por %p88, %p89
    %p92 = scmp.ne.s32.totalorder %s77, %s91
    %p93 = scmp.eq.s32.totalorder %s25, 0
    %p94 = por %p92, %p93
    %s96 = sadd.s32 %s95, 1
    %p99 = scmp.eq.s32.totalorder %s19, 1
    %p100 = scmp.ne.s32.totalorder %s95, %s97
    %p101 = scmp.eq.s32.totalorder %s19, 0
    %p102 = por %p100, %p101
    %p103 = scmp.ne.s32.totalorder %s95, %s97
    %p104 = scmp.eq.s32.totalorder %s24, 1
    %p105 = por %p103, %p104
    %p106 = scmp.ne.s32.totalorder %s97, %s98
    %p107 = scmp.eq.s32.totalorder %s24, 0
    %p108 = por %p106, %p107
    %p109 = scmp.ne.s32.totalorder %s97, %s98
    %p110 = scmp.eq.s32.totalorder %s25, 1
    %p111 = por %p109, %p110
    %p113 = scmp.ne.s32.totalorder %s98, %s112
    %p114 = scmp.eq.s32.totalorder %s25, 0
    %p115 = por %p113, %p114
    %s117 = sadd.s32 %s116, 1
    %p120 = scmp.eq.s32.totalorder %s19, 1
    %p121 = scmp.ne.s32.totalorder %s116, %s118
    %p122 = scmp.eq.s32.totalorder %s19, 0
    %p123 = por %p121, %p122
    %p124 = scmp.ne.s32.totalorder %s116, %s118
    %p125 = scmp.eq.s32.totalorder %s24, 1
    %p126 = por %p124, %p125
    %p127 = scmp.ne.s32.totalorder %s118, %s119
    %p128 = scmp.eq.s32.totalorder %s24, 0
    %p129 = por %p127, %p128
    %p130 = scmp.ne.s32.totalorder %s118, %s119
    %p131 = scmp.eq.s32.totalorder %s25, 1
    %p132 = por %p130, %p131
    %p134 = scmp.ne.s32.totalorder %s119, %s133
    %p135 = scmp.eq.s32.totalorder %s25, 0
    %p136 = por %p134, %p135
    %s138 = sadd.s32 %s137, 1
    %p141 = scmp.eq.s32.totalorder %s19, 1
    %p142 = scmp.ne.s32.totalorder %s137, %s139
    %p143 = scmp.eq.s32.totalorder %s19, 0
    %p144 = por %p142, %p143
    %p145 = scmp.ne.s32.totalorder %s137, %s139
    %p146 = scmp.eq.s32.totalorder %s24, 1
    %p147 = por %p145, %p146
    %p148 = scmp.ne.s32.totalorder %s139, %s140
    %p149 = scmp.eq.s32.totalorder %s24, 0
    %p150 = por %p148, %p149
    %p151 = scmp.ne.s32.totalorder %s139, %s140
    %p152 = scmp.eq.s32.totalorder %s25, 1
    %p153 = por %p151, %p152
    %p155 = scmp.ne.s32.totalorder %s140, %s154
    %p156 = scmp.eq.s32.totalorder %s25, 0
    %p157 = por %p155, %p156
    %s159 = sadd.s32 %s158, 1
    %p162 = scmp.eq.s32.totalorder %s19, 1
    %p163 = scmp.ne.s32.totalorder %s158, %s160
    %p164 = scmp.eq.s32.totalorder %s19, 0
    %p165 = por %p163, %p164
    %p166 = scmp.ne.s32.totalorder %s158, %s160
    %p167 = scmp.eq.s32.totalorder %s24, 1
    %p168 = por %p166, %p167
    %p169 = scmp.ne.s32.totalorder %s160, %s161
    %p170 = scmp.eq.s32.totalorder %s24, 0
    %p171 = por %p169, %p170
    %p172 = scmp.ne.s32.totalorder %s160, %s161
    %p173 = scmp.eq.s32.totalorder %s25, 1
    %p174 = por %p172, %p173
    %p176 = scmp.ne.s32.totalorder %s161, %s175
    %p177 = scmp.eq.s32.totalorder %s25, 0
    %p178 = por %p176, %p177
    %s180 = sadd.s32 %s179, 1
    %p183 = scmp.eq.s32.totalorder %s19, 1
    %p184 = scmp.ne.s32.totalorder %s179, %s181
    %p185 = scmp.eq.s32.totalorder %s19, 0
    %p186 = por %p184, %p185
    %p187 = scmp.ne.s32.totalorder %s179, %s181
    %p188 = scmp.eq.s32.totalorder %s24, 1
    %p189 = por %p187, %p188
    %p190 = scmp.ne.s32.totalorder %s181, %s182
    %p191 = scmp.eq.s32.totalorder %s24, 0
    %p192 = por %p190, %p191
    %p193 = scmp.ne.s32.totalorder %s181, %s182
    %p194 = scmp.eq.s32.totalorder %s25, 1
    %p195 = por %p193, %p194
    %p197 = scmp.ne.s32.totalorder %s182, %s196
    %p198 = scmp.eq.s32.totalorder %s25, 0
    %p199 = por %p197, %p198
    %s201 = sadd.s32 %s200, 1
    %p204 = scmp.eq.s32.totalorder %s19, 1
    %p205 = scmp.ne.s32.totalorder %s200, %s202
    %p206 = scmp.eq.s32.totalorder %s19, 0
    %p207 = por %p205, %p206
    %p208 = scmp.ne.s32.totalorder %s200, %s202
    %p209 = scmp.eq.s32.totalorder %s24, 1
    %p210 = por %p208, %p209
    %p211 = scmp.ne.s32.totalorder %s202, %s203
    %p212 = scmp.eq.s32.totalorder %s24, 0
    %p213 = por %p211, %p212
    %p214 = scmp.ne.s32.totalorder %s202, %s203
    %p215 = scmp.eq.s32.totalorder %s25, 1
    %p216 = por %p214, %p215
    %p218 = scmp.ne.s32.totalorder %s203, %s217
    %p219 = scmp.eq.s32.totalorder %s25, 0
    %p220 = por %p218, %p219
    %s222 = sadd.s32 %s221, 1
    %p225 = scmp.eq.s32.totalorder %s19, 1
    %p226 = scmp.ne.s32.totalorder %s221, %s223
    %p227 = scmp.eq.s32.totalorder %s19, 0
    %p228 = por %p226, %p227
    %p229 = scmp.ne.s32.totalorder %s221, %s223
    %p230 = scmp.eq.s32.totalorder %s24, 1
    %p231 = por %p229, %p230
    %p232 = scmp.ne.s32.totalorder %s223, %s224
    %p233 = scmp.eq.s32.totalorder %s24, 0
    %p234 = por %p232, %p233
    %p235 = scmp.ne.s32.totalorder %s223, %s224
    %p236 = scmp.eq.s32.totalorder %s25, 1
    %p237 = por %p235, %p236
    %p239 = scmp.ne.s32.totalorder %s224, %s238
    %p240 = scmp.eq.s32.totalorder %s25, 0
    %p241 = por %p239, %p240
    %s243 = sadd.s32 %s242, 1
    %p246 = scmp.eq.s32.totalorder %s19, 1
    %p247 = scmp.ne.s32.totalorder %s242, %s244
    %p248 = scmp.eq.s32.totalorder %s19, 0
    %p249 = por %p247, %p248
    %p250 = scmp.ne.s32.totalorder %s242, %s244
    %p251 = scmp.eq.s32.totalorder %s24, 1
    %p252 = por %p250, %p251
    %p253 = scmp.ne.s32.totalorder %s244, %s245
    %p254 = scmp.eq.s32.totalorder %s24, 0
    %p255 = por %p253, %p254
    %p256 = scmp.ne.s32.totalorder %s244, %s245
    %p257 = scmp.eq.s32.totalorder %s25, 1
    %p258 = por %p256, %p257
    %p260 = scmp.ne.s32.totalorder %s245, %s259
    %p261 = scmp.eq.s32.totalorder %s25, 0
    %p262 = por %p260, %p261
    %s264 = sadd.s32 %s263, 1
    %p267 = scmp.eq.s32.totalorder %s19, 1
    %p268 = scmp.ne.s32.totalorder %s263, %s265
    %p269 = scmp.eq.s32.totalorder %s19, 0
    %p270 = por %p268, %p269
    %p271 = scmp.ne.s32.totalorder %s263, %s265
    %p272 = scmp.eq.s32.totalorder %s24, 1
    %p273 = por %p271, %p272
    %p274 = scmp.ne.s32.totalorder %s265, %s266
    %p275 = scmp.eq.s32.totalorder %s24, 0
    %p276 = por %p274, %p275
    %p277 = scmp.ne.s32.totalorder %s265, %s266
    %p278 = scmp.eq.s32.totalorder %s25, 1
    %p279 = por %p277, %p278
    %p281 = scmp.ne.s32.totalorder %s266, %s280
    %p282 = scmp.eq.s32.totalorder %s25, 0
    %p283 = por %p281, %p282
    %s285 = sadd.s32 %s284, 1
    %p288 = scmp.eq.s32.totalorder %s19, 1
    %p289 = scmp.ne.s32.totalorder %s284, %s286
    %p290 = scmp.eq.s32.totalorder %s19, 0
    %p291 = por %p289, %p290
    %p292 = scmp.ne.s32.totalorder %s284, %s286
    %p293 = scmp.eq.s32.totalorder %s24, 1
    %p294 = por %p292, %p293
    %p295 = scmp.ne.s32.totalorder %s286, %s287
    %p296 = scmp.eq.s32.totalorder %s24, 0
    %p297 = por %p295, %p296
    %p298 = scmp.ne.s32.totalorder %s286, %s287
    %p299 = scmp.eq.s32.totalorder %s25, 1
    %p300 = por %p298, %p299
    %p302 = scmp.ne.s32.totalorder %s287, %s301
    %p303 = scmp.eq.s32.totalorder %s25, 0
    %p304 = por %p302, %p303
    %s305 = ssub.s32 %s19, %s26
    %p306 = scmp.eq.s32.totalorder %s305, 0
    %s308 = sadd.s32 %s307, 1
    %s309 = scalar_select %p306, %s307, %s308
    %p312 = pneg %p306
    %p313 = scmp.eq.s32.totalorder %s19, 1
    %p314 = por %p312, %p313
    %p315 = scmp.ne.s32.totalorder %s307, %s310
    %p316 = scmp.eq.s32.totalorder %s19, 0
    %p317 = por %p315, %p316
    %p318 = scmp.ne.s32.totalorder %s307, %s310
    %p319 = scmp.eq.s32.totalorder %s24, 1
    %p320 = por %p318, %p319
    %p321 = scmp.ne.s32.totalorder %s310, %s311
    %p322 = scmp.eq.s32.totalorder %s24, 0
    %p323 = por %p321, %p322
    %p324 = scmp.ne.s32.totalorder %s310, %s311
    %p325 = scmp.eq.s32.totalorder %s25, 1
    %p326 = por %p324, %p325
    %p328 = scmp.ne.s32.totalorder %s311, %s327
    %p329 = scmp.eq.s32.totalorder %s25, 0
    %p330 = por %p328, %p329
    %p331 = scmp.le.s32.totalorder 1, %s19
    %p332 = scmp.lt.s32.totalorder %s19, 3
    %p333 = pnand %p331, %p332
    %p334 = pneg %p333
    // Predicated region
    $region9: #{gat_featurehw_forward.1} parent=5 // pred_check
      _
    $region10: #{gat_featurehw_forward.1} parent=5 // pred_check_branch
      %336 = sbr.rel (%p333) target = $region12
    $region11: #{gat_featurehw_forward.1} parent=5 // pred_region
      %s337 = ssub.s32 %s19, 1
      // Predicated region
      $region13: #{gat_featurehw_forward.1} parent=11 // pred_check
        %p338 = pneg %p66
      $region14: #{gat_featurehw_forward.1} parent=11 // pred_check_branch
        %340 = sbr.rel (%p338) target = $region16
      $region15: #{gat_featurehw_forward.1} parent=11 // pred_region
        _
      $region16: #{gat_featurehw_forward.1} parent=11 // pred_fallthru
        _
      // Predicated region
      $region17: #{gat_featurehw_forward.1} parent=11 // pred_check
        %p341 = pneg %p87
      $region18: #{gat_featurehw_forward.1} parent=11 // pred_check_branch
        %343 = sbr.rel (%p341) target = $region20
      $region19: #{gat_featurehw_forward.1} parent=11 // pred_region
        _
      $region20: #{gat_featurehw_forward.1} parent=11 // pred_fallthru
        _
      // Predicated region
      $region21: #{gat_featurehw_forward.1} parent=11 // pred_check
        %p344 = pneg %p108
      $region22: #{gat_featurehw_forward.1} parent=11 // pred_check_branch
        %346 = sbr.rel (%p344) target = $region24
      $region23: #{gat_featurehw_forward.1} parent=11 // pred_region
        _
      $region24: #{gat_featurehw_forward.1} parent=11 // pred_fallthru
        _
      // Predicated region
      $region25: #{gat_featurehw_forward.1} parent=11 // pred_check
        %p347 = pneg %p129
      $region26: #{gat_featurehw_forward.1} parent=11 // pred_check_branch
        %349 = sbr.rel (%p347) target = $region28
      $region27: #{gat_featurehw_forward.1} parent=11 // pred_region
        _
      $region28: #{gat_featurehw_forward.1} parent=11 // pred_fallthru
        _
      // Predicated region
      $region29: #{gat_featurehw_forward.1} parent=11 // pred_check
        %p350 = pneg %p150
      $region30: #{gat_featurehw_forward.1} parent=11 // pred_check_branch
        %352 = sbr.rel (%p350) target = $region32
      $region31: #{gat_featurehw_forward.1} parent=11 // pred_region
        _
      $region32: #{gat_featurehw_forward.1} parent=11 // pred_fallthru
        _
      // Predicated region
      $region33: #{gat_featurehw_forward.1} parent=11 // pred_check
        %p353 = pneg %p171
      $region34: #{gat_featurehw_forward.1} parent=11 // pred_check_branch
        %355 = sbr.rel (%p353) target = $region36
      $region35: #{gat_featurehw_forward.1} parent=11 // pred_region
        _
      $region36: #{gat_featurehw_forward.1} parent=11 // pred_fallthru
        _
      // Predicated region
      $region37: #{gat_featurehw_forward.1} parent=11 // pred_check
        %p356 = pneg %p192
      $region38: #{gat_featurehw_forward.1} parent=11 // pred_check_branch
        %358 = sbr.rel (%p356) target = $region40
      $region39: #{gat_featurehw_forward.1} parent=11 // pred_region
        _
      $region40: #{gat_featurehw_forward.1} parent=11 // pred_fallthru
        _
      // Predicated region
      $region41: #{gat_featurehw_forward.1} parent=11 // pred_check
        %p359 = pneg %p213
      $region42: #{gat_featurehw_forward.1} parent=11 // pred_check_branch
        %361 = sbr.rel (%p359) target = $region44
      $region43: #{gat_featurehw_forward.1} parent=11 // pred_region
        _
      $region44: #{gat_featurehw_forward.1} parent=11 // pred_fallthru
        _
      // Predicated region
      $region45: #{gat_featurehw_forward.1} parent=11 // pred_check
        %p362 = pneg %p234
      $region46: #{gat_featurehw_forward.1} parent=11 // pred_check_branch
        %364 = sbr.rel (%p362) target = $region48
      $region47: #{gat_featurehw_forward.1} parent=11 // pred_region
        _
      $region48: #{gat_featurehw_forward.1} parent=11 // pred_fallthru
        _
      // Predicated region
      $region49: #{gat_featurehw_forward.1} parent=11 // pred_check
        %p365 = pneg %p255
      $region50: #{gat_featurehw_forward.1} parent=11 // pred_check_branch
        %367 = sbr.rel (%p365) target = $region52
      $region51: #{gat_featurehw_forward.1} parent=11 // pred_region
        _
      $region52: #{gat_featurehw_forward.1} parent=11 // pred_fallthru
        _
      // Predicated region
      $region53: #{gat_featurehw_forward.1} parent=11 // pred_check
        %p368 = pneg %p276
      $region54: #{gat_featurehw_forward.1} parent=11 // pred_check_branch
        %370 = sbr.rel (%p368) target = $region56
      $region55: #{gat_featurehw_forward.1} parent=11 // pred_region
        _
      $region56: #{gat_featurehw_forward.1} parent=11 // pred_fallthru
        _
      // Predicated region
      $region57: #{gat_featurehw_forward.1} parent=11 // pred_check
        %p371 = pneg %p297
      $region58: #{gat_featurehw_forward.1} parent=11 // pred_check_branch
        %373 = sbr.rel (%p371) target = $region60
      $region59: #{gat_featurehw_forward.1} parent=11 // pred_region
        _
      $region60: #{gat_featurehw_forward.1} parent=11 // pred_fallthru
        _
    $region12: #{gat_featurehw_forward.1} parent=5 // pred_fallthru
      _
    %p374 = scmp.lt.s32.totalorder %s19, 2
    // Predicated region
    $region61: #{gat_featurehw_forward.1} parent=5 // pred_check
      %p375 = pneg %p374
    $region62: #{gat_featurehw_forward.1} parent=5 // pred_check_branch
      %377 = sbr.rel (%p375) target = $region64
    $region63: #{gat_featurehw_forward.1} parent=5 // pred_region
      // Predicated region
      $region65: #{gat_featurehw_forward.1} parent=63 // pred_check
        %p378 = pneg %p39
      $region66: #{gat_featurehw_forward.1} parent=63 // pred_check_branch
        %380 = sbr.rel (%p378) target = $region68
      $region67: #{gat_featurehw_forward.1} parent=63 // pred_region
        %p381 = scmp.lt.s32.totalorder %s19, 1
        %s382 = scalar_select %p381, %s19, 1
        %s383 = smul.addr %s382, 4
        %s384 = smul.addr %s383, 8
        %s385 = scalar_lea.vmem %s0, %s384
      $region68: #{gat_featurehw_forward.1} parent=63 // pred_fallthru
        _
    $region64: #{gat_featurehw_forward.1} parent=5 // pred_fallthru
      _
    %p386 = scmp.le.s32.totalorder 1, %s19
    %p387 = scmp.lt.s32.totalorder %s19, 3
    %p388 = pnand %p386, %p387
    %p389 = pneg %p388
    // Predicated region
    $region69: #{gat_featurehw_forward.1} parent=5 // pred_check
      _
    $region70: #{gat_featurehw_forward.1} parent=5 // pred_check_branch
      %391 = sbr.rel (%p388) target = $region72
    $region71: #{gat_featurehw_forward.1} parent=5 // pred_region
      %s392 = ssub.s32 %s19, 1
      %p393 = scmp.lt.s32.totalorder %s24, 1
      %s394 = scalar_select %p393, %s24, 1
      %s395 = smul.addr %s394, 4
      %s396 = smul.addr %s395, 8
      %s397 = scalar_lea.vmem %s0, %s396
      %p398 = pneg %p45
      %p399 = pneg %p42
      %p400 = pneg %p66
      %p401 = pneg %p63
      %p402 = pneg %p87
      %p403 = pneg %p84
      %p404 = pneg %p108
      %p405 = pneg %p105
      %p406 = pneg %p129
      %p407 = pneg %p126
      %p408 = pneg %p150
      %p409 = pneg %p147
      %p410 = pneg %p171
      %p411 = pneg %p168
      %p412 = pneg %p192
      %p413 = pneg %p189
      %p414 = pneg %p213
      %p415 = pneg %p210
      %p416 = pneg %p234
      %p417 = pneg %p231
      %p418 = pneg %p255
      %p419 = pneg %p252
      %p420 = pneg %p276
      %p421 = pneg %p273
      %p422 = pneg %p297
      %p423 = pneg %p294
      %p424 = pneg %p323
      %p425 = pneg %p320
      %p426 = scmp.lt.s32.totalorder %s24, 1
      %s427 = scalar_select %p426, %s24, 1
      %s428 = smul.addr %s427, 2
      %s429 = smul.addr %s428, 8
      %s430 = scalar_lea.vmem %s13, %s429
      %p431 = scmp.lt.s32.totalorder %s24, 1
      %s432 = scalar_select %p431, %s24, 1
      %s433 = smul.addr %s432, 4
      %s434 = smul.addr %s433, 8
      %s435 = scalar_lea.vmem %s0, %s434
      %p436 = scmp.lt.s32.totalorder %s24, 1
      %s437 = scalar_select %p436, %s24, 1
      %s438 = smul.addr %s437, 2
      %s439 = smul.addr %s438, 8
      %s440 = scalar_lea.vmem %s13, %s439
      %v442 = vlaneseq
      %v443 = vshrl.u32 %v442, 7
      %v444 = vadd.s32 %v443, 8
      %v445 = vlaneseq
      %v446 = vand.u32 %v445, 127
      %v447 = vsub.s32 %v443, %v446
      %v448 = vsub.s32 %v444, %v446
      %vm449 = vcmp.lt.s32.totalorder %v447, 0
      %v450 = vsub.s32 0, %v447
      %v451 = vsel %vm449, %v450, %v447
      %vm452 = vcmp.lt.s32.totalorder %v448, 0
      %v453 = vsub.s32 0, %v448
      %v454 = vsel %vm452, %v453, %v448
      %vm455 = vcmp.le.s32.totalorder %v451, 1
      %vm456 = vcmp.le.s32.totalorder %v454, 1
      %v457 = vld [vmem:[%s435] sm:$0xff]
      %v458 = vld [vmem:[%s435 + $0x8] sm:$0xff]
      %v459 = vpack.c.bf16 %v458, %v457
      %vm460 = vcmask 64512
      %v462 = vsel %vm460, %v457, 0
      %v465 = vsel %vm460, %v458, 0
      %467 = vmatprep.subr.mxu0 0.0
      %468 = vmatpush1.xpose.msra.mxu0 %v462
      %469 = vmatprep.subr.mxu0 0.0
      %470 = vmatpush1.xpose.msra.mxu0 %v465
      %471 = vmatprep.subr.mxu0 0.0
      %472 = vmatpush1.xpose.msra.mxu0 0.0
      %473 = vmatprep.subr.mxu0 0.0
      %474 = vmatpush1.xpose.msra.mxu0 0.0
      %475 = vmatprep.subr.mxu0 0.0
      %476 = vmatpush1.xpose.msra.mxu0 0.0
      %477 = vmatprep.subr.mxu0 0.0
      %478 = vmatpush1.xpose.msra.mxu0 0.0
      %479 = vmatprep.subr.mxu0 0.0
      %480 = vmatpush1.xpose.msra.mxu0 0.0
      %481 = vmatprep.subr.mxu0 0.0
      %482 = vmatpush1.xpose.msra.mxu0 0.0
      %483 = vmatprep.subr.mxu0 0.0
      %484 = vmatpush1.xpose.msra.mxu0 0.0
      %485 = vmatprep.subr.mxu0 0.0
      %486 = vmatpush1.xpose.msra.mxu0 0.0
      %487 = vmatprep.subr.mxu0 0.0
      %488 = vmatpush1.xpose.msra.mxu0 0.0
      %489 = vmatprep.subr.mxu0 0.0
      %490 = vmatpush1.xpose.msra.mxu0 0.0
      %491 = vmatprep.subr.mxu0 0.0
      %492 = vmatpush1.xpose.msra.mxu0 0.0
      %493 = vmatprep.subr.mxu0 0.0
      %494 = vmatpush1.xpose.msra.mxu0 0.0
      %495 = vmatprep.subr.mxu0 0.0
      %496 = vmatpush1.xpose.msra.mxu0 0.0
      %497 = vmatprep.subr.mxu0 0.0
      %498 = vmatpush1.xpose.msra.mxu0 0.0
      %499 = vmatprep.subr.mxu0 0.0
      %500 = vmatpush1.xpose.msra.mxu0 0.0
      %501 = vmatprep.subr.mxu0 0.0
      %502 = vmatpush1.xpose.msra.mxu0 0.0
      %503 = vmatprep.subr.mxu0 0.0
      %504 = vmatpush1.xpose.msra.mxu0 0.0
      %505 = vmatprep.subr.mxu0 0.0
      %506 = vmatpush1.xpose.msra.mxu0 0.0
      %507 = vmatprep.subr.mxu0 0.0
      %508 = vmatpush1.xpose.msra.mxu0 0.0
      %509 = vmatprep.subr.mxu0 0.0
      %510 = vmatpush1.xpose.msra.mxu0 0.0
      %511 = vmatprep.subr.mxu0 0.0
      %512 = vmatpush1.xpose.msra.mxu0 0.0
      %513 = vmatprep.subr.mxu0 0.0
      %514 = vmatpush1.xpose.msra.mxu0 0.0
      %515 = vmatprep.subr.mxu0 0.0
      %516 = vmatpush1.xpose.msra.mxu0 0.0
      %517 = vmatprep.subr.mxu0 0.0
      %518 = vmatpush1.xpose.msra.mxu0 0.0
      %519 = vmatprep.subr.mxu0 0.0
      %520 = vmatpush1.xpose.msra.mxu0 0.0
      %521 = vmatprep.subr.mxu0 0.0
      %522 = vmatpush1.xpose.msra.mxu0 0.0
      %523 = vmatprep.subr.mxu0 0.0
      %524 = vmatpush1.xpose.msra.mxu0 0.0
      %525 = vmatprep.subr.mxu0 0.0
      %526 = vmatpush1.xpose.msra.mxu0 0.0
      %527 = vmatprep.subr.mxu0 0.0
      %528 = vmatpush1.xpose.msra.mxu0 0.0
      %529 = vmatprep.subr.mxu0 0.0
      %530 = vmatpush1.xpose.msra.mxu0 0.0
      %531 = vmatprep.mubr.f32.mxu0 0.0
      %532 = vmatmul.mubr.f32.gmra.mrb[0].mxu0 %v462
      %v533 = vpop.f32.mrb[0].mxu0
      %v534 = vadd.f32 0.0, %v533
      %v535 = vpop.f32.mrb[0].mxu0
      %536 = vmatprep.mubr.f32.mxu0 0.0
      %537 = vmatmul.mubr.f32.gmra.mrb[0].mxu0 %v465
      %v538 = vpop.f32.mrb[0].mxu0
      %v539 = vadd.f32 0.0, %v538
      %v540 = vpop.f32.mrb[0].mxu0
      %541 = vdwg.mxu0
      %vm542 = vcmp.gt.f32.partialorder %v534, 0.0
      %vm543 = vcmp.gt.f32.partialorder %v539, 0.0
      %vm544 = vmand %vm542, %vm455
      %vm545 = vmand %vm543, %vm456
      %v546 = vld [vmem:[%s1] sm:$0xf]
      %v548 = vsel %vm460, %v459, 0
      %vm550 = vcmask 1043456
      %v552 = vsel %vm550, %v546, 0
      %554 = vmatprep.subr.bf16.mxu0 0
      %555 = vmatpush1.bf16.msra.mxu0 %v552
      %556 = vmatprep.subr.bf16.mxu0 0
      %557 = vmatpush1.bf16.msra.mxu0 0
      %558 = vmatprep.subr.bf16.mxu0 0
      %559 = vmatpush1.bf16.msra.mxu0 0
      %560 = vmatprep.subr.bf16.mxu0 0
      %561 = vmatpush1.bf16.msra.mxu0 0
      %562 = vmatprep.subr.bf16.mxu0 0
      %563 = vmatpush1.bf16.msra.mxu0 0
      %564 = vmatprep.subr.bf16.mxu0 0
      %565 = vmatpush1.bf16.msra.mxu0 0
      %566 = vmatprep.subr.bf16.mxu0 0
      %567 = vmatpush1.bf16.msra.mxu0 0
      %568 = vmatprep.subr.bf16.mxu0 0
      %569 = vmatpush1.bf16.msra.mxu0 0
      %570 = vmatprep.subr.bf16.mxu0 0
      %571 = vmatpush1.bf16.msra.mxu0 0
      %572 = vmatprep.subr.bf16.mxu0 0
      %573 = vmatpush1.bf16.msra.mxu0 0
      %574 = vmatprep.subr.bf16.mxu0 0
      %575 = vmatpush1.bf16.msra.mxu0 0
      %576 = vmatprep.subr.bf16.mxu0 0
      %577 = vmatpush1.bf16.msra.mxu0 0
      %578 = vmatprep.subr.bf16.mxu0 0
      %579 = vmatpush1.bf16.msra.mxu0 0
      %580 = vmatprep.subr.bf16.mxu0 0
      %581 = vmatpush1.bf16.msra.mxu0 0
      %582 = vmatprep.subr.bf16.mxu0 0
      %583 = vmatpush1.bf16.msra.mxu0 0
      %584 = vmatprep.subr.bf16.mxu0 0
      %585 = vmatpush1.bf16.msra.mxu0 0
      %586 = vmatprep.mubr.bf16.mxu0 0
      %587 = vmatmul.mubr.bf16.gmra.mrb[0].mxu0 %v548
      %v588 = vpop.f32.mrb[0].mxu0
      %v589 = vadd.f32 0.0, %v588
      %v590 = vpop.f32.mrb[0].mxu0
      %v591 = vpop.f32.mrb[0].mxu0
      %v592 = vadd.f32 0.0, %v591
      %v593 = vpop.f32.mrb[0].mxu0
      %594 = vdwg.mxu0
      %v595 = vld [vmem:[%s2] sm:$0x3]
      %v597 = vsel %vm460, %v595, 0
      %599 = vmatprep.subr.bf16.mxu0 0
      %600 = vmatpush1.bf16.xpose.msra.mxu0 %v548
      %601 = vmatprep.subr.bf16.mxu0 0
      %602 = vmatpush1.bf16.xpose.msra.mxu0 0
      %603 = vmatprep.subr.bf16.mxu0 0
      %604 = vmatpush1.bf16.xpose.msra.mxu0 0
      %605 = vmatprep.subr.bf16.mxu0 0
      %606 = vmatpush1.bf16.xpose.msra.mxu0 0
      %607 = vmatprep.subr.bf16.mxu0 0
      %608 = vmatpush1.bf16.xpose.msra.mxu0 0
      %609 = vmatprep.subr.bf16.mxu0 0
      %610 = vmatpush1.bf16.xpose.msra.mxu0 0
      %611 = vmatprep.subr.bf16.mxu0 0
      %612 = vmatpush1.bf16.xpose.msra.mxu0 0
      %613 = vmatprep.subr.bf16.mxu0 0
      %614 = vmatpush1.bf16.xpose.msra.mxu0 0
      %615 = vmatprep.subr.bf16.mxu0 0
      %616 = vmatpush1.bf16.xpose.msra.mxu0 0
      %617 = vmatprep.subr.bf16.mxu0 0
      %618 = vmatpush1.bf16.xpose.msra.mxu0 0
      %619 = vmatprep.subr.bf16.mxu0 0
      %620 = vmatpush1.bf16.xpose.msra.mxu0 0
      %621 = vmatprep.subr.bf16.mxu0 0
      %622 = vmatpush1.bf16.xpose.msra.mxu0 0
      %623 = vmatprep.subr.bf16.mxu0 0
      %624 = vmatpush1.bf16.xpose.msra.mxu0 0
      %625 = vmatprep.subr.bf16.mxu0 0
      %626 = vmatpush1.bf16.xpose.msra.mxu0 0
      %627 = vmatprep.subr.bf16.mxu0 0
      %628 = vmatpush1.bf16.xpose.msra.mxu0 0
      %629 = vmatprep.subr.bf16.mxu0 0
      %630 = vmatpush1.bf16.xpose.msra.mxu0 0
      %631 = vmatprep.mubr.bf16.mxu0 0
      %632 = vmatmul.mubr.bf16.gmra.mrb[0].mxu0 %v597
      %v633 = vpop.f32.mrb[0].mxu0
      %v634 = vadd.f32 0.0, %v633
      %v635 = vpop.f32.mrb[0].mxu0
      %v636 = vpop.f32.mrb[0].mxu0
      %v637 = vpop.f32.mrb[0].mxu0
      %638 = vdwg.mxu0
      %640 = vset.pattern.permute.xlu0 16
      %641 = vperm.xlu0 %640, %v589
      %v642 = vpop.permute.xlu0 %641
      %645 = vset.pattern.permute.xlu0 16
      %646 = vperm.xlu0 %645, %v592
      %v647 = vpop.permute.xlu0 %646
      %v649 = vlaneseq
      %v650 = vshrl.u32 %v649, 7
      %v651 = vsub.s32 0, %v650
      %v652 = vrot.slane %v634, %v651
      %v653 = vadd.f32 %v642, %v652
      %v654 = vadd.f32 %v647, %v652
      %v655 = vmul.f32 %v653, 0.2
      %v656 = vmul.f32 %v654, 0.2
      %v657 = vmax.f32 %v653, %v655
      %v658 = vmax.f32 %v654, %v656
      %v659 = vsel %vm544, %v657, -9e+15
      %v660 = vsel %vm545, %v658, -9e+15
      %vm661 = vcmask 130048
      %v662 = vsel %vm661, %v659, -inf
      %663 = vmax.xlane.f32.xlu0 %v662
      %v664 = vpop.xlane.xlu0 %663
      %v665 = vsel %vm661, %v660, -inf
      %666 = vmax.xlane.f32.xlu0 %v665
      %v667 = vpop.xlane.xlu0 %666
      %v668 = vsub.f32 %v659, %v664
      %v669 = vsub.f32 %v660, %v667
      %v670 = vmul.f32 %v668, 1.442695
      %v671 = vpow.pop %v670
      %v672 = vmul.f32 %v669, 1.442695
      %v673 = vpow.pop %v672
      %v674 = vsel %vm661, %v671, 0.0
      %675 = vadd.xlane.f32.xlu0 %v674
      %v676 = vpop.xlane.xlu0 %675
      %v677 = vsel %vm661, %v673, 0.0
      %678 = vadd.xlane.f32.xlu0 %v677
      %v679 = vpop.xlane.xlu0 %678
      %v680 = vrcp.pop %v676
      %v681 = vrcp.pop %v679
      %v682 = vmul.f32 %v671, %v680
      %v683 = vmul.f32 %v673, %v681
      %v684 = vpack.c.bf16 %v683, %v682
      %v685 = vpack.c.bf16 %v592, %v589
      %v687 = vsel %vm661, %v684, 0
      %689 = vmatprep.subr.bf16.mxu0 0
      %690 = vmatpush1.bf16.msra.mxu0 %v685
      %691 = vmatprep.subr.bf16.mxu0 0
      %692 = vmatpush1.bf16.msra.mxu0 0
      %693 = vmatprep.subr.bf16.mxu0 0
      %694 = vmatpush1.bf16.msra.mxu0 0
      %695 = vmatprep.subr.bf16.mxu0 0
      %696 = vmatpush1.bf16.msra.mxu0 0
      %697 = vmatprep.subr.bf16.mxu0 0
      %698 = vmatpush1.bf16.msra.mxu0 0
      %699 = vmatprep.subr.bf16.mxu0 0
      %700 = vmatpush1.bf16.msra.mxu0 0
      %701 = vmatprep.subr.bf16.mxu0 0
      %702 = vmatpush1.bf16.msra.mxu0 0
      %703 = vmatprep.subr.bf16.mxu0 0
      %704 = vmatpush1.bf16.msra.mxu0 0
      %705 = vmatprep.subr.bf16.mxu0 0
      %706 = vmatpush1.bf16.msra.mxu0 0
      %707 = vmatprep.subr.bf16.mxu0 0
      %708 = vmatpush1.bf16.msra.mxu0 0
      %709 = vmatprep.subr.bf16.mxu0 0
      %710 = vmatpush1.bf16.msra.mxu0 0
      %711 = vmatprep.subr.bf16.mxu0 0
      %712 = vmatpush1.bf16.msra.mxu0 0
      %713 = vmatprep.subr.bf16.mxu0 0
      %714 = vmatpush1.bf16.msra.mxu0 0
      %715 = vmatprep.subr.bf16.mxu0 0
      %716 = vmatpush1.bf16.msra.mxu0 0
      %717 = vmatprep.subr.bf16.mxu0 0
      %718 = vmatpush1.bf16.msra.mxu0 0
      %719 = vmatprep.subr.bf16.mxu0 0
      %720 = vmatpush1.bf16.msra.mxu0 0
      %721 = vmatprep.mubr.bf16.mxu0 0
      %722 = vmatmul.mubr.bf16.gmra.mrb[0].mxu0 %v687
      %v723 = vpop.f32.mrb[0].mxu0
      %v724 = vadd.f32 0.0, %v723
      %v725 = vpop.f32.mrb[0].mxu0
      %v726 = vpop.f32.mrb[0].mxu0
      %v727 = vadd.f32 0.0, %v726
      %v728 = vpop.f32.mrb[0].mxu0
      %729 = vdwg.mxu0
      %vm730 = vcmp.gt.f32.partialorder %v724, 0.0
      %vm731 = vcmp.gt.f32.partialorder %v727, 0.0
      %v732 = vmul.f32 %v724, 1.442695
      %v733 = vpow.pop %v732
      %v734 = vmul.f32 %v727, 1.442695
      %v735 = vpow.pop %v734
      %v736 = vsub.f32 %v733, 1.0
      %v737 = vsub.f32 %v735, 1.0
      %v738 = vsel %vm730, %v724, %v736
      %v739 = vsel %vm731, %v727, %v737
      %v740 = vpack.c.bf16 %v739, %v738
      %v741 = vld [vmem:[%s3] sm:$0x3]
      %v742 = vld [vmem:[%s4] sm:$0x1]
      %743 = vset.pattern.permute.xlu0 17
      %744 = vperm.xlu0 %743, %v589
      %v745 = vpop.permute.xlu0 %744
      %747 = vset.pattern.permute.xlu0 17
      %748 = vperm.xlu0 %747, %v592
      %v749 = vpop.permute.xlu0 %748
      %v751 = vlaneseq
      %v752 = vshrl.u32 %v751, 7
      %v753 = vsub.s32 1, %v752
      %v754 = vrot.slane %v634, %v753
      %v755 = vadd.f32 %v745, %v754
      %v756 = vadd.f32 %v749, %v754
      %v757 = vmul.f32 %v755, 0.2
      %v758 = vmul.f32 %v756, 0.2
      %v759 = vmax.f32 %v755, %v757
      %v760 = vmax.f32 %v756, %v758
      %v761 = vsel %vm544, %v759, -9e+15
      %v762 = vsel %vm545, %v760, -9e+15
      %v763 = vsel %vm661, %v761, -inf
      %764 = vmax.xlane.f32.xlu0 %v763
      %v765 = vpop.xlane.xlu0 %764
      %v766 = vsel %vm661, %v762, -inf
      %767 = vmax.xlane.f32.xlu0 %v766
      %v768 = vpop.xlane.xlu0 %767
      %v769 = vsub.f32 %v761, %v765
      %v770 = vsub.f32 %v762, %v768
      %v771 = vmul.f32 %v769, 1.442695
      %v772 = vpow.pop %v771
      %v773 = vmul.f32 %v770, 1.442695
      %v774 = vpow.pop %v773
      %v775 = vsel %vm661, %v772, 0.0
      %776 = vadd.xlane.f32.xlu0 %v775
      %v777 = vpop.xlane.xlu0 %776
      %v778 = vsel %vm661, %v774, 0.0
      %779 = vadd.xlane.f32.xlu0 %v778
      %v780 = vpop.xlane.xlu0 %779
      %v781 = vrcp.pop %v777
      %v782 = vrcp.pop %v780
      %v783 = vmul.f32 %v772, %v781
      %v784 = vmul.f32 %v774, %v782
      %v785 = vpack.c.bf16 %v784, %v783
      %787 = vrot.lane.b32.xlu0 %v685, 124
      %v788 = vpop.permute.xlu0 %787
      %v791 = vsel %vm661, %v785, 0
      %793 = vmatprep.subr.bf16.mxu0 0
      %794 = vmatpush1.bf16.msra.mxu0 %v788
      %795 = vmatprep.subr.bf16.mxu0 0
      %796 = vmatpush1.bf16.msra.mxu0 0
      %797 = vmatprep.subr.bf16.mxu0 0
      %798 = vmatpush1.bf16.msra.mxu0 0
      %799 = vmatprep.subr.bf16.mxu0 0
      %800 = vmatpush1.bf16.msra.mxu0 0
      %801 = vmatprep.subr.bf16.mxu0 0
      %802 = vmatpush1.bf16.msra.mxu0 0
      %803 = vmatprep.subr.bf16.mxu0 0
      %804 = vmatpush1.bf16.msra.mxu0 0
      %805 = vmatprep.subr.bf16.mxu0 0
      %806 = vmatpush1.bf16.msra.mxu0 0
      %807 = vmatprep.subr.bf16.mxu0 0
      %808 = vmatpush1.bf16.msra.mxu0 0
      %809 = vmatprep.subr.bf16.mxu0 0
      %810 = vmatpush1.bf16.msra.mxu0 0
      %811 = vmatprep.subr.bf16.mxu0 0
      %812 = vmatpush1.bf16.msra.mxu0 0
      %813 = vmatprep.subr.bf16.mxu0 0
      %814 = vmatpush1.bf16.msra.mxu0 0
      %815 = vmatprep.subr.bf16.mxu0 0
      %816 = vmatpush1.bf16.msra.mxu0 0
      %817 = vmatprep.subr.bf16.mxu0 0
      %818 = vmatpush1.bf16.msra.mxu0 0
      %819 = vmatprep.subr.bf16.mxu0 0
      %820 = vmatpush1.bf16.msra.mxu0 0
      %821 = vmatprep.subr.bf16.mxu0 0
      %822 = vmatpush1.bf16.msra.mxu0 0
      %823 = vmatprep.subr.bf16.mxu0 0
      %824 = vmatpush1.bf16.msra.mxu0 0
      %825 = vmatprep.mubr.bf16.mxu0 0
      %826 = vmatmul.mubr.bf16.gmra.mrb[0].mxu0 %v791
      %v827 = vpop.f32.mrb[0].mxu0
      %v828 = vadd.f32 0.0, %v827
      %v829 = vpop.f32.mrb[0].mxu0
      %v830 = vpop.f32.mrb[0].mxu0
      %v831 = vadd.f32 0.0, %v830
      %v832 = vpop.f32.mrb[0].mxu0
      %833 = vdwg.mxu0
      %vm834 = vcmp.gt.f32.partialorder %v828, 0.0
      %vm835 = vcmp.gt.f32.partialorder %v831, 0.0
      %v836 = vmul.f32 %v828, 1.442695
      %v837 = vpow.pop %v836
      %v838 = vmul.f32 %v831, 1.442695
      %v839 = vpow.pop %v838
      %v840 = vsub.f32 %v837, 1.0
      %v841 = vsub.f32 %v839, 1.0
      %v842 = vsel %vm834, %v828, %v840
      %v843 = vsel %vm835, %v831, %v841
      %v844 = vpack.c.bf16 %v843, %v842
      %s845 = scalar_lea.vmem %s3, 2
      %v846 = vld [vmem:[%s845] sm:$0x3]
      %vm847 = vcmask 31744
      %v849 = vsel %vm847, %v844, 0
      %vm851 = vcmask 1041408
      %v853 = vsel %vm851, %v846, 0
      %855 = vmatprep.subr.bf16.mxu0 0
      %856 = vmatpush1.bf16.msra.mxu0 %v853
      %857 = vmatprep.subr.bf16.mxu0 0
      %858 = vmatpush1.bf16.msra.mxu0 0
      %859 = vmatprep.subr.bf16.mxu0 0
      %860 = vmatpush1.bf16.msra.mxu0 0
      %861 = vmatprep.subr.bf16.mxu0 0
      %862 = vmatpush1.bf16.msra.mxu0 0
      %863 = vmatprep.subr.bf16.mxu0 0
      %864 = vmatpush1.bf16.msra.mxu0 0
      %865 = vmatprep.subr.bf16.mxu0 0
      %866 = vmatpush1.bf16.msra.mxu0 0
      %867 = vmatprep.subr.bf16.mxu0 0
      %868 = vmatpush1.bf16.msra.mxu0 0
      %869 = vmatprep.subr.bf16.mxu0 0
      %870 = vmatpush1.bf16.msra.mxu0 0
      %871 = vmatprep.subr.bf16.mxu0 0
      %872 = vmatpush1.bf16.msra.mxu0 0
      %873 = vmatprep.subr.bf16.mxu0 0
      %874 = vmatpush1.bf16.msra.mxu0 0
      %875 = vmatprep.subr.bf16.mxu0 0
      %876 = vmatpush1.bf16.msra.mxu0 0
      %877 = vmatprep.subr.bf16.mxu0 0
      %878 = vmatpush1.bf16.msra.mxu0 0
      %879 = vmatprep.subr.bf16.mxu0 0
      %880 = vmatpush1.bf16.msra.mxu0 0
      %881 = vmatprep.subr.bf16.mxu0 0
      %882 = vmatpush1.bf16.msra.mxu0 0
      %883 = vmatprep.subr.bf16.mxu0 0
      %884 = vmatpush1.bf16.msra.mxu0 0
      %885 = vmatprep.subr.bf16.mxu0 0
      %886 = vmatpush1.bf16.msra.mxu0 0
      %887 = vmatprep.mubr.bf16.mxu0 0
      %888 = vmatmul.mubr.bf16.gmra.mrb[0].mxu0 %v849
      %v889 = vpop.f32.mrb[0].mxu0
      %v890 = vadd.f32 0.0, %v889
      %v891 = vpop.f32.mrb[0].mxu0
      %v892 = vpop.f32.mrb[0].mxu0
      %v893 = vadd.f32 0.0, %v892
      %v894 = vpop.f32.mrb[0].mxu0
      %895 = vdwg.mxu0
      %v897 = vsel %vm847, %v740, 0
      %v900 = vsel %vm851, %v741, 0
      %902 = vmatprep.subr.bf16.mxu0 0
      %903 = vmatpush1.bf16.msra.mxu0 %v900
      %904 = vmatprep.subr.bf16.mxu0 0
      %905 = vmatpush1.bf16.msra.mxu0 0
      %906 = vmatprep.subr.bf16.mxu0 0
      %907 = vmatpush1.bf16.msra.mxu0 0
      %908 = vmatprep.subr.bf16.mxu0 0
      %909 = vmatpush1.bf16.msra.mxu0 0
      %910 = vmatprep.subr.bf16.mxu0 0
      %911 = vmatpush1.bf16.msra.mxu0 0
      %912 = vmatprep.subr.bf16.mxu0 0
      %913 = vmatpush1.bf16.msra.mxu0 0
      %914 = vmatprep.subr.bf16.mxu0 0
      %915 = vmatpush1.bf16.msra.mxu0 0
      %916 = vmatprep.subr.bf16.mxu0 0
      %917 = vmatpush1.bf16.msra.mxu0 0
      %918 = vmatprep.subr.bf16.mxu0 0
      %919 = vmatpush1.bf16.msra.mxu0 0
      %920 = vmatprep.subr.bf16.mxu0 0
      %921 = vmatpush1.bf16.msra.mxu0 0
      %922 = vmatprep.subr.bf16.mxu0 0
      %923 = vmatpush1.bf16.msra.mxu0 0
      %924 = vmatprep.subr.bf16.mxu0 0
      %925 = vmatpush1.bf16.msra.mxu0 0
      %926 = vmatprep.subr.bf16.mxu0 0
      %927 = vmatpush1.bf16.msra.mxu0 0
      %928 = vmatprep.subr.bf16.mxu0 0
      %929 = vmatpush1.bf16.msra.mxu0 0
      %930 = vmatprep.subr.bf16.mxu0 0
      %931 = vmatpush1.bf16.msra.mxu0 0
      %932 = vmatprep.subr.bf16.mxu0 0
      %933 = vmatpush1.bf16.msra.mxu0 0
      %934 = vmatprep.mubr.bf16.mxu0 0
      %935 = vmatmul.mubr.bf16.gmra.mrb[0].mxu0 %v897
      %v936 = vpop.f32.mrb[0].mxu0
      %v937 = vadd.f32 %v890, %v936
      %v938 = vpop.f32.mrb[0].mxu0
      %v939 = vpop.f32.mrb[0].mxu0
      %v940 = vadd.f32 %v893, %v939
      %v941 = vpop.f32.mrb[0].mxu0
      %942 = vdwg.mxu0
      %s943 = scalar_lea.vmem %s4, 1
      %v944 = vld [vmem:[%s943] sm:$0x1]
      %v946 = vsel %vm847, %v944, 0
      %948 = vmatprep.subr.bf16.mxu0 0
      %949 = vmatpush1.bf16.xpose.msra.mxu0 %v849
      %950 = vmatprep.subr.bf16.mxu0 0
      %951 = vmatpush1.bf16.xpose.msra.mxu0 0
      %952 = vmatprep.subr.bf16.mxu0 0
      %953 = vmatpush1.bf16.xpose.msra.mxu0 0
      %954 = vmatprep.subr.bf16.mxu0 0
      %955 = vmatpush1.bf16.xpose.msra.mxu0 0
      %956 = vmatprep.subr.bf16.mxu0 0
      %957 = vmatpush1.bf16.xpose.msra.mxu0 0
      %958 = vmatprep.subr.bf16.mxu0 0
      %959 = vmatpush1.bf16.xpose.msra.mxu0 0
      %960 = vmatprep.subr.bf16.mxu0 0
      %961 = vmatpush1.bf16.xpose.msra.mxu0 0
      %962 = vmatprep.subr.bf16.mxu0 0
      %963 = vmatpush1.bf16.xpose.msra.mxu0 0
      %964 = vmatprep.subr.bf16.mxu0 0
      %965 = vmatpush1.bf16.xpose.msra.mxu0 0
      %966 = vmatprep.subr.bf16.mxu0 0
      %967 = vmatpush1.bf16.xpose.msra.mxu0 0
      %968 = vmatprep.subr.bf16.mxu0 0
      %969 = vmatpush1.bf16.xpose.msra.mxu0 0
      %970 = vmatprep.subr.bf16.mxu0 0
      %971 = vmatpush1.bf16.xpose.msra.mxu0 0
      %972 = vmatprep.subr.bf16.mxu0 0
      %973 = vmatpush1.bf16.xpose.msra.mxu0 0
      %974 = vmatprep.subr.bf16.mxu0 0
      %975 = vmatpush1.bf16.xpose.msra.mxu0 0
      %976 = vmatprep.subr.bf16.mxu0 0
      %977 = vmatpush1.bf16.xpose.msra.mxu0 0
      %978 = vmatprep.subr.bf16.mxu0 0
      %979 = vmatpush1.bf16.xpose.msra.mxu0 0
      %980 = vmatprep.mubr.bf16.mxu0 0
      %981 = vmatmul.mubr.bf16.gmra.mrb[0].mxu0 %v946
      %v982 = vpop.f32.mrb[0].mxu0
      %v983 = vadd.f32 0.0, %v982
      %v984 = vpop.f32.mrb[0].mxu0
      %v985 = vpop.f32.mrb[0].mxu0
      %v986 = vpop.f32.mrb[0].mxu0
      %987 = vdwg.mxu0
      %v989 = vsel %vm847, %v742, 0
      %991 = vmatprep.subr.bf16.mxu0 0
      %992 = vmatpush1.bf16.xpose.msra.mxu0 %v897
      %993 = vmatprep.subr.bf16.mxu0 0
      %994 = vmatpush1.bf16.xpose.msra.mxu0 0
      %995 = vmatprep.subr.bf16.mxu0 0
      %996 = vmatpush1.bf16.xpose.msra.mxu0 0
      %997 = vmatprep.subr.bf16.mxu0 0
      %998 = vmatpush1.bf16.xpose.msra.mxu0 0
      %999 = vmatprep.subr.bf16.mxu0 0
      %1000 = vmatpush1.bf16.xpose.msra.mxu0 0
      %1001 = vmatprep.subr.bf16.mxu0 0
      %1002 = vmatpush1.bf16.xpose.msra.mxu0 0
      %1003 = vmatprep.subr.bf16.mxu0 0
      %1004 = vmatpush1.bf16.xpose.msra.mxu0 0
      %1005 = vmatprep.subr.bf16.mxu0 0
      %1006 = vmatpush1.bf16.xpose.msra.mxu0 0
      %1007 = vmatprep.subr.bf16.mxu0 0
      %1008 = vmatpush1.bf16.xpose.msra.mxu0 0
      %1009 = vmatprep.subr.bf16.mxu0 0
      %1010 = vmatpush1.bf16.xpose.msra.mxu0 0
      %1011 = vmatprep.subr.bf16.mxu0 0
      %1012 = vmatpush1.bf16.xpose.msra.mxu0 0
      %1013 = vmatprep.subr.bf16.mxu0 0
      %1014 = vmatpush1.bf16.xpose.msra.mxu0 0
      %1015 = vmatprep.subr.bf16.mxu0 0
      %1016 = vmatpush1.bf16.xpose.msra.mxu0 0
      %1017 = vmatprep.subr.bf16.mxu0 0
      %1018 = vmatpush1.bf16.xpose.msra.mxu0 0
      %1019 = vmatprep.subr.bf16.mxu0 0
      %1020 = vmatpush1.bf16.xpose.msra.mxu0 0
      %1021 = vmatprep.subr.bf16.mxu0 0
      %1022 = vmatpush1.bf16.xpose.msra.mxu0 0
      %1023 = vmatprep.mubr.bf16.mxu0 0
      %1024 = vmatmul.mubr.bf16.gmra.mrb[0].mxu0 %v989
      %v1025 = vpop.f32.mrb[0].mxu0
      %v1026 = vadd.f32 %v983, %v1025
      %v1027 = vpop.f32.mrb[0].mxu0
      %v1028 = vpop.f32.mrb[0].mxu0
      %v1029 = vpop.f32.mrb[0].mxu0
      %1030 = vdwg.mxu0
      %1032 = vset.pattern.permute.xlu0 8
      %1033 = vperm.xlu0 %1032, %v937
      %v1034 = vpop.permute.xlu0 %1033
      %1037 = vset.pattern.permute.xlu0 8
      %1038 = vperm.xlu0 %1037, %v940
      %v1039 = vpop.permute.xlu0 %1038
      %v1041 = vlaneseq
      %v1042 = vshrl.u32 %v1041, 7
      %v1043 = vsub.s32 0, %v1042
      %v1044 = vrot.slane %v1026, %v1043
      %v1045 = vadd.f32 %v1034, %v1044
      %v1046 = vadd.f32 %v1039, %v1044
      %v1047 = vmul.f32 %v1045, 0.2
      %v1048 = vmul.f32 %v1046, 0.2
      %v1049 = vmax.f32 %v1045, %v1047
      %v1050 = vmax.f32 %v1046, %v1048
      %v1051 = vsel %vm544, %v1049, -9e+15
      %v1052 = vsel %vm545, %v1050, -9e+15
      %v1053 = vsel %vm661, %v1051, -inf
      %1054 = vmax.xlane.f32.xlu0 %v1053
      %v1055 = vpop.xlane.xlu0 %1054
      %v1056 = vsel %vm661, %v1052, -inf
      %1057 = vmax.xlane.f32.xlu0 %v1056
      %v1058 = vpop.xlane.xlu0 %1057
      %v1059 = vsub.f32 %v1051, %v1055
      %v1060 = vsub.f32 %v1052, %v1058
      %v1061 = vmul.f32 %v1059, 1.442695
      %v1062 = vpow.pop %v1061
      %v1063 = vmul.f32 %v1060, 1.442695
      %v1064 = vpow.pop %v1063
      %v1065 = vsel %vm661, %v1062, 0.0
      %1066 = vadd.xlane.f32.xlu0 %v1065
      %v1067 = vpop.xlane.xlu0 %1066
      %v1068 = vsel %vm661, %v1064, 0.0
      %1069 = vadd.xlane.f32.xlu0 %v1068
      %v1070 = vpop.xlane.xlu0 %1069
      %v1071 = vrcp.pop %v1067
      %v1072 = vrcp.pop %v1070
      %v1073 = vmul.f32 %v1062, %v1071
      %v1074 = vmul.f32 %v1064, %v1072
      %v1075 = vpack.c.bf16 %v1074, %v1073
      %v1076 = vpack.c.bf16 %v940, %v937
      %v1078 = vsel %vm661, %v1075, 0
      %1080 = vmatprep.subr.bf16.mxu0 0
      %1081 = vmatpush1.bf16.msra.mxu0 %v1076
      %1082 = vmatprep.subr.bf16.mxu0 0
      %1083 = vmatpush1.bf16.msra.mxu0 0
      %1084 = vmatprep.subr.bf16.mxu0 0
      %1085 = vmatpush1.bf16.msra.mxu0 0
      %1086 = vmatprep.subr.bf16.mxu0 0
      %1087 = vmatpush1.bf16.msra.mxu0 0
      %1088 = vmatprep.subr.bf16.mxu0 0
      %1089 = vmatpush1.bf16.msra.mxu0 0
      %1090 = vmatprep.subr.bf16.mxu0 0
      %1091 = vmatpush1.bf16.msra.mxu0 0
      %1092 = vmatprep.subr.bf16.mxu0 0
      %1093 = vmatpush1.bf16.msra.mxu0 0
      %1094 = vmatprep.subr.bf16.mxu0 0
      %1095 = vmatpush1.bf16.msra.mxu0 0
      %1096 = vmatprep.subr.bf16.mxu0 0
      %1097 = vmatpush1.bf16.msra.mxu0 0
      %1098 = vmatprep.subr.bf16.mxu0 0
      %1099 = vmatpush1.bf16.msra.mxu0 0
      %1100 = vmatprep.subr.bf16.mxu0 0
      %1101 = vmatpush1.bf16.msra.mxu0 0
      %1102 = vmatprep.subr.bf16.mxu0 0
      %1103 = vmatpush1.bf16.msra.mxu0 0
      %1104 = vmatprep.subr.bf16.mxu0 0
      %1105 = vmatpush1.bf16.msra.mxu0 0
      %1106 = vmatprep.subr.bf16.mxu0 0
      %1107 = vmatpush1.bf16.msra.mxu0 0
      %1108 = vmatprep.subr.bf16.mxu0 0
      %1109 = vmatpush1.bf16.msra.mxu0 0
      %1110 = vmatprep.subr.bf16.mxu0 0
      %1111 = vmatpush1.bf16.msra.mxu0 0
      %1112 = vmatprep.mubr.bf16.mxu0 0
      %1113 = vmatmul.mubr.bf16.gmra.mrb[0].mxu0 %v1078
      %v1114 = vpop.f32.mrb[0].mxu0
      %v1115 = vadd.f32 0.0, %v1114
      %v1116 = vpop.f32.mrb[0].mxu0
      %v1117 = vpop.f32.mrb[0].mxu0
      %v1118 = vadd.f32 0.0, %v1117
      %v1119 = vpop.f32.mrb[0].mxu0
      %1120 = vdwg.mxu0
      %vm1121 = vcmp.gt.f32.partialorder %v1115, 0.0
      %vm1122 = vcmp.gt.f32.partialorder %v1118, 0.0
      %v1123 = vmul.f32 %v1115, 1.442695
      %v1124 = vpow.pop %v1123
      %v1125 = vmul.f32 %v1118, 1.442695
      %v1126 = vpow.pop %v1125
      %v1127 = vsub.f32 %v1124, 1.0
      %v1128 = vsub.f32 %v1126, 1.0
      %v1129 = vsel %vm1121, %v1115, %v1127
      %v1130 = vsel %vm1122, %v1118, %v1128
      %v1131 = vadd.f32 %v1129, 0.0
      %v1132 = vadd.f32 %v1130, 0.0
      %1133 = vset.pattern.permute.xlu0 18
      %1134 = vperm.xlu0 %1133, %v589
      %v1135 = vpop.permute.xlu0 %1134
      %1137 = vset.pattern.permute.xlu0 18
      %1138 = vperm.xlu0 %1137, %v592
      %v1139 = vpop.permute.xlu0 %1138
      %v1141 = vlaneseq
      %v1142 = vshrl.u32 %v1141, 7
      %v1143 = vsub.s32 2, %v1142
      %v1144 = vrot.slane %v634, %v1143
      %v1145 = vadd.f32 %v1135, %v1144
      %v1146 = vadd.f32 %v1139, %v1144
      %v1147 = vmul.f32 %v1145, 0.2
      %v1148 = vmul.f32 %v1146, 0.2
      %v1149 = vmax.f32 %v1145, %v1147
      %v1150 = vmax.f32 %v1146, %v1148
      %v1151 = vsel %vm542, %v1149, -9e+15
      %v1152 = vsel %vm543, %v1150, -9e+15
      %v1153 = vsel %vm661, %v1151, -inf
      %1154 = vmax.xlane.f32.xlu0 %v1153
      %v1155 = vpop.xlane.xlu0 %1154
      %v1156 = vsel %vm661, %v1152, -inf
      %1157 = vmax.xlane.f32.xlu0 %v1156
      %v1158 = vpop.xlane.xlu0 %1157
      %v1159 = vsub.f32 %v1151, %v1155
      %v1160 = vsub.f32 %v1152, %v1158
      %v1161 = vmul.f32 %v1159, 1.442695
      %v1162 = vpow.pop %v1161
      %v1163 = vmul.f32 %v1160, 1.442695
      %v1164 = vpow.pop %v1163
      %v1165 = vsel %vm661, %v1162, 0.0
      %1166 = vadd.xlane.f32.xlu0 %v1165
      %v1167 = vpop.xlane.xlu0 %1166
      %v1168 = vsel %vm661, %v1164, 0.0
      %1169 = vadd.xlane.f32.xlu0 %v1168
      %v1170 = vpop.xlane.xlu0 %1169
      %v1171 = vrcp.pop %v1167
      %v1172 = vrcp.pop %v1170
      %v1173 = vmul.f32 %v1162, %v1171
      %v1174 = vmul.f32 %v1164, %v1172
      %v1175 = vpack.c.bf16 %v1174, %v1173
      %1176 = vrot.lane.b32.xlu0 %v685, 120
      %v1177 = vpop.permute.xlu0 %1176
      %v1180 = vsel %vm661, %v1175, 0
      %1182 = vmatprep.subr.bf16.mxu0 0
      %1183 = vmatpush1.bf16.msra.mxu0 %v1177
      %1184 = vmatprep.subr.bf16.mxu0 0
      %1185 = vmatpush1.bf16.msra.mxu0 0
      %1186 = vmatprep.subr.bf16.mxu0 0
      %1187 = vmatpush1.bf16.msra.mxu0 0
      %1188 = vmatprep.subr.bf16.mxu0 0
      %1189 = vmatpush1.bf16.msra.mxu0 0
      %1190 = vmatprep.subr.bf16.mxu0 0
      %1191 = vmatpush1.bf16.msra.mxu0 0
      %1192 = vmatprep.subr.bf16.mxu0 0
      %1193 = vmatpush1.bf16.msra.mxu0 0
      %1194 = vmatprep.subr.bf16.mxu0 0
      %1195 = vmatpush1.bf16.msra.mxu0 0
      %1196 = vmatprep.subr.bf16.mxu0 0
      %1197 = vmatpush1.bf16.msra.mxu0 0
      %1198 = vmatprep.subr.bf16.mxu0 0
      %1199 = vmatpush1.bf16.msra.mxu0 0
      %1200 = vmatprep.subr.bf16.mxu0 0
      %1201 = vmatpush1.bf16.msra.mxu0 0
      %1202 = vmatprep.subr.bf16.mxu0 0
      %1203 = vmatpush1.bf16.msra.mxu0 0
      %1204 = vmatprep.subr.bf16.mxu0 0
      %1205 = vmatpush1.bf16.msra.mxu0 0
      %1206 = vmatprep.subr.bf16.mxu0 0
      %1207 = vmatpush1.bf16.msra.mxu0 0
      %1208 = vmatprep.subr.bf16.mxu0 0
      %1209 = vmatpush1.bf16.msra.mxu0 0
      %1210 = vmatprep.subr.bf16.mxu0 0
      %1211 = vmatpush1.bf16.msra.mxu0 0
      %1212 = vmatprep.subr.bf16.mxu0 0
      %1213 = vmatpush1.bf16.msra.mxu0 0
      %1214 = vmatprep.mubr.bf16.mxu0 0
      %1215 = vmatmul.mubr.bf16.gmra.mrb[0].mxu0 %v1180
      %v1216 = vpop.f32.mrb[0].mxu0
      %v1217 = vadd.f32 0.0, %v1216
      %v1218 = vpop.f32.mrb[0].mxu0
      %v1219 = vpop.f32.mrb[0].mxu0
      %v1220 = vadd.f32 0.0, %v1219
      %v1221 = vpop.f32.mrb[0].mxu0
      %1222 = vdwg.mxu0
      %vm1223 = vcmp.gt.f32.partialorder %v1217, 0.0
      %vm1224 = vcmp.gt.f32.partialorder %v1220, 0.0
      %v1225 = vmul.f32 %v1217, 1.442695
      %v1226 = vpow.pop %v1225
      %v1227 = vmul.f32 %v1220, 1.442695
      %v1228 = vpow.pop %v1227
      %v1229 = vsub.f32 %v1226, 1.0
      %v1230 = vsub.f32 %v1228, 1.0
      %v1231 = vsel %vm1223, %v1217, %v1229
      %v1232 = vsel %vm1224, %v1220, %v1230
      %v1233 = vpack.c.bf16 %v1232, %v1231
      %s1234 = scalar_lea.vmem %s3, 4
      %v1235 = vld [vmem:[%s1234] sm:$0x3]
      %s1236 = scalar_lea.vmem %s4, 2
      %v1237 = vld [vmem:[%s1236] sm:$0x1]
      %1238 = vset.pattern.permute.xlu0 19
      %1239 = vperm.xlu0 %1238, %v589
      %v1240 = vpop.permute.xlu0 %1239
      %1242 = vset.pattern.permute.xlu0 19
      %1243 = vperm.xlu0 %1242, %v592
      %v1244 = vpop.permute.xlu0 %1243
      %v1246 = vlaneseq
      %v1247 = vshrl.u32 %v1246, 7
      %v1248 = vsub.s32 3, %v1247
      %v1249 = vrot.slane %v634, %v1248
      %v1250 = vadd.f32 %v1240, %v1249
      %v1251 = vadd.f32 %v1244, %v1249
      %v1252 = vmul.f32 %v1250, 0.2
      %v1253 = vmul.f32 %v1251, 0.2
      %v1254 = vmax.f32 %v1250, %v1252
      %v1255 = vmax.f32 %v1251, %v1253
      %v1256 = vsel %vm542, %v1254, -9e+15
      %v1257 = vsel %vm543, %v1255, -9e+15
      %v1258 = vsel %vm661, %v1256, -inf
      %1259 = vmax.xlane.f32.xlu0 %v1258
      %v1260 = vpop.xlane.xlu0 %1259
      %v1261 = vsel %vm661, %v1257, -inf
      %1262 = vmax.xlane.f32.xlu0 %v1261
      %v1263 = vpop.xlane.xlu0 %1262
      %v1264 = vsub.f32 %v1256, %v1260
      %v1265 = vsub.f32 %v1257, %v1263
      %v1266 = vmul.f32 %v1264, 1.442695
      %v1267 = vpow.pop %v1266
      %v1268 = vmul.f32 %v1265, 1.442695
      %v1269 = vpow.pop %v1268
      %v1270 = vsel %vm661, %v1267, 0.0
      %1271 = vadd.xlane.f32.xlu0 %v1270
      %v1272 = vpop.xlane.xlu0 %1271
      %v1273 = vsel %vm661, %v1269, 0.0
      %1274 = vadd.xlane.f32.xlu0 %v1273
      %v1275 = vpop.xlane.xlu0 %1274
      %v1276 = vrcp.pop %v1272
      %v1277 = vrcp.pop %v1275
      %v1278 = vmul.f32 %v1267, %v1276
      %v1279 = vmul.f32 %v1269, %v1277
      %v1280 = vpack.c.bf16 %v1279, %v1278
      %1281 = vrot.lane.b32.xlu0 %v685, 116
      %v1282 = vpop.permute.xlu0 %1281
      %v1285 = vsel %vm661, %v1280, 0
      %1287 = vmatprep.subr.bf16.mxu0 0
      %1288 = vmatpush1.bf16.msra.mxu0 %v1282
      %1289 = vmatprep.subr.bf16.mxu0 0
      %1290 = vmatpush1.bf16.msra.mxu0 0
      %1291 = vmatprep.subr.bf16.mxu0 0
      %1292 = vmatpush1.bf16.msra.mxu0 0
      %1293 = vmatprep.subr.bf16.mxu0 0
      %1294 = vmatpush1.bf16.msra.mxu0 0
      %1295 = vmatprep.subr.bf16.mxu0 0
      %1296 = vmatpush1.bf16.msra.mxu0 0
      %1297 = vmatprep.subr.bf16.mxu0 0
      %1298 = vmatpush1.bf16.msra.mxu0 0
      %1299 = vmatprep.subr.bf16.mxu0 0
      %1300 = vmatpush1.bf16.msra.mxu0 0
      %1301 = vmatprep.subr.bf16.mxu0 0
      %1302 = vmatpush1.bf16.msra.mxu0 0
      %1303 = vmatprep.subr.bf16.mxu0 0
      %1304 = vmatpush1.bf16.msra.mxu0 0
      %1305 = vmatprep.subr.bf16.mxu0 0
      %1306 = vmatpush1.bf16.msra.mxu0 0
      %1307 = vmatprep.subr.bf16.mxu0 0
      %1308 = vmatpush1.bf16.msra.mxu0 0
      %1309 = vmatprep.subr.bf16.mxu0 0
      %1310 = vmatpush1.bf16.msra.mxu0 0
      %1311 = vmatprep.subr.bf16.mxu0 0
      %1312 = vmatpush1.bf16.msra.mxu0 0
      %1313 = vmatprep.subr.bf16.mxu0 0
      %1314 = vmatpush1.bf16.msra.mxu0 0
      %1315 = vmatprep.subr.bf16.mxu0 0
      %1316 = vmatpush1.bf16.msra.mxu0 0
      %1317 = vmatprep.subr.bf16.mxu0 0
      %1318 = vmatpush1.bf16.msra.mxu0 0
      %1319 = vmatprep.mubr.bf16.mxu0 0
      %1320 = vmatmul.mubr.bf16.gmra.mrb[0].mxu0 %v1285
      %v1321 = vpop.f32.mrb[0].mxu0
      %v1322 = vadd.f32 0.0, %v1321
      %v1323 = vpop.f32.mrb[0].mxu0
      %v1324 = vpop.f32.mrb[0].mxu0
      %v1325 = vadd.f32 0.0, %v1324
      %v1326 = vpop.f32.mrb[0].mxu0
      %1327 = vdwg.mxu0
      %vm1328 = vcmp.gt.f32.partialorder %v1322, 0.0
      %vm1329 = vcmp.gt.f32.partialorder %v1325, 0.0
      %v1330 = vmul.f32 %v1322, 1.442695
      %v1331 = vpow.pop %v1330
      %v1332 = vmul.f32 %v1325, 1.442695
      %v1333 = vpow.pop %v1332
      %v1334 = vsub.f32 %v1331, 1.0
      %v1335 = vsub.f32 %v1333, 1.0
      %v1336 = vsel %vm1328, %v1322, %v1334
      %v1337 = vsel %vm1329, %v1325, %v1335
      %v1338 = vpack.c.bf16 %v1337, %v1336
      %s1339 = scalar_lea.vmem %s3, 6
      %v1340 = vld [vmem:[%s1339] sm:$0x3]
      %v1342 = vsel %vm847, %v1338, 0
      %v1345 = vsel %vm851, %v1340, 0
      %1347 = vmatprep.subr.bf16.mxu0 0
      %1348 = vmatpush1.bf16.msra.mxu0 %v1345
      %1349 = vmatprep.subr.bf16.mxu0 0
      %1350 = vmatpush1.bf16.msra.mxu0 0
      %1351 = vmatprep.subr.bf16.mxu0 0
      %1352 = vmatpush1.bf16.msra.mxu0 0
      %1353 = vmatprep.subr.bf16.mxu0 0
      %1354 = vmatpush1.bf16.msra.mxu0 0
      %1355 = vmatprep.subr.bf16.mxu0 0
      %1356 = vmatpush1.bf16.msra.mxu0 0
      %1357 = vmatprep.subr.bf16.mxu0 0
      %1358 = vmatpush1.bf16.msra.mxu0 0
      %1359 = vmatprep.subr.bf16.mxu0 0
      %1360 = vmatpush1.bf16.msra.mxu0 0
      %1361 = vmatprep.subr.bf16.mxu0 0
      %1362 = vmatpush1.bf16.msra.mxu0 0
      %1363 = vmatprep.subr.bf16.mxu0 0
      %1364 = vmatpush1.bf16.msra.mxu0 0
      %1365 = vmatprep.subr.bf16.mxu0 0
      %1366 = vmatpush1.bf16.msra.mxu0 0
      %1367 = vmatprep.subr.bf16.mxu0 0
      %1368 = vmatpush1.bf16.msra.mxu0 0
      %1369 = vmatprep.subr.bf16.mxu0 0
      %1370 = vmatpush1.bf16.msra.mxu0 0
      %1371 = vmatprep.subr.bf16.mxu0 0
      %1372 = vmatpush1.bf16.msra.mxu0 0
      %1373 = vmatprep.subr.bf16.mxu0 0
      %1374 = vmatpush1.bf16.msra.mxu0 0
      %1375 = vmatprep.subr.bf16.mxu0 0
      %1376 = vmatpush1.bf16.msra.mxu0 0
      %1377 = vmatprep.subr.bf16.mxu0 0
      %1378 = vmatpush1.bf16.msra.mxu0 0
      %1379 = vmatprep.mubr.bf16.mxu0 0
      %1380 = vmatmul.mubr.bf16.gmra.mrb[0].mxu0 %v1342
      %v1381 = vpop.f32.mrb[0].mxu0
      %v1382 = vadd.f32 0.0, %v1381
      %v1383 = vpop.f32.mrb[0].mxu0
      %v1384 = vpop.f32.mrb[0].mxu0
      %v1385 = vadd.f32 0.0, %v1384
      %v1386 = vpop.f32.mrb[0].mxu0
      %1387 = vdwg.mxu0
      %v1389 = vsel %vm847, %v1233, 0
      %v1392 = vsel %vm851, %v1235, 0
      %1394 = vmatprep.subr.bf16.mxu0 0
      %1395 = vmatpush1.bf16.msra.mxu0 %v1392
      %1396 = vmatprep.subr.bf16.mxu0 0
      %1397 = vmatpush1.bf16.msra.mxu0 0
      %1398 = vmatprep.subr.bf16.mxu0 0
      %1399 = vmatpush1.bf16.msra.mxu0 0
      %1400 = vmatprep.subr.bf16.mxu0 0
      %1401 = vmatpush1.bf16.msra.mxu0 0
      %1402 = vmatprep.subr.bf16.mxu0 0
      %1403 = vmatpush1.bf16.msra.mxu0 0
      %1404 = vmatprep.subr.bf16.mxu0 0
      %1405 = vmatpush1.bf16.msra.mxu0 0
      %1406 = vmatprep.subr.bf16.mxu0 0
      %1407 = vmatpush1.bf16.msra.mxu0 0
      %1408 = vmatprep.subr.bf16.mxu0 0
      %1409 = vmatpush1.bf16.msra.mxu0 0
      %1410 = vmatprep.subr.bf16.mxu0 0
      %1411 = vmatpush1.bf16.msra.mxu0 0
      %1412 = vmatprep.subr.bf16.mxu0 0
      %1413 = vmatpush1.bf16.msra.mxu0 0
      %1414 = vmatprep.subr.bf16.mxu0 0
      %1415 = vmatpush1.bf16.msra.mxu0 0
      %1416 = vmatprep.subr.bf16.mxu0 0
      %1417 = vmatpush1.bf16.msra.mxu0 0
      %1418 = vmatprep.subr.bf16.mxu0 0
      %1419 = vmatpush1.bf16.msra.mxu0 0
      %1420 = vmatprep.subr.bf16.mxu0 0
      %1421 = vmatpush1.bf16.msra.mxu0 0
      %1422 = vmatprep.subr.bf16.mxu0 0
      %1423 = vmatpush1.bf16.msra.mxu0 0
      %1424 = vmatprep.subr.bf16.mxu0 0
      %1425 = vmatpush1.bf16.msra.mxu0 0
      %1426 = vmatprep.mubr.bf16.mxu0 0
      %1427 = vmatmul.mubr.bf16.gmra.mrb[0].mxu0 %v1389
      %v1428 = vpop.f32.mrb[0].mxu0
      %v1429 = vadd.f32 %v1382, %v1428
      %v1430 = vpop.f32.mrb[0].mxu0
      %v1431 = vpop.f32.mrb[0].mxu0
      %v1432 = vadd.f32 %v1385, %v1431
      %v1433 = vpop.f32.mrb[0].mxu0
      %1434 = vdwg.mxu0
      %s1435 = scalar_lea.vmem %s4, 3
      %v1436 = vld [vmem:[%s1435] sm:$0x1]
      %v1438 = vsel %vm847, %v1436, 0
      %1440 = vmatprep.subr.bf16.mxu0 0
      %1441 = vmatpush1.bf16.xpose.msra.mxu0 %v1342
      %1442 = vmatprep.subr.bf16.mxu0 0
      %1443 = vmatpush1.bf16.xpose.msra.mxu0 0
      %1444 = vmatprep.subr.bf16.mxu0 0
      %1445 = vmatpush1.bf16.xpose.msra.mxu0 0
      %1446 = vmatprep.subr.bf16.mxu0 0
      %1447 = vmatpush1.bf16.xpose.msra.mxu0 0
      %1448 = vmatprep.subr.bf16.mxu0 0
      %1449 = vmatpush1.bf16.xpose.msra.mxu0 0
      %1450 = vmatprep.subr.bf16.mxu0 0
      %1451 = vmatpush1.bf16.xpose.msra.mxu0 0
      %1452 = vmatprep.subr.bf16.mxu0 0
      %1453 = vmatpush1.bf16.xpose.msra.mxu0 0
      %1454 = vmatprep.subr.bf16.mxu0 0
      %1455 = vmatpush1.bf16.xpose.msra.mxu0 0
      %1456 = vmatprep.subr.bf16.mxu0 0
      %1457 = vmatpush1.bf16.xpose.msra.mxu0 0
      %1458 = vmatprep.subr.bf16.mxu0 0
      %1459 = vmatpush1.bf16.xpose.msra.mxu0 0
      %1460 = vmatprep.subr.bf16.mxu0 0
      %1461 = vmatpush1.bf16.xpose.msra.mxu0 0
      %1462 = vmatprep.subr.bf16.mxu0 0
      %1463 = vmatpush1.bf16.xpose.msra.mxu0 0
      %1464 = vmatprep.subr.bf16.mxu0 0
      %1465 = vmatpush1.bf16.xpose.msra.mxu0 0
      %1466 = vmatprep.subr.bf16.mxu0 0
      %1467 = vmatpush1.bf16.xpose.msra.mxu0 0
      %1468 = vmatprep.subr.bf16.mxu0 0
      %1469 = vmatpush1.bf16.xpose.msra.mxu0 0
      %1470 = vmatprep.subr.bf16.mxu0 0
      %1471 = vmatpush1.bf16.xpose.msra.mxu0 0
      %1472 = vmatprep.mubr.bf16.mxu0 0
      %1473 = vmatmul.mubr.bf16.gmra.mrb[0].mxu0 %v1438
      %v1474 = vpop.f32.mrb[0].mxu0
      %v1475 = vadd.f32 0.0, %v1474
      %v1476 = vpop.f32.mrb[0].mxu0
      %v1477 = vpop.f32.mrb[0].mxu0
      %v1478 = vpop.f32.mrb[0].mxu0
      %1479 = vdwg.mxu0
      %v1481 = vsel %vm847, %v1237, 0
      %1483 = vmatprep.subr.bf16.mxu0 0
      %1484 = vmatpush1.bf16.xpose.msra.mxu0 %v1389
      %1485 = vmatprep.subr.bf16.mxu0 0
      %1486 = vmatpush1.bf16.xpose.msra.mxu0 0
      %1487 = vmatprep.subr.bf16.mxu0 0
      %1488 = vmatpush1.bf16.xpose.msra.mxu0 0
      %1489 = vmatprep.subr.bf16.mxu0 0
      %1490 = vmatpush1.bf16.xpose.msra.mxu0 0
      %1491 = vmatprep.subr.bf16.mxu0 0
      %1492 = vmatpush1.bf16.xpose.msra.mxu0 0
      %1493 = vmatprep.subr.bf16.mxu0 0
      %1494 = vmatpush1.bf16.xpose.msra.mxu0 0
      %1495 = vmatprep.subr.bf16.mxu0 0
      %1496 = vmatpush1.bf16.xpose.msra.mxu0 0
      %1497 = vmatprep.subr.bf16.mxu0 0
      %1498 = vmatpush1.bf16.xpose.msra.mxu0 0
      %1499 = vmatprep.subr.bf16.mxu0 0
      %1500 = vmatpush1.bf16.xpose.msra.mxu0 0
      %1501 = vmatprep.subr.bf16.mxu0 0
      %1502 = vmatpush1.bf16.xpose.msra.mxu0 0
      %1503 = vmatprep.subr.bf16.mxu0 0
      %1504 = vmatpush1.bf16.xpose.msra.mxu0 0
      %1505 = vmatprep.subr.bf16.mxu0 0
      %1506 = vmatpush1.bf16.xpose.msra.mxu0 0
      %1507 = vmatprep.subr.bf16.mxu0 0
      %1508 = vmatpush1.bf16.xpose.msra.mxu0 0
      %1509 = vmatprep.subr.bf16.mxu0 0
      %1510 = vmatpush1.bf16.xpose.msra.mxu0 0
      %1511 = vmatprep.subr.bf16.mxu0 0
      %1512 = vmatpush1.bf16.xpose.msra.mxu0 0
      %1513 = vmatprep.subr.bf16.mxu0 0
      %1514 = vmatpush1.bf16.xpose.msra.mxu0 0
      %1515 = vmatprep.mubr.bf16.mxu0 0
      %1516 = vmatmul.mubr.bf16.gmra.mrb[0].mxu0 %v1481
      %v1517 = vpop.f32.mrb[0].mxu0
      %v1518 = vadd.f32 %v1475, %v1517
      %v1519 = vpop.f32.mrb[0].mxu0
      %v1520 = vpop.f32.mrb[0].mxu0
      %v1521 = vpop.f32.mrb[0].mxu0
      %1522 = vdwg.mxu0
      %1524 = vset.pattern.permute.xlu0 8
      %1525 = vperm.xlu0 %1524, %v1429
      %v1526 = vpop.permute.xlu0 %1525
      %1529 = vset.pattern.permute.xlu0 8
      %1530 = vperm.xlu0 %1529, %v1432
      %v1531 = vpop.permute.xlu0 %1530
      %v1533 = vlaneseq
      %v1534 = vshrl.u32 %v1533, 7
      %v1535 = vsub.s32 0, %v1534
      %v1536 = vrot.slane %v1518, %v1535
      %v1537 = vadd.f32 %v1526, %v1536
      %v1538 = vadd.f32 %v1531, %v1536
      %v1539 = vmul.f32 %v1537, 0.2
      %v1540 = vmul.f32 %v1538, 0.2
      %v1541 = vmax.f32 %v1537, %v1539
      %v1542 = vmax.f32 %v1538, %v1540
      %v1543 = vsel %vm542, %v1541, -9e+15
      %v1544 = vsel %vm543, %v1542, -9e+15
      %v1545 = vsel %vm661, %v1543, -inf
      %1546 = vmax.xlane.f32.xlu0 %v1545
      %v1547 = vpop.xlane.xlu0 %1546
      %v1548 = vsel %vm661, %v1544, -inf
      %1549 = vmax.xlane.f32.xlu0 %v1548
      %v1550 = vpop.xlane.xlu0 %1549
      %v1551 = vsub.f32 %v1543, %v1547
      %v1552 = vsub.f32 %v1544, %v1550
      %v1553 = vmul.f32 %v1551, 1.442695
      %v1554 = vpow.pop %v1553
      %v1555 = vmul.f32 %v1552, 1.442695
      %v1556 = vpow.pop %v1555
      %v1557 = vsel %vm661, %v1554, 0.0
      %1558 = vadd.xlane.f32.xlu0 %v1557
      %v1559 = vpop.xlane.xlu0 %1558
      %v1560 = vsel %vm661, %v1556, 0.0
      %1561 = vadd.xlane.f32.xlu0 %v1560
      %v1562 = vpop.xlane.xlu0 %1561
      %v1563 = vrcp.pop %v1559
      %v1564 = vrcp.pop %v1562
      %v1565 = vmul.f32 %v1554, %v1563
      %v1566 = vmul.f32 %v1556, %v1564
      %v1567 = vpack.c.bf16 %v1566, %v1565
      %v1568 = vpack.c.bf16 %v1432, %v1429
      %v1570 = vsel %vm661, %v1567, 0
      %1572 = vmatprep.subr.bf16.mxu0 0
      %1573 = vmatpush1.bf16.msra.mxu0 %v1568
      %1574 = vmatprep.subr.bf16.mxu0 0
      %1575 = vmatpush1.bf16.msra.mxu0 0
      %1576 = vmatprep.subr.bf16.mxu0 0
      %1577 = vmatpush1.bf16.msra.mxu0 0
      %1578 = vmatprep.subr.bf16.mxu0 0
      %1579 = vmatpush1.bf16.msra.mxu0 0
      %1580 = vmatprep.subr.bf16.mxu0 0
      %1581 = vmatpush1.bf16.msra.mxu0 0
      %1582 = vmatprep.subr.bf16.mxu0 0
      %1583 = vmatpush1.bf16.msra.mxu0 0
      %1584 = vmatprep.subr.bf16.mxu0 0
      %1585 = vmatpush1.bf16.msra.mxu0 0
      %1586 = vmatprep.subr.bf16.mxu0 0
      %1587 = vmatpush1.bf16.msra.mxu0 0
      %1588 = vmatprep.subr.bf16.mxu0 0
      %1589 = vmatpush1.bf16.msra.mxu0 0
      %1590 = vmatprep.subr.bf16.mxu0 0
      %1591 = vmatpush1.bf16.msra.mxu0 0
      %1592 = vmatprep.subr.bf16.mxu0 0
      %1593 = vmatpush1.bf16.msra.mxu0 0
      %1594 = vmatprep.subr.bf16.mxu0 0
      %1595 = vmatpush1.bf16.msra.mxu0 0
      %1596 = vmatprep.subr.bf16.mxu0 0
      %1597 = vmatpush1.bf16.msra.mxu0 0
      %1598 = vmatprep.subr.bf16.mxu0 0
      %1599 = vmatpush1.bf16.msra.mxu0 0
      %1600 = vmatprep.subr.bf16.mxu0 0
      %1601 = vmatpush1.bf16.msra.mxu0 0
      %1602 = vmatprep.subr.bf16.mxu0 0
      %1603 = vmatpush1.bf16.msra.mxu0 0
      %1604 = vmatprep.mubr.bf16.mxu0 0
      %1605 = vmatmul.mubr.bf16.gmra.mrb[0].mxu0 %v1570
      %v1606 = vpop.f32.mrb[0].mxu0
      %v1607 = vadd.f32 0.0, %v1606
      %v1608 = vpop.f32.mrb[0].mxu0
      %v1609 = vpop.f32.mrb[0].mxu0
      %v1610 = vadd.f32 0.0, %v1609
      %v1611 = vpop.f32.mrb[0].mxu0
      %1612 = vdwg.mxu0
      %vm1613 = vcmp.gt.f32.partialorder %v1607, 0.0
      %vm1614 = vcmp.gt.f32.partialorder %v1610, 0.0
      %v1615 = vmul.f32 %v1607, 1.442695
      %v1616 = vpow.pop %v1615
      %v1617 = vmul.f32 %v1610, 1.442695
      %v1618 = vpow.pop %v1617
      %v1619 = vsub.f32 %v1616, 1.0
      %v1620 = vsub.f32 %v1618, 1.0
      %v1621 = vsel %vm1613, %v1607, %v1619
      %v1622 = vsel %vm1614, %v1610, %v1620
      %v1623 = vadd.f32 %v1131, %v1621
      %v1624 = vadd.f32 %v1132, %v1622
      %s1625 = scalar_lea.vmem %s435, 16
      %v1626 = vld [vmem:[%s1625] sm:$0xff]
      %v1627 = vld [vmem:[%s1625 + $0x8] sm:$0xff]
      %v1628 = vpack.c.bf16 %v1627, %v1626
      %v1630 = vsel %vm460, %v1626, 0
      %v1633 = vsel %vm460, %v1627, 0
      %1635 = vmatprep.subr.mxu0 0.0
      %1636 = vmatpush1.xpose.msra.mxu0 %v1630
      %1637 = vmatprep.subr.mxu0 0.0
      %1638 = vmatpush1.xpose.msra.mxu0 %v1633
      %1639 = vmatprep.subr.mxu0 0.0
      %1640 = vmatpush1.xpose.msra.mxu0 0.0
      %1641 = vmatprep.subr.mxu0 0.0
      %1642 = vmatpush1.xpose.msra.mxu0 0.0
      %1643 = vmatprep.subr.mxu0 0.0
      %1644 = vmatpush1.xpose.msra.mxu0 0.0
      %1645 = vmatprep.subr.mxu0 0.0
      %1646 = vmatpush1.xpose.msra.mxu0 0.0
      %1647 = vmatprep.subr.mxu0 0.0
      %1648 = vmatpush1.xpose.msra.mxu0 0.0
      %1649 = vmatprep.subr.mxu0 0.0
      %1650 = vmatpush1.xpose.msra.mxu0 0.0
      %1651 = vmatprep.subr.mxu0 0.0
      %1652 = vmatpush1.xpose.msra.mxu0 0.0
      %1653 = vmatprep.subr.mxu0 0.0
      %1654 = vmatpush1.xpose.msra.mxu0 0.0
      %1655 = vmatprep.subr.mxu0 0.0
      %1656 = vmatpush1.xpose.msra.mxu0 0.0
      %1657 = vmatprep.subr.mxu0 0.0
      %1658 = vmatpush1.xpose.msra.mxu0 0.0
      %1659 = vmatprep.subr.mxu0 0.0
      %1660 = vmatpush1.xpose.msra.mxu0 0.0
      %1661 = vmatprep.subr.mxu0 0.0
      %1662 = vmatpush1.xpose.msra.mxu0 0.0
      %1663 = vmatprep.subr.mxu0 0.0
      %1664 = vmatpush1.xpose.msra.mxu0 0.0
      %1665 = vmatprep.subr.mxu0 0.0
      %1666 = vmatpush1.xpose.msra.mxu0 0.0
      %1667 = vmatprep.subr.mxu0 0.0
      %1668 = vmatpush1.xpose.msra.mxu0 0.0
      %1669 = vmatprep.subr.mxu0 0.0
      %1670 = vmatpush1.xpose.msra.mxu0 0.0
      %1671 = vmatprep.subr.mxu0 0.0
      %1672 = vmatpush1.xpose.msra.mxu0 0.0
      %1673 = vmatprep.subr.mxu0 0.0
      %1674 = vmatpush1.xpose.msra.mxu0 0.0
      %1675 = vmatprep.subr.mxu0 0.0
      %1676 = vmatpush1.xpose.msra.mxu0 0.0
      %1677 = vmatprep.subr.mxu0 0.0
      %1678 = vmatpush1.xpose.msra.mxu0 0.0
      %1679 = vmatprep.subr.mxu0 0.0
      %1680 = vmatpush1.xpose.msra.mxu0 0.0
      %1681 = vmatprep.subr.mxu0 0.0
      %1682 = vmatpush1.xpose.msra.mxu0 0.0
      %1683 = vmatprep.subr.mxu0 0.0
      %1684 = vmatpush1.xpose.msra.mxu0 0.0
      %1685 = vmatprep.subr.mxu0 0.0
      %1686 = vmatpush1.xpose.msra.mxu0 0.0
      %1687 = vmatprep.subr.mxu0 0.0
      %1688 = vmatpush1.xpose.msra.mxu0 0.0
      %1689 = vmatprep.subr.mxu0 0.0
      %1690 = vmatpush1.xpose.msra.mxu0 0.0
      %1691 = vmatprep.subr.mxu0 0.0
      %1692 = vmatpush1.xpose.msra.mxu0 0.0
      %1693 = vmatprep.subr.mxu0 0.0
      %1694 = vmatpush1.xpose.msra.mxu0 0.0
      %1695 = vmatprep.subr.mxu0 0.0
      %1696 = vmatpush1.xpose.msra.mxu0 0.0
      %1697 = vmatprep.subr.mxu0 0.0
      %1698 = vmatpush1.xpose.msra.mxu0 0.0
      %1699 = vmatprep.mubr.f32.mxu0 0.0
      %1700 = vmatmul.mubr.f32.gmra.mrb[0].mxu0 %v1630
      %v1701 = vpop.f32.mrb[0].mxu0
      %v1702 = vadd.f32 0.0, %v1701
      %v1703 = vpop.f32.mrb[0].mxu0
      %1704 = vmatprep.mubr.f32.mxu0 0.0
      %1705 = vmatmul.mubr.f32.gmra.mrb[0].mxu0 %v1633
      %v1706 = vpop.f32.mrb[0].mxu0
      %v1707 = vadd.f32 0.0, %v1706
      %v1708 = vpop.f32.mrb[0].mxu0
      %1709 = vdwg.mxu0
      %vm1710 = vcmp.gt.f32.partialorder %v1702, 0.0
      %vm1711 = vcmp.gt.f32.partialorder %v1707, 0.0
      %vm1712 = vmand %vm1710, %vm455
      %vm1713 = vmand %vm1711, %vm456
      %s1714 = scalar_lea.vmem %s1, 4
      %v1715 = vld [vmem:[%s1714] sm:$0xf]
      %v1717 = vsel %vm460, %v1628, 0
      %v1720 = vsel %vm550, %v1715, 0
      %1722 = vmatprep.subr.bf16.mxu0 0
      %1723 = vmatpush1.bf16.msra.mxu0 %v1720
      %1724 = vmatprep.subr.bf16.mxu0 0
      %1725 = vmatpush1.bf16.msra.mxu0 0
      %1726 = vmatprep.subr.bf16.mxu0 0
      %1727 = vmatpush1.bf16.msra.mxu0 0
      %1728 = vmatprep.subr.bf16.mxu0 0
      %1729 = vmatpush1.bf16.msra.mxu0 0
      %1730 = vmatprep.subr.bf16.mxu0 0
      %1731 = vmatpush1.bf16.msra.mxu0 0
      %1732 = vmatprep.subr.bf16.mxu0 0
      %1733 = vmatpush1.bf16.msra.mxu0 0
      %1734 = vmatprep.subr.bf16.mxu0 0
      %1735 = vmatpush1.bf16.msra.mxu0 0
      %1736 = vmatprep.subr.bf16.mxu0 0
      %1737 = vmatpush1.bf16.msra.mxu0 0
      %1738 = vmatprep.subr.bf16.mxu0 0
      %1739 = vmatpush1.bf16.msra.mxu0 0
      %1740 = vmatprep.subr.bf16.mxu0 0
      %1741 = vmatpush1.bf16.msra.mxu0 0
      %1742 = vmatprep.subr.bf16.mxu0 0
      %1743 = vmatpush1.bf16.msra.mxu0 0
      %1744 = vmatprep.subr.bf16.mxu0 0
      %1745 = vmatpush1.bf16.msra.mxu0 0
      %1746 = vmatprep.subr.bf16.mxu0 0
      %1747 = vmatpush1.bf16.msra.mxu0 0
      %1748 = vmatprep.subr.bf16.mxu0 0
      %1749 = vmatpush1.bf16.msra.mxu0 0
      %1750 = vmatprep.subr.bf16.mxu0 0
      %1751 = vmatpush1.bf16.msra.mxu0 0
      %1752 = vmatprep.subr.bf16.mxu0 0
      %1753 = vmatpush1.bf16.msra.mxu0 0
      %1754 = vmatprep.mubr.bf16.mxu0 0
      %1755 = vmatmul.mubr.bf16.gmra.mrb[0].mxu0 %v1717
      %v1756 = vpop.f32.mrb[0].mxu0
      %v1757 = vadd.f32 0.0, %v1756
      %v1758 = vpop.f32.mrb[0].mxu0
      %v1759 = vpop.f32.mrb[0].mxu0
      %v1760 = vadd.f32 0.0, %v1759
      %v1761 = vpop.f32.mrb[0].mxu0
      %1762 = vdwg.mxu0
      %s1763 = scalar_lea.vmem %s2, 2
      %v1764 = vld [vmem:[%s1763] sm:$0x3]
      %v1766 = vsel %vm460, %v1764, 0
      %1768 = vmatprep.subr.bf16.mxu0 0
      %1769 = vmatpush1.bf16.xpose.msra.mxu0 %v1717
      %1770 = vmatprep.subr.bf16.mxu0 0
      %1771 = vmatpush1.bf16.xpose.msra.mxu0 0
      %1772 = vmatprep.subr.bf16.mxu0 0
      %1773 = vmatpush1.bf16.xpose.msra.mxu0 0
      %1774 = vmatprep.subr.bf16.mxu0 0
      %1775 = vmatpush1.bf16.xpose.msra.mxu0 0
      %1776 = vmatprep.subr.bf16.mxu0 0
      %1777 = vmatpush1.bf16.xpose.msra.mxu0 0
      %1778 = vmatprep.subr.bf16.mxu0 0
      %1779 = vmatpush1.bf16.xpose.msra.mxu0 0
      %1780 = vmatprep.subr.bf16.mxu0 0
      %1781 = vmatpush1.bf16.xpose.msra.mxu0 0
      %1782 = vmatprep.subr.bf16.mxu0 0
      %1783 = vmatpush1.bf16.xpose.msra.mxu0 0
      %1784 = vmatprep.subr.bf16.mxu0 0
      %1785 = vmatpush1.bf16.xpose.msra.mxu0 0
      %1786 = vmatprep.subr.bf16.mxu0 0
      %1787 = vmatpush1.bf16.xpose.msra.mxu0 0
      %1788 = vmatprep.subr.bf16.mxu0 0
      %1789 = vmatpush1.bf16.xpose.msra.mxu0 0
      %1790 = vmatprep.subr.bf16.mxu0 0
      %1791 = vmatpush1.bf16.xpose.msra.mxu0 0
      %1792 = vmatprep.subr.bf16.mxu0 0
      %1793 = vmatpush1.bf16.xpose.msra.mxu0 0
      %1794 = vmatprep.subr.bf16.mxu0 0
      %1795 = vmatpush1.bf16.xpose.msra.mxu0 0
      %1796 = vmatprep.subr.bf16.mxu0 0
      %1797 = vmatpush1.bf16.xpose.msra.mxu0 0
      %1798 = vmatprep.subr.bf16.mxu0 0
      %1799 = vmatpush1.bf16.xpose.msra.mxu0 0
      %1800 = vmatprep.mubr.bf16.mxu0 0
      %1801 = vmatmul.mubr.bf16.gmra.mrb[0].mxu0 %v1766
      %v1802 = vpop.f32.mrb[0].mxu0
      %v1803 = vadd.f32 0.0, %v1802
      %v1804 = vpop.f32.mrb[0].mxu0
      %v1805 = vpop.f32.mrb[0].mxu0
      %v1806 = vpop.f32.mrb[0].mxu0
      %1807 = vdwg.mxu0
      %1809 = vset.pattern.permute.xlu0 16
      %1810 = vperm.xlu0 %1809, %v1757
      %v1811 = vpop.permute.xlu0 %1810
      %1814 = vset.pattern.permute.xlu0 16
      %1815 = vperm.xlu0 %1814, %v1760
      %v1816 = vpop.permute.xlu0 %1815
      %v1818 = vlaneseq
      %v1819 = vshrl.u32 %v1818, 7
      %v1820 = vsub.s32 0, %v1819
      %v1821 = vrot.slane %v1803, %v1820
      %v1822 = vadd.f32 %v1811, %v1821
      %v1823 = vadd.f32 %v1816, %v1821
      %v1824 = vmul.f32 %v1822, 0.2
      %v1825 = vmul.f32 %v1823, 0.2
      %v1826 = vmax.f32 %v1822, %v1824
      %v1827 = vmax.f32 %v1823, %v1825
      %v1828 = vsel %vm1712, %v1826, -9e+15
      %v1829 = vsel %vm1713, %v1827, -9e+15
      %v1830 = vsel %vm661, %v1828, -inf
      %1831 = vmax.xlane.f32.xlu0 %v1830
      %v1832 = vpop.xlane.xlu0 %1831
      %v1833 = vsel %vm661, %v1829, -inf
      %1834 = vmax.xlane.f32.xlu0 %v1833
      %v1835 = vpop.xlane.xlu0 %1834
      %v1836 = vsub.f32 %v1828, %v1832
      %v1837 = vsub.f32 %v1829, %v1835
      %v1838 = vmul.f32 %v1836, 1.442695
      %v1839 = vpow.pop %v1838
      %v1840 = vmul.f32 %v1837, 1.442695
      %v1841 = vpow.pop %v1840
      %v1842 = vsel %vm661, %v1839, 0.0
      %1843 = vadd.xlane.f32.xlu0 %v1842
      %v1844 = vpop.xlane.xlu0 %1843
      %v1845 = vsel %vm661, %v1841, 0.0
      %1846 = vadd.xlane.f32.xlu0 %v1845
      %v1847 = vpop.xlane.xlu0 %1846
      %v1848 = vrcp.pop %v1844
      %v1849 = vrcp.pop %v1847
      %v1850 = vmul.f32 %v1839, %v1848
      %v1851 = vmul.f32 %v1841, %v1849
      %v1852 = vpack.c.bf16 %v1851, %v1850
      %v1853 = vpack.c.bf16 %v1760, %v1757
      %v1855 = vsel %vm661, %v1852, 0
      %1857 = vmatprep.subr.bf16.mxu0 0
      %1858 = vmatpush1.bf16.msra.mxu0 %v1853
      %1859 = vmatprep.subr.bf16.mxu0 0
      %1860 = vmatpush1.bf16.msra.mxu0 0
      %1861 = vmatprep.subr.bf16.mxu0 0
      %1862 = vmatpush1.bf16.msra.mxu0 0
      %1863 = vmatprep.subr.bf16.mxu0 0
      %1864 = vmatpush1.bf16.msra.mxu0 0
      %1865 = vmatprep.subr.bf16.mxu0 0
      %1866 = vmatpush1.bf16.msra.mxu0 0
      %1867 = vmatprep.subr.bf16.mxu0 0
      %1868 = vmatpush1.bf16.msra.mxu0 0
      %1869 = vmatprep.subr.bf16.mxu0 0
      %1870 = vmatpush1.bf16.msra.mxu0 0
      %1871 = vmatprep.subr.bf16.mxu0 0
      %1872 = vmatpush1.bf16.msra.mxu0 0
      %1873 = vmatprep.subr.bf16.mxu0 0
      %1874 = vmatpush1.bf16.msra.mxu0 0
      %1875 = vmatprep.subr.bf16.mxu0 0
      %1876 = vmatpush1.bf16.msra.mxu0 0
      %1877 = vmatprep.subr.bf16.mxu0 0
      %1878 = vmatpush1.bf16.msra.mxu0 0
      %1879 = vmatprep.subr.bf16.mxu0 0
      %1880 = vmatpush1.bf16.msra.mxu0 0
      %1881 = vmatprep.subr.bf16.mxu0 0
      %1882 = vmatpush1.bf16.msra.mxu0 0
      %1883 = vmatprep.subr.bf16.mxu0 0
      %1884 = vmatpush1.bf16.msra.mxu0 0
      %1885 = vmatprep.subr.bf16.mxu0 0
      %1886 = vmatpush1.bf16.msra.mxu0 0
      %1887 = vmatprep.subr.bf16.mxu0 0
      %1888 = vmatpush1.bf16.msra.mxu0 0
      %1889 = vmatprep.mubr.bf16.mxu0 0
      %1890 = vmatmul.mubr.bf16.gmra.mrb[0].mxu0 %v1855
      %v1891 = vpop.f32.mrb[0].mxu0
      %v1892 = vadd.f32 0.0, %v1891
      %v1893 = vpop.f32.mrb[0].mxu0
      %v1894 = vpop.f32.mrb[0].mxu0
      %v1895 = vadd.f32 0.0, %v1894
      %v1896 = vpop.f32.mrb[0].mxu0
      %1897 = vdwg.mxu0
      %vm1898 = vcmp.gt.f32.partialorder %v1892, 0.0
      %vm1899 = vcmp.gt.f32.partialorder %v1895, 0.0
      %v1900 = vmul.f32 %v1892, 1.442695
      %v1901 = vpow.pop %v1900
      %v1902 = vmul.f32 %v1895, 1.442695
      %v1903 = vpow.pop %v1902
      %v1904 = vsub.f32 %v1901, 1.0
      %v1905 = vsub.f32 %v1903, 1.0
      %v1906 = vsel %vm1898, %v1892, %v1904
      %v1907 = vsel %vm1899, %v1895, %v1905
      %v1908 = vpack.c.bf16 %v1907, %v1906
      %s1909 = scalar_lea.vmem %s3, 8
      %v1910 = vld [vmem:[%s1909] sm:$0x3]
      %s1911 = scalar_lea.vmem %s4, 4
      %v1912 = vld [vmem:[%s1911] sm:$0x1]
      %1913 = vset.pattern.permute.xlu0 17
      %1914 = vperm.xlu0 %1913, %v1757
      %v1915 = vpop.permute.xlu0 %1914
      %1917 = vset.pattern.permute.xlu0 17
      %1918 = vperm.xlu0 %1917, %v1760
      %v1919 = vpop.permute.xlu0 %1918
      %v1921 = vlaneseq
      %v1922 = vshrl.u32 %v1921, 7
      %v1923 = vsub.s32 1, %v1922
      %v1924 = vrot.slane %v1803, %v1923
      %v1925 = vadd.f32 %v1915, %v1924
      %v1926 = vadd.f32 %v1919, %v1924
      %v1927 = vmul.f32 %v1925, 0.2
      %v1928 = vmul.f32 %v1926, 0.2
      %v1929 = vmax.f32 %v1925, %v1927
      %v1930 = vmax.f32 %v1926, %v1928
      %v1931 = vsel %vm1712, %v1929, -9e+15
      %v1932 = vsel %vm1713, %v1930, -9e+15
      %v1933 = vsel %vm661, %v1931, -inf
      %1934 = vmax.xlane.f32.xlu0 %v1933
      %v1935 = vpop.xlane.xlu0 %1934
      %v1936 = vsel %vm661, %v1932, -inf
      %1937 = vmax.xlane.f32.xlu0 %v1936
      %v1938 = vpop.xlane.xlu0 %1937
      %v1939 = vsub.f32 %v1931, %v1935
      %v1940 = vsub.f32 %v1932, %v1938
      %v1941 = vmul.f32 %v1939, 1.442695
      %v1942 = vpow.pop %v1941
      %v1943 = vmul.f32 %v1940, 1.442695
      %v1944 = vpow.pop %v1943
      %v1945 = vsel %vm661, %v1942, 0.0
      %1946 = vadd.xlane.f32.xlu0 %v1945
      %v1947 = vpop.xlane.xlu0 %1946
      %v1948 = vsel %vm661, %v1944, 0.0
      %1949 = vadd.xlane.f32.xlu0 %v1948
      %v1950 = vpop.xlane.xlu0 %1949
      %v1951 = vrcp.pop %v1947
      %v1952 = vrcp.pop %v1950
      %v1953 = vmul.f32 %v1942, %v1951
      %v1954 = vmul.f32 %v1944, %v1952
      %v1955 = vpack.c.bf16 %v1954, %v1953
      %1957 = vrot.lane.b32.xlu0 %v1853, 124
      %v1958 = vpop.permute.xlu0 %1957
      %v1961 = vsel %vm661, %v1955, 0
      %1963 = vmatprep.subr.bf16.mxu0 0
      %1964 = vmatpush1.bf16.msra.mxu0 %v1958
      %1965 = vmatprep.subr.bf16.mxu0 0
      %1966 = vmatpush1.bf16.msra.mxu0 0
      %1967 = vmatprep.subr.bf16.mxu0 0
      %1968 = vmatpush1.bf16.msra.mxu0 0
      %1969 = vmatprep.subr.bf16.mxu0 0
      %1970 = vmatpush1.bf16.msra.mxu0 0
      %1971 = vmatprep.subr.bf16.mxu0 0
      %1972 = vmatpush1.bf16.msra.mxu0 0
      %1973 = vmatprep.subr.bf16.mxu0 0
      %1974 = vmatpush1.bf16.msra.mxu0 0
      %1975 = vmatprep.subr.bf16.mxu0 0
      %1976 = vmatpush1.bf16.msra.mxu0 0
      %1977 = vmatprep.subr.bf16.mxu0 0
      %1978 = vmatpush1.bf16.msra.mxu0 0
      %1979 = vmatprep.subr.bf16.mxu0 0
      %1980 = vmatpush1.bf16.msra.mxu0 0
      %1981 = vmatprep.subr.bf16.mxu0 0
      %1982 = vmatpush1.bf16.msra.mxu0 0
      %1983 = vmatprep.subr.bf16.mxu0 0
      %1984 = vmatpush1.bf16.msra.mxu0 0
      %1985 = vmatprep.subr.bf16.mxu0 0
      %1986 = vmatpush1.bf16.msra.mxu0 0
      %1987 = vmatprep.subr.bf16.mxu0 0
      %1988 = vmatpush1.bf16.msra.mxu0 0
      %1989 = vmatprep.subr.bf16.mxu0 0
      %1990 = vmatpush1.bf16.msra.mxu0 0
      %1991 = vmatprep.subr.bf16.mxu0 0
      %1992 = vmatpush1.bf16.msra.mxu0 0
      %1993 = vmatprep.subr.bf16.mxu0 0
      %1994 = vmatpush1.bf16.msra.mxu0 0
      %1995 = vmatprep.mubr.bf16.mxu0 0
      %1996 = vmatmul.mubr.bf16.gmra.mrb[0].mxu0 %v1961
      %v1997 = vpop.f32.mrb[0].mxu0
      %v1998 = vadd.f32 0.0, %v1997
      %v1999 = vpop.f32.mrb[0].mxu0
      %v2000 = vpop.f32.mrb[0].mxu0
      %v2001 = vadd.f32 0.0, %v2000
      %v2002 = vpop.f32.mrb[0].mxu0
      %2003 = vdwg.mxu0
      %vm2004 = vcmp.gt.f32.partialorder %v1998, 0.0
      %vm2005 = vcmp.gt.f32.partialorder %v2001, 0.0
      %v2006 = vmul.f32 %v1998, 1.442695
      %v2007 = vpow.pop %v2006
      %v2008 = vmul.f32 %v2001, 1.442695
      %v2009 = vpow.pop %v2008
      %v2010 = vsub.f32 %v2007, 1.0
      %v2011 = vsub.f32 %v2009, 1.0
      %v2012 = vsel %vm2004, %v1998, %v2010
      %v2013 = vsel %vm2005, %v2001, %v2011
      %v2014 = vpack.c.bf16 %v2013, %v2012
      %s2015 = scalar_lea.vmem %s3, 10
      %v2016 = vld [vmem:[%s2015] sm:$0x3]
      %v2018 = vsel %vm847, %v2014, 0
      %v2021 = vsel %vm851, %v2016, 0
      %2023 = vmatprep.subr.bf16.mxu0 0
      %2024 = vmatpush1.bf16.msra.mxu0 %v2021
      %2025 = vmatprep.subr.bf16.mxu0 0
      %2026 = vmatpush1.bf16.msra.mxu0 0
      %2027 = vmatprep.subr.bf16.mxu0 0
      %2028 = vmatpush1.bf16.msra.mxu0 0
      %2029 = vmatprep.subr.bf16.mxu0 0
      %2030 = vmatpush1.bf16.msra.mxu0 0
      %2031 = vmatprep.subr.bf16.mxu0 0
      %2032 = vmatpush1.bf16.msra.mxu0 0
      %2033 = vmatprep.subr.bf16.mxu0 0
      %2034 = vmatpush1.bf16.msra.mxu0 0
      %2035 = vmatprep.subr.bf16.mxu0 0
      %2036 = vmatpush1.bf16.msra.mxu0 0
      %2037 = vmatprep.subr.bf16.mxu0 0
      %2038 = vmatpush1.bf16.msra.mxu0 0
      %2039 = vmatprep.subr.bf16.mxu0 0
      %2040 = vmatpush1.bf16.msra.mxu0 0
      %2041 = vmatprep.subr.bf16.mxu0 0
      %2042 = vmatpush1.bf16.msra.mxu0 0
      %2043 = vmatprep.subr.bf16.mxu0 0
      %2044 = vmatpush1.bf16.msra.mxu0 0
      %2045 = vmatprep.subr.bf16.mxu0 0
      %2046 = vmatpush1.bf16.msra.mxu0 0
      %2047 = vmatprep.subr.bf16.mxu0 0
      %2048 = vmatpush1.bf16.msra.mxu0 0
      %2049 = vmatprep.subr.bf16.mxu0 0
      %2050 = vmatpush1.bf16.msra.mxu0 0
      %2051 = vmatprep.subr.bf16.mxu0 0
      %2052 = vmatpush1.bf16.msra.mxu0 0
      %2053 = vmatprep.subr.bf16.mxu0 0
      %2054 = vmatpush1.bf16.msra.mxu0 0
      %2055 = vmatprep.mubr.bf16.mxu0 0
      %2056 = vmatmul.mubr.bf16.gmra.mrb[0].mxu0 %v2018
      %v2057 = vpop.f32.mrb[0].mxu0
      %v2058 = vadd.f32 0.0, %v2057
      %v2059 = vpop.f32.mrb[0].mxu0
      %v2060 = vpop.f32.mrb[0].mxu0
      %v2061 = vadd.f32 0.0, %v2060
      %v2062 = vpop.f32.mrb[0].mxu0
      %2063 = vdwg.mxu0
      %v2065 = vsel %vm847, %v1908, 0
      %v2068 = vsel %vm851, %v1910, 0
      %2070 = vmatprep.subr.bf16.mxu0 0
      %2071 = vmatpush1.bf16.msra.mxu0 %v2068
      %2072 = vmatprep.subr.bf16.mxu0 0
      %2073 = vmatpush1.bf16.msra.mxu0 0
      %2074 = vmatprep.subr.bf16.mxu0 0
      %2075 = vmatpush1.bf16.msra.mxu0 0
      %2076 = vmatprep.subr.bf16.mxu0 0
      %2077 = vmatpush1.bf16.msra.mxu0 0
      %2078 = vmatprep.subr.bf16.mxu0 0
      %2079 = vmatpush1.bf16.msra.mxu0 0
      %2080 = vmatprep.subr.bf16.mxu0 0
      %2081 = vmatpush1.bf16.msra.mxu0 0
      %2082 = vmatprep.subr.bf16.mxu0 0
      %2083 = vmatpush1.bf16.msra.mxu0 0
      %2084 = vmatprep.subr.bf16.mxu0 0
      %2085 = vmatpush1.bf16.msra.mxu0 0
      %2086 = vmatprep.subr.bf16.mxu0 0
      %2087 = vmatpush1.bf16.msra.mxu0 0
      %2088 = vmatprep.subr.bf16.mxu0 0
      %2089 = vmatpush1.bf16.msra.mxu0 0
      %2090 = vmatprep.subr.bf16.mxu0 0
      %2091 = vmatpush1.bf16.msra.mxu0 0
      %2092 = vmatprep.subr.bf16.mxu0 0
      %2093 = vmatpush1.bf16.msra.mxu0 0
      %2094 = vmatprep.subr.bf16.mxu0 0
      %2095 = vmatpush1.bf16.msra.mxu0 0
      %2096 = vmatprep.subr.bf16.mxu0 0
      %2097 = vmatpush1.bf16.msra.mxu0 0
      %2098 = vmatprep.subr.bf16.mxu0 0
      %2099 = vmatpush1.bf16.msra.mxu0 0
      %2100 = vmatprep.subr.bf16.mxu0 0
      %2101 = vmatpush1.bf16.msra.mxu0 0
      %2102 = vmatprep.mubr.bf16.mxu0 0
      %2103 = vmatmul.mubr.bf16.gmra.mrb[0].mxu0 %v2065
      %v2104 = vpop.f32.mrb[0].mxu0
      %v2105 = vadd.f32 %v2058, %v2104
      %v2106 = vpop.f32.mrb[0].mxu0
      %v2107 = vpop.f32.mrb[0].mxu0
      %v2108 = vadd.f32 %v2061, %v2107
      %v2109 = vpop.f32.mrb[0].mxu0
      %2110 = vdwg.mxu0
      %s2111 = scalar_lea.vmem %s4, 5
      %v2112 = vld [vmem:[%s2111] sm:$0x1]
      %v2114 = vsel %vm847, %v2112, 0
      %2116 = vmatprep.subr.bf16.mxu0 0
      %2117 = vmatpush1.bf16.xpose.msra.mxu0 %v2018
      %2118 = vmatprep.subr.bf16.mxu0 0
      %2119 = vmatpush1.bf16.xpose.msra.mxu0 0
      %2120 = vmatprep.subr.bf16.mxu0 0
      %2121 = vmatpush1.bf16.xpose.msra.mxu0 0
      %2122 = vmatprep.subr.bf16.mxu0 0
      %2123 = vmatpush1.bf16.xpose.msra.mxu0 0
      %2124 = vmatprep.subr.bf16.mxu0 0
      %2125 = vmatpush1.bf16.xpose.msra.mxu0 0
      %2126 = vmatprep.subr.bf16.mxu0 0
      %2127 = vmatpush1.bf16.xpose.msra.mxu0 0
      %2128 = vmatprep.subr.bf16.mxu0 0
      %2129 = vmatpush1.bf16.xpose.msra.mxu0 0
      %2130 = vmatprep.subr.bf16.mxu0 0
      %2131 = vmatpush1.bf16.xpose.msra.mxu0 0
      %2132 = vmatprep.subr.bf16.mxu0 0
      %2133 = vmatpush1.bf16.xpose.msra.mxu0 0
      %2134 = vmatprep.subr.bf16.mxu0 0
      %2135 = vmatpush1.bf16.xpose.msra.mxu0 0
      %2136 = vmatprep.subr.bf16.mxu0 0
      %2137 = vmatpush1.bf16.xpose.msra.mxu0 0
      %2138 = vmatprep.subr.bf16.mxu0 0
      %2139 = vmatpush1.bf16.xpose.msra.mxu0 0
      %2140 = vmatprep.subr.bf16.mxu0 0
      %2141 = vmatpush1.bf16.xpose.msra.mxu0 0
      %2142 = vmatprep.subr.bf16.mxu0 0
      %2143 = vmatpush1.bf16.xpose.msra.mxu0 0
      %2144 = vmatprep.subr.bf16.mxu0 0
      %2145 = vmatpush1.bf16.xpose.msra.mxu0 0
      %2146 = vmatprep.subr.bf16.mxu0 0
      %2147 = vmatpush1.bf16.xpose.msra.mxu0 0
      %2148 = vmatprep.mubr.bf16.mxu0 0
      %2149 = vmatmul.mubr.bf16.gmra.mrb[0].mxu0 %v2114
      %v2150 = vpop.f32.mrb[0].mxu0
      %v2151 = vadd.f32 0.0, %v2150
      %v2152 = vpop.f32.mrb[0].mxu0
      %v2153 = vpop.f32.mrb[0].mxu0
      %v2154 = vpop.f32.mrb[0].mxu0
      %2155 = vdwg.mxu0
      %v2157 = vsel %vm847, %v1912, 0
      %2159 = vmatprep.subr.bf16.mxu0 0
      %2160 = vmatpush1.bf16.xpose.msra.mxu0 %v2065
      %2161 = vmatprep.subr.bf16.mxu0 0
      %2162 = vmatpush1.bf16.xpose.msra.mxu0 0
      %2163 = vmatprep.subr.bf16.mxu0 0
      %2164 = vmatpush1.bf16.xpose.msra.mxu0 0
      %2165 = vmatprep.subr.bf16.mxu0 0
      %2166 = vmatpush1.bf16.xpose.msra.mxu0 0
      %2167 = vmatprep.subr.bf16.mxu0 0
      %2168 = vmatpush1.bf16.xpose.msra.mxu0 0
      %2169 = vmatprep.subr.bf16.mxu0 0
      %2170 = vmatpush1.bf16.xpose.msra.mxu0 0
      %2171 = vmatprep.subr.bf16.mxu0 0
      %2172 = vmatpush1.bf16.xpose.msra.mxu0 0
      %2173 = vmatprep.subr.bf16.mxu0 0
      %2174 = vmatpush1.bf16.xpose.msra.mxu0 0
      %2175 = vmatprep.subr.bf16.mxu0 0
      %2176 = vmatpush1.bf16.xpose.msra.mxu0 0
      %2177 = vmatprep.subr.bf16.mxu0 0
      %2178 = vmatpush1.bf16.xpose.msra.mxu0 0
      %2179 = vmatprep.subr.bf16.mxu0 0
      %2180 = vmatpush1.bf16.xpose.msra.mxu0 0
      %2181 = vmatprep.subr.bf16.mxu0 0
      %2182 = vmatpush1.bf16.xpose.msra.mxu0 0
      %2183 = vmatprep.subr.bf16.mxu0 0
      %2184 = vmatpush1.bf16.xpose.msra.mxu0 0
      %2185 = vmatprep.subr.bf16.mxu0 0
      %2186 = vmatpush1.bf16.xpose.msra.mxu0 0
      %2187 = vmatprep.subr.bf16.mxu0 0
      %2188 = vmatpush1.bf16.xpose.msra.mxu0 0
      %2189 = vmatprep.subr.bf16.mxu0 0
      %2190 = vmatpush1.bf16.xpose.msra.mxu0 0
      %2191 = vmatprep.mubr.bf16.mxu0 0
      %2192 = vmatmul.mubr.bf16.gmra.mrb[0].mxu0 %v2157
      %v2193 = vpop.f32.mrb[0].mxu0
      %v2194 = vadd.f32 %v2151, %v2193
      %v2195 = vpop.f32.mrb[0].mxu0
      %v2196 = vpop.f32.mrb[0].mxu0
      %v2197 = vpop.f32.mrb[0].mxu0
      %2198 = vdwg.mxu0
      %2200 = vset.pattern.permute.xlu0 8
      %2201 = vperm.xlu0 %2200, %v2105
      %v2202 = vpop.permute.xlu0 %2201
      %2205 = vset.pattern.permute.xlu0 8
      %2206 = vperm.xlu0 %2205, %v2108
      %v2207 = vpop.permute.xlu0 %2206
      %v2209 = vlaneseq
      %v2210 = vshrl.u32 %v2209, 7
      %v2211 = vsub.s32 0, %v2210
      %v2212 = vrot.slane %v2194, %v2211
      %v2213 = vadd.f32 %v2202, %v2212
      %v2214 = vadd.f32 %v2207, %v2212
      %v2215 = vmul.f32 %v2213, 0.2
      %v2216 = vmul.f32 %v2214, 0.2
      %v2217 = vmax.f32 %v2213, %v2215
      %v2218 = vmax.f32 %v2214, %v2216
      %v2219 = vsel %vm1712, %v2217, -9e+15
      %v2220 = vsel %vm1713, %v2218, -9e+15
      %v2221 = vsel %vm661, %v2219, -inf
      %2222 = vmax.xlane.f32.xlu0 %v2221
      %v2223 = vpop.xlane.xlu0 %2222
      %v2224 = vsel %vm661, %v2220, -inf
      %2225 = vmax.xlane.f32.xlu0 %v2224
      %v2226 = vpop.xlane.xlu0 %2225
      %v2227 = vsub.f32 %v2219, %v2223
      %v2228 = vsub.f32 %v2220, %v2226
      %v2229 = vmul.f32 %v2227, 1.442695
      %v2230 = vpow.pop %v2229
      %v2231 = vmul.f32 %v2228, 1.442695
      %v2232 = vpow.pop %v2231
      %v2233 = vsel %vm661, %v2230, 0.0
      %2234 = vadd.xlane.f32.xlu0 %v2233
      %v2235 = vpop.xlane.xlu0 %2234
      %v2236 = vsel %vm661, %v2232, 0.0
      %2237 = vadd.xlane.f32.xlu0 %v2236
      %v2238 = vpop.xlane.xlu0 %2237
      %v2239 = vrcp.pop %v2235
      %v2240 = vrcp.pop %v2238
      %v2241 = vmul.f32 %v2230, %v2239
      %v2242 = vmul.f32 %v2232, %v2240
      %v2243 = vpack.c.bf16 %v2242, %v2241
      %v2244 = vpack.c.bf16 %v2108, %v2105
      %v2246 = vsel %vm661, %v2243, 0
      %2248 = vmatprep.subr.bf16.mxu0 0
      %2249 = vmatpush1.bf16.msra.mxu0 %v2244
      %2250 = vmatprep.subr.bf16.mxu0 0
      %2251 = vmatpush1.bf16.msra.mxu0 0
      %2252 = vmatprep.subr.bf16.mxu0 0
      %2253 = vmatpush1.bf16.msra.mxu0 0
      %2254 = vmatprep.subr.bf16.mxu0 0
      %2255 = vmatpush1.bf16.msra.mxu0 0
      %2256 = vmatprep.subr.bf16.mxu0 0
      %2257 = vmatpush1.bf16.msra.mxu0 0
      %2258 = vmatprep.subr.bf16.mxu0 0
      %2259 = vmatpush1.bf16.msra.mxu0 0
      %2260 = vmatprep.subr.bf16.mxu0 0
      %2261 = vmatpush1.bf16.msra.mxu0 0
      %2262 = vmatprep.subr.bf16.mxu0 0
      %2263 = vmatpush1.bf16.msra.mxu0 0
      %2264 = vmatprep.subr.bf16.mxu0 0
      %2265 = vmatpush1.bf16.msra.mxu0 0
      %2266 = vmatprep.subr.bf16.mxu0 0
      %2267 = vmatpush1.bf16.msra.mxu0 0
      %2268 = vmatprep.subr.bf16.mxu0 0
      %2269 = vmatpush1.bf16.msra.mxu0 0
      %2270 = vmatprep.subr.bf16.mxu0 0
      %2271 = vmatpush1.bf16.msra.mxu0 0
      %2272 = vmatprep.subr.bf16.mxu0 0
      %2273 = vmatpush1.bf16.msra.mxu0 0
      %2274 = vmatprep.subr.bf16.mxu0 0
      %2275 = vmatpush1.bf16.msra.mxu0 0
      %2276 = vmatprep.subr.bf16.mxu0 0
      %2277 = vmatpush1.bf16.msra.mxu0 0
      %2278 = vmatprep.subr.bf16.mxu0 0
      %2279 = vmatpush1.bf16.msra.mxu0 0
      %2280 = vmatprep.mubr.bf16.mxu0 0
      %2281 = vmatmul.mubr.bf16.gmra.mrb[0].mxu0 %v2246
      %v2282 = vpop.f32.mrb[0].mxu0
      %v2283 = vadd.f32 0.0, %v2282
      %v2284 = vpop.f32.mrb[0].mxu0
      %v2285 = vpop.f32.mrb[0].mxu0
      %v2286 = vadd.f32 0.0, %v2285
      %v2287 = vpop.f32.mrb[0].mxu0
      %2288 = vdwg.mxu0
      %vm2289 = vcmp.gt.f32.partialorder %v2283, 0.0
      %vm2290 = vcmp.gt.f32.partialorder %v2286, 0.0
      %v2291 = vmul.f32 %v2283, 1.442695
      %v2292 = vpow.pop %v2291
      %v2293 = vmul.f32 %v2286, 1.442695
      %v2294 = vpow.pop %v2293
      %v2295 = vsub.f32 %v2292, 1.0
      %v2296 = vsub.f32 %v2294, 1.0
      %v2297 = vsel %vm2289, %v2283, %v2295
      %v2298 = vsel %vm2290, %v2286, %v2296
      %v2299 = vadd.f32 %v1623, %v2297
      %v2300 = vadd.f32 %v1624, %v2298
      %2301 = vset.pattern.permute.xlu0 18
      %2302 = vperm.xlu0 %2301, %v1757
      %v2303 = vpop.permute.xlu0 %2302
      %2305 = vset.pattern.permute.xlu0 18
      %2306 = vperm.xlu0 %2305, %v1760
      %v2307 = vpop.permute.xlu0 %2306
      %v2309 = vlaneseq
      %v2310 = vshrl.u32 %v2309, 7
      %v2311 = vsub.s32 2, %v2310
      %v2312 = vrot.slane %v1803, %v2311
      %v2313 = vadd.f32 %v2303, %v2312
      %v2314 = vadd.f32 %v2307, %v2312
      %v2315 = vmul.f32 %v2313, 0.2
      %v2316 = vmul.f32 %v2314, 0.2
      %v2317 = vmax.f32 %v2313, %v2315
      %v2318 = vmax.f32 %v2314, %v2316
      %v2319 = vsel %vm1710, %v2317, -9e+15
      %v2320 = vsel %vm1711, %v2318, -9e+15
      %v2321 = vsel %vm661, %v2319, -inf
      %2322 = vmax.xlane.f32.xlu0 %v2321
      %v2323 = vpop.xlane.xlu0 %2322
      %v2324 = vsel %vm661, %v2320, -inf
      %2325 = vmax.xlane.f32.xlu0 %v2324
      %v2326 = vpop.xlane.xlu0 %2325
      %v2327 = vsub.f32 %v2319, %v2323
      %v2328 = vsub.f32 %v2320, %v2326
      %v2329 = vmul.f32 %v2327, 1.442695
      %v2330 = vpow.pop %v2329
      %v2331 = vmul.f32 %v2328, 1.442695
      %v2332 = vpow.pop %v2331
      %v2333 = vsel %vm661, %v2330, 0.0
      %2334 = vadd.xlane.f32.xlu0 %v2333
      %v2335 = vpop.xlane.xlu0 %2334
      %v2336 = vsel %vm661, %v2332, 0.0
      %2337 = vadd.xlane.f32.xlu0 %v2336
      %v2338 = vpop.xlane.xlu0 %2337
      %v2339 = vrcp.pop %v2335
      %v2340 = vrcp.pop %v2338
      %v2341 = vmul.f32 %v2330, %v2339
      %v2342 = vmul.f32 %v2332, %v2340
      %v2343 = vpack.c.bf16 %v2342, %v2341
      %2344 = vrot.lane.b32.xlu0 %v1853, 120
      %v2345 = vpop.permute.xlu0 %2344
      %v2348 = vsel %vm661, %v2343, 0
      %2350 = vmatprep.subr.bf16.mxu0 0
      %2351 = vmatpush1.bf16.msra.mxu0 %v2345
      %2352 = vmatprep.subr.bf16.mxu0 0
      %2353 = vmatpush1.bf16.msra.mxu0 0
      %2354 = vmatprep.subr.bf16.mxu0 0
      %2355 = vmatpush1.bf16.msra.mxu0 0
      %2356 = vmatprep.subr.bf16.mxu0 0
      %2357 = vmatpush1.bf16.msra.mxu0 0
      %2358 = vmatprep.subr.bf16.mxu0 0
      %2359 = vmatpush1.bf16.msra.mxu0 0
      %2360 = vmatprep.subr.bf16.mxu0 0
      %2361 = vmatpush1.bf16.msra.mxu0 0
      %2362 = vmatprep.subr.bf16.mxu0 0
      %2363 = vmatpush1.bf16.msra.mxu0 0
      %2364 = vmatprep.subr.bf16.mxu0 0
      %2365 = vmatpush1.bf16.msra.mxu0 0
      %2366 = vmatprep.subr.bf16.mxu0 0
      %2367 = vmatpush1.bf16.msra.mxu0 0
      %2368 = vmatprep.subr.bf16.mxu0 0
      %2369 = vmatpush1.bf16.msra.mxu0 0
      %2370 = vmatprep.subr.bf16.mxu0 0
      %2371 = vmatpush1.bf16.msra.mxu0 0
      %2372 = vmatprep.subr.bf16.mxu0 0
      %2373 = vmatpush1.bf16.msra.mxu0 0
      %2374 = vmatprep.subr.bf16.mxu0 0
      %2375 = vmatpush1.bf16.msra.mxu0 0
      %2376 = vmatprep.subr.bf16.mxu0 0
      %2377 = vmatpush1.bf16.msra.mxu0 0
      %2378 = vmatprep.subr.bf16.mxu0 0
      %2379 = vmatpush1.bf16.msra.mxu0 0
      %2380 = vmatprep.subr.bf16.mxu0 0
      %2381 = vmatpush1.bf16.msra.mxu0 0
      %2382 = vmatprep.mubr.bf16.mxu0 0
      %2383 = vmatmul.mubr.bf16.gmra.mrb[0].mxu0 %v2348
      %v2384 = vpop.f32.mrb[0].mxu0
      %v2385 = vadd.f32 0.0, %v2384
      %v2386 = vpop.f32.mrb[0].mxu0
      %v2387 = vpop.f32.mrb[0].mxu0
      %v2388 = vadd.f32 0.0, %v2387
      %v2389 = vpop.f32.mrb[0].mxu0
      %2390 = vdwg.mxu0
      %vm2391 = vcmp.gt.f32.partialorder %v2385, 0.0
      %vm2392 = vcmp.gt.f32.partialorder %v2388, 0.0
      %v2393 = vmul.f32 %v2385, 1.442695
      %v2394 = vpow.pop %v2393
      %v2395 = vmul.f32 %v2388, 1.442695
      %v2396 = vpow.pop %v2395
      %v2397 = vsub.f32 %v2394, 1.0
      %v2398 = vsub.f32 %v2396, 1.0
      %v2399 = vsel %vm2391, %v2385, %v2397
      %v2400 = vsel %vm2392, %v2388, %v2398
      %v2401 = vpack.c.bf16 %v2400, %v2399
      %s2402 = scalar_lea.vmem %s3, 12
      %v2403 = vld [vmem:[%s2402] sm:$0x3]
      %s2404 = scalar_lea.vmem %s4, 6
      %v2405 = vld [vmem:[%s2404] sm:$0x1]
      %2406 = vset.pattern.permute.xlu0 19
      %2407 = vperm.xlu0 %2406, %v1757
      %v2408 = vpop.permute.xlu0 %2407
      %2410 = vset.pattern.permute.xlu0 19
      %2411 = vperm.xlu0 %2410, %v1760
      %v2412 = vpop.permute.xlu0 %2411
      %v2414 = vlaneseq
      %v2415 = vshrl.u32 %v2414, 7
      %v2416 = vsub.s32 3, %v2415
      %v2417 = vrot.slane %v1803, %v2416
      %v2418 = vadd.f32 %v2408, %v2417
      %v2419 = vadd.f32 %v2412, %v2417
      %v2420 = vmul.f32 %v2418, 0.2
      %v2421 = vmul.f32 %v2419, 0.2
      %v2422 = vmax.f32 %v2418, %v2420
      %v2423 = vmax.f32 %v2419, %v2421
      %v2424 = vsel %vm1710, %v2422, -9e+15
      %v2425 = vsel %vm1711, %v2423, -9e+15
      %v2426 = vsel %vm661, %v2424, -inf
      %2427 = vmax.xlane.f32.xlu0 %v2426
      %v2428 = vpop.xlane.xlu0 %2427
      %v2429 = vsel %vm661, %v2425, -inf
      %2430 = vmax.xlane.f32.xlu0 %v2429
      %v2431 = vpop.xlane.xlu0 %2430
      %v2432 = vsub.f32 %v2424, %v2428
      %v2433 = vsub.f32 %v2425, %v2431
      %v2434 = vmul.f32 %v2432, 1.442695
      %v2435 = vpow.pop %v2434
      %v2436 = vmul.f32 %v2433, 1.442695
      %v2437 = vpow.pop %v2436
      %v2438 = vsel %vm661, %v2435, 0.0
      %2439 = vadd.xlane.f32.xlu0 %v2438
      %v2440 = vpop.xlane.xlu0 %2439
      %v2441 = vsel %vm661, %v2437, 0.0
      %2442 = vadd.xlane.f32.xlu0 %v2441
      %v2443 = vpop.xlane.xlu0 %2442
      %v2444 = vrcp.pop %v2440
      %v2445 = vrcp.pop %v2443
      %v2446 = vmul.f32 %v2435, %v2444
      %v2447 = vmul.f32 %v2437, %v2445
      %v2448 = vpack.c.bf16 %v2447, %v2446
      %2449 = vrot.lane.b32.xlu0 %v1853, 116
      %v2450 = vpop.permute.xlu0 %2449
      %v2453 = vsel %vm661, %v2448, 0
      %2455 = vmatprep.subr.bf16.mxu0 0
      %2456 = vmatpush1.bf16.msra.mxu0 %v2450
      %2457 = vmatprep.subr.bf16.mxu0 0
      %2458 = vmatpush1.bf16.msra.mxu0 0
      %2459 = vmatprep.subr.bf16.mxu0 0
      %2460 = vmatpush1.bf16.msra.mxu0 0
      %2461 = vmatprep.subr.bf16.mxu0 0
      %2462 = vmatpush1.bf16.msra.mxu0 0
      %2463 = vmatprep.subr.bf16.mxu0 0
      %2464 = vmatpush1.bf16.msra.mxu0 0
      %2465 = vmatprep.subr.bf16.mxu0 0
      %2466 = vmatpush1.bf16.msra.mxu0 0
      %2467 = vmatprep.subr.bf16.mxu0 0
      %2468 = vmatpush1.bf16.msra.mxu0 0
      %2469 = vmatprep.subr.bf16.mxu0 0
      %2470 = vmatpush1.bf16.msra.mxu0 0
      %2471 = vmatprep.subr.bf16.mxu0 0
      %2472 = vmatpush1.bf16.msra.mxu0 0
      %2473 = vmatprep.subr.bf16.mxu0 0
      %2474 = vmatpush1.bf16.msra.mxu0 0
      %2475 = vmatprep.subr.bf16.mxu0 0
      %2476 = vmatpush1.bf16.msra.mxu0 0
      %2477 = vmatprep.subr.bf16.mxu0 0
      %2478 = vmatpush1.bf16.msra.mxu0 0
      %2479 = vmatprep.subr.bf16.mxu0 0
      %2480 = vmatpush1.bf16.msra.mxu0 0
      %2481 = vmatprep.subr.bf16.mxu0 0
      %2482 = vmatpush1.bf16.msra.mxu0 0
      %2483 = vmatprep.subr.bf16.mxu0 0
      %2484 = vmatpush1.bf16.msra.mxu0 0
      %2485 = vmatprep.subr.bf16.mxu0 0
      %2486 = vmatpush1.bf16.msra.mxu0 0
      %2487 = vmatprep.mubr.bf16.mxu0 0
      %2488 = vmatmul.mubr.bf16.gmra.mrb[0].mxu0 %v2453
      %v2489 = vpop.f32.mrb[0].mxu0
      %v2490 = vadd.f32 0.0, %v2489
      %v2491 = vpop.f32.mrb[0].mxu0
      %v2492 = vpop.f32.mrb[0].mxu0
      %v2493 = vadd.f32 0.0, %v2492
      %v2494 = vpop.f32.mrb[0].mxu0
      %2495 = vdwg.mxu0
      %vm2496 = vcmp.gt.f32.partialorder %v2490, 0.0
      %vm2497 = vcmp.gt.f32.partialorder %v2493, 0.0
      %v2498 = vmul.f32 %v2490, 1.442695
      %v2499 = vpow.pop %v2498
      %v2500 = vmul.f32 %v2493, 1.442695
      %v2501 = vpow.pop %v2500
      %v2502 = vsub.f32 %v2499, 1.0
      %v2503 = vsub.f32 %v2501, 1.0
      %v2504 = vsel %vm2496, %v2490, %v2502
      %v2505 = vsel %vm2497, %v2493, %v2503
      %v2506 = vpack.c.bf16 %v2505, %v2504
      %s2507 = scalar_lea.vmem %s3, 14
      %v2508 = vld [vmem:[%s2507] sm:$0x3]
      %v2510 = vsel %vm847, %v2506, 0
      %v2513 = vsel %vm851, %v2508, 0
      %2515 = vmatprep.subr.bf16.mxu0 0
      %2516 = vmatpush1.bf16.msra.mxu0 %v2513
      %2517 = vmatprep.subr.bf16.mxu0 0
      %2518 = vmatpush1.bf16.msra.mxu0 0
      %2519 = vmatprep.subr.bf16.mxu0 0
      %2520 = vmatpush1.bf16.msra.mxu0 0
      %2521 = vmatprep.subr.bf16.mxu0 0
      %2522 = vmatpush1.bf16.msra.mxu0 0
      %2523 = vmatprep.subr.bf16.mxu0 0
      %2524 = vmatpush1.bf16.msra.mxu0 0
      %2525 = vmatprep.subr.bf16.mxu0 0
      %2526 = vmatpush1.bf16.msra.mxu0 0
      %2527 = vmatprep.subr.bf16.mxu0 0
      %2528 = vmatpush1.bf16.msra.mxu0 0
      %2529 = vmatprep.subr.bf16.mxu0 0
      %2530 = vmatpush1.bf16.msra.mxu0 0
      %2531 = vmatprep.subr.bf16.mxu0 0
      %2532 = vmatpush1.bf16.msra.mxu0 0
      %2533 = vmatprep.subr.bf16.mxu0 0
      %2534 = vmatpush1.bf16.msra.mxu0 0
      %2535 = vmatprep.subr.bf16.mxu0 0
      %2536 = vmatpush1.bf16.msra.mxu0 0
      %2537 = vmatprep.subr.bf16.mxu0 0
      %2538 = vmatpush1.bf16.msra.mxu0 0
      %2539 = vmatprep.subr.bf16.mxu0 0
      %2540 = vmatpush1.bf16.msra.mxu0 0
      %2541 = vmatprep.subr.bf16.mxu0 0
      %2542 = vmatpush1.bf16.msra.mxu0 0
      %2543 = vmatprep.subr.bf16.mxu0 0
      %2544 = vmatpush1.bf16.msra.mxu0 0
      %2545 = vmatprep.subr.bf16.mxu0 0
      %2546 = vmatpush1.bf16.msra.mxu0 0
      %2547 = vmatprep.mubr.bf16.mxu0 0
      %2548 = vmatmul.mubr.bf16.gmra.mrb[0].mxu0 %v2510
      %v2549 = vpop.f32.mrb[0].mxu0
      %v2550 = vadd.f32 0.0, %v2549
      %v2551 = vpop.f32.mrb[0].mxu0
      %v2552 = vpop.f32.mrb[0].mxu0
      %v2553 = vadd.f32 0.0, %v2552
      %v2554 = vpop.f32.mrb[0].mxu0
      %2555 = vdwg.mxu0
      %v2557 = vsel %vm847, %v2401, 0
      %v2560 = vsel %vm851, %v2403, 0
      %2562 = vmatprep.subr.bf16.mxu0 0
      %2563 = vmatpush1.bf16.msra.mxu0 %v2560
      %2564 = vmatprep.subr.bf16.mxu0 0
      %2565 = vmatpush1.bf16.msra.mxu0 0
      %2566 = vmatprep.subr.bf16.mxu0 0
      %2567 = vmatpush1.bf16.msra.mxu0 0
      %2568 = vmatprep.subr.bf16.mxu0 0
      %2569 = vmatpush1.bf16.msra.mxu0 0
      %2570 = vmatprep.subr.bf16.mxu0 0
      %2571 = vmatpush1.bf16.msra.mxu0 0
      %2572 = vmatprep.subr.bf16.mxu0 0
      %2573 = vmatpush1.bf16.msra.mxu0 0
      %2574 = vmatprep.subr.bf16.mxu0 0
      %2575 = vmatpush1.bf16.msra.mxu0 0
      %2576 = vmatprep.subr.bf16.mxu0 0
      %2577 = vmatpush1.bf16.msra.mxu0 0
      %2578 = vmatprep.subr.bf16.mxu0 0
      %2579 = vmatpush1.bf16.msra.mxu0 0
      %2580 = vmatprep.subr.bf16.mxu0 0
      %2581 = vmatpush1.bf16.msra.mxu0 0
      %2582 = vmatprep.subr.bf16.mxu0 0
      %2583 = vmatpush1.bf16.msra.mxu0 0
      %2584 = vmatprep.subr.bf16.mxu0 0
      %2585 = vmatpush1.bf16.msra.mxu0 0
      %2586 = vmatprep.subr.bf16.mxu0 0
      %2587 = vmatpush1.bf16.msra.mxu0 0
      %2588 = vmatprep.subr.bf16.mxu0 0
      %2589 = vmatpush1.bf16.msra.mxu0 0
      %2590 = vmatprep.subr.bf16.mxu0 0
      %2591 = vmatpush1.bf16.msra.mxu0 0
      %2592 = vmatprep.subr.bf16.mxu0 0
      %2593 = vmatpush1.bf16.msra.mxu0 0
      %2594 = vmatprep.mubr.bf16.mxu0 0
      %2595 = vmatmul.mubr.bf16.gmra.mrb[0].mxu0 %v2557
      %v2596 = vpop.f32.mrb[0].mxu0
      %v2597 = vadd.f32 %v2550, %v2596
      %v2598 = vpop.f32.mrb[0].mxu0
      %v2599 = vpop.f32.mrb[0].mxu0
      %v2600 = vadd.f32 %v2553, %v2599
      %v2601 = vpop.f32.mrb[0].mxu0
      %2602 = vdwg.mxu0
      %s2603 = scalar_lea.vmem %s4, 7
      %v2604 = vld [vmem:[%s2603] sm:$0x1]
      %v2606 = vsel %vm847, %v2604, 0
      %2608 = vmatprep.subr.bf16.mxu0 0
      %2609 = vmatpush1.bf16.xpose.msra.mxu0 %v2510
      %2610 = vmatprep.subr.bf16.mxu0 0
      %2611 = vmatpush1.bf16.xpose.msra.mxu0 0
      %2612 = vmatprep.subr.bf16.mxu0 0
      %2613 = vmatpush1.bf16.xpose.msra.mxu0 0
      %2614 = vmatprep.subr.bf16.mxu0 0
      %2615 = vmatpush1.bf16.xpose.msra.mxu0 0
      %2616 = vmatprep.subr.bf16.mxu0 0
      %2617 = vmatpush1.bf16.xpose.msra.mxu0 0
      %2618 = vmatprep.subr.bf16.mxu0 0
      %2619 = vmatpush1.bf16.xpose.msra.mxu0 0
      %2620 = vmatprep.subr.bf16.mxu0 0
      %2621 = vmatpush1.bf16.xpose.msra.mxu0 0
      %2622 = vmatprep.subr.bf16.mxu0 0
      %2623 = vmatpush1.bf16.xpose.msra.mxu0 0
      %2624 = vmatprep.subr.bf16.mxu0 0
      %2625 = vmatpush1.bf16.xpose.msra.mxu0 0
      %2626 = vmatprep.subr.bf16.mxu0 0
      %2627 = vmatpush1.bf16.xpose.msra.mxu0 0
      %2628 = vmatprep.subr.bf16.mxu0 0
      %2629 = vmatpush1.bf16.xpose.msra.mxu0 0
      %2630 = vmatprep.subr.bf16.mxu0 0
      %2631 = vmatpush1.bf16.xpose.msra.mxu0 0
      %2632 = vmatprep.subr.bf16.mxu0 0
      %2633 = vmatpush1.bf16.xpose.msra.mxu0 0
      %2634 = vmatprep.subr.bf16.mxu0 0
      %2635 = vmatpush1.bf16.xpose.msra.mxu0 0
      %2636 = vmatprep.subr.bf16.mxu0 0
      %2637 = vmatpush1.bf16.xpose.msra.mxu0 0
      %2638 = vmatprep.subr.bf16.mxu0 0
      %2639 = vmatpush1.bf16.xpose.msra.mxu0 0
      %2640 = vmatprep.mubr.bf16.mxu0 0
      %2641 = vmatmul.mubr.bf16.gmra.mrb[0].mxu0 %v2606
      %v2642 = vpop.f32.mrb[0].mxu0
      %v2643 = vadd.f32 0.0, %v2642
      %v2644 = vpop.f32.mrb[0].mxu0
      %v2645 = vpop.f32.mrb[0].mxu0
      %v2646 = vpop.f32.mrb[0].mxu0
      %2647 = vdwg.mxu0
      %v2649 = vsel %vm847, %v2405, 0
      %2651 = vmatprep.subr.bf16.mxu0 0
      %2652 = vmatpush1.bf16.xpose.msra.mxu0 %v2557
      %2653 = vmatprep.subr.bf16.mxu0 0
      %2654 = vmatpush1.bf16.xpose.msra.mxu0 0
      %2655 = vmatprep.subr.bf16.mxu0 0
      %2656 = vmatpush1.bf16.xpose.msra.mxu0 0
      %2657 = vmatprep.subr.bf16.mxu0 0
      %2658 = vmatpush1.bf16.xpose.msra.mxu0 0
      %2659 = vmatprep.subr.bf16.mxu0 0
      %2660 = vmatpush1.bf16.xpose.msra.mxu0 0
      %2661 = vmatprep.subr.bf16.mxu0 0
      %2662 = vmatpush1.bf16.xpose.msra.mxu0 0
      %2663 = vmatprep.subr.bf16.mxu0 0
      %2664 = vmatpush1.bf16.xpose.msra.mxu0 0
      %2665 = vmatprep.subr.bf16.mxu0 0
      %2666 = vmatpush1.bf16.xpose.msra.mxu0 0
      %2667 = vmatprep.subr.bf16.mxu0 0
      %2668 = vmatpush1.bf16.xpose.msra.mxu0 0
      %2669 = vmatprep.subr.bf16.mxu0 0
      %2670 = vmatpush1.bf16.xpose.msra.mxu0 0
      %2671 = vmatprep.subr.bf16.mxu0 0
      %2672 = vmatpush1.bf16.xpose.msra.mxu0 0
      %2673 = vmatprep.subr.bf16.mxu0 0
      %2674 = vmatpush1.bf16.xpose.msra.mxu0 0
      %2675 = vmatprep.subr.bf16.mxu0 0
      %2676 = vmatpush1.bf16.xpose.msra.mxu0 0
      %2677 = vmatprep.subr.bf16.mxu0 0
      %2678 = vmatpush1.bf16.xpose.msra.mxu0 0
      %2679 = vmatprep.subr.bf16.mxu0 0
      %2680 = vmatpush1.bf16.xpose.msra.mxu0 0
      %2681 = vmatprep.subr.bf16.mxu0 0
      %2682 = vmatpush1.bf16.xpose.msra.mxu0 0
      %2683 = vmatprep.mubr.bf16.mxu0 0
      %2684 = vmatmul.mubr.bf16.gmra.mrb[0].mxu0 %v2649
      %v2685 = vpop.f32.mrb[0].mxu0
      %v2686 = vadd.f32 %v2643, %v2685
      %v2687 = vpop.f32.mrb[0].mxu0
      %v2688 = vpop.f32.mrb[0].mxu0
      %v2689 = vpop.f32.mrb[0].mxu0
      %2690 = vdwg.mxu0
      %2692 = vset.pattern.permute.xlu0 8
      %2693 = vperm.xlu0 %2692, %v2597
      %v2694 = vpop.permute.xlu0 %2693
      %2697 = vset.pattern.permute.xlu0 8
      %2698 = vperm.xlu0 %2697, %v2600
      %v2699 = vpop.permute.xlu0 %2698
      %v2701 = vlaneseq
      %v2702 = vshrl.u32 %v2701, 7
      %v2703 = vsub.s32 0, %v2702
      %v2704 = vrot.slane %v2686, %v2703
      %v2705 = vadd.f32 %v2694, %v2704
      %v2706 = vadd.f32 %v2699, %v2704
      %v2707 = vmul.f32 %v2705, 0.2
      %v2708 = vmul.f32 %v2706, 0.2
      %v2709 = vmax.f32 %v2705, %v2707
      %v2710 = vmax.f32 %v2706, %v2708
      %v2711 = vsel %vm1710, %v2709, -9e+15
      %v2712 = vsel %vm1711, %v2710, -9e+15
      %v2713 = vsel %vm661, %v2711, -inf
      %2714 = vmax.xlane.f32.xlu0 %v2713
      %v2715 = vpop.xlane.xlu0 %2714
      %v2716 = vsel %vm661, %v2712, -inf
      %2717 = vmax.xlane.f32.xlu0 %v2716
      %v2718 = vpop.xlane.xlu0 %2717
      %v2719 = vsub.f32 %v2711, %v2715
      %v2720 = vsub.f32 %v2712, %v2718
      %v2721 = vmul.f32 %v2719, 1.442695
      %v2722 = vpow.pop %v2721
      %v2723 = vmul.f32 %v2720, 1.442695
      %v2724 = vpow.pop %v2723
      %v2725 = vsel %vm661, %v2722, 0.0
      %2726 = vadd.xlane.f32.xlu0 %v2725
      %v2727 = vpop.xlane.xlu0 %2726
      %v2728 = vsel %vm661, %v2724, 0.0
      %2729 = vadd.xlane.f32.xlu0 %v2728
      %v2730 = vpop.xlane.xlu0 %2729
      %v2731 = vrcp.pop %v2727
      %v2732 = vrcp.pop %v2730
      %v2733 = vmul.f32 %v2722, %v2731
      %v2734 = vmul.f32 %v2724, %v2732
      %v2735 = vpack.c.bf16 %v2734, %v2733
      %v2736 = vpack.c.bf16 %v2600, %v2597
      %v2738 = vsel %vm661, %v2735, 0
      %2740 = vmatprep.subr.bf16.mxu0 0
      %2741 = vmatpush1.bf16.msra.mxu0 %v2736
      %2742 = vmatprep.subr.bf16.mxu0 0
      %2743 = vmatpush1.bf16.msra.mxu0 0
      %2744 = vmatprep.subr.bf16.mxu0 0
      %2745 = vmatpush1.bf16.msra.mxu0 0
      %2746 = vmatprep.subr.bf16.mxu0 0
      %2747 = vmatpush1.bf16.msra.mxu0 0
      %2748 = vmatprep.subr.bf16.mxu0 0
      %2749 = vmatpush1.bf16.msra.mxu0 0
      %2750 = vmatprep.subr.bf16.mxu0 0
      %2751 = vmatpush1.bf16.msra.mxu0 0
      %2752 = vmatprep.subr.bf16.mxu0 0
      %2753 = vmatpush1.bf16.msra.mxu0 0
      %2754 = vmatprep.subr.bf16.mxu0 0
      %2755 = vmatpush1.bf16.msra.mxu0 0
      %2756 = vmatprep.subr.bf16.mxu0 0
      %2757 = vmatpush1.bf16.msra.mxu0 0
      %2758 = vmatprep.subr.bf16.mxu0 0
      %2759 = vmatpush1.bf16.msra.mxu0 0
      %2760 = vmatprep.subr.bf16.mxu0 0
      %2761 = vmatpush1.bf16.msra.mxu0 0
      %2762 = vmatprep.subr.bf16.mxu0 0
      %2763 = vmatpush1.bf16.msra.mxu0 0
      %2764 = vmatprep.subr.bf16.mxu0 0
      %2765 = vmatpush1.bf16.msra.mxu0 0
      %2766 = vmatprep.subr.bf16.mxu0 0
      %2767 = vmatpush1.bf16.msra.mxu0 0
      %2768 = vmatprep.subr.bf16.mxu0 0
      %2769 = vmatpush1.bf16.msra.mxu0 0
      %2770 = vmatprep.subr.bf16.mxu0 0
      %2771 = vmatpush1.bf16.msra.mxu0 0
      %2772 = vmatprep.mubr.bf16.mxu0 0
      %2773 = vmatmul.mubr.bf16.gmra.mrb[0].mxu0 %v2738
      %v2774 = vpop.f32.mrb[0].mxu0
      %v2775 = vadd.f32 0.0, %v2774
      %v2776 = vpop.f32.mrb[0].mxu0
      %v2777 = vpop.f32.mrb[0].mxu0
      %v2778 = vadd.f32 0.0, %v2777
      %v2779 = vpop.f32.mrb[0].mxu0
      %2780 = vdwg.mxu0
      %vm2781 = vcmp.gt.f32.partialorder %v2775, 0.0
      %vm2782 = vcmp.gt.f32.partialorder %v2778, 0.0
      %v2783 = vmul.f32 %v2775, 1.442695
      %v2784 = vpow.pop %v2783
      %v2785 = vmul.f32 %v2778, 1.442695
      %v2786 = vpow.pop %v2785
      %v2787 = vsub.f32 %v2784, 1.0
      %v2788 = vsub.f32 %v2786, 1.0
      %v2789 = vsel %vm2781, %v2775, %v2787
      %v2790 = vsel %vm2782, %v2778, %v2788
      %v2791 = vadd.f32 %v2299, %v2789
      %v2792 = vadd.f32 %v2300, %v2790
      %v2793 = vsel %vm460, %v2791, 0.0
      %2794 = vadd.xlane.f32.xlu0 %v2793
      %v2795 = vpop.xlane.xlu0 %2794
      %v2796 = vsel %vm460, %v2792, 0.0
      %2797 = vadd.xlane.f32.xlu0 %v2796
      %v2798 = vpop.xlane.xlu0 %2797
      %v2799 = vrcp.pop 8.0
      %v2800 = vmul.f32 %v2795, %v2799
      %v2801 = vmul.f32 %v2798, %v2799
      %v2802 = vsub.f32 %v2791, %v2800
      %v2803 = vsub.f32 %v2792, %v2801
      %v2804 = vmul.f32 %v2802, %v2802
      %v2805 = vmul.f32 %v2803, %v2803
      %v2806 = vsel %vm460, %v2804, 0.0
      %2807 = vadd.xlane.f32.xlu0 %v2806
      %v2808 = vpop.xlane.xlu0 %2807
      %v2809 = vsel %vm460, %v2805, 0.0
      %2810 = vadd.xlane.f32.xlu0 %v2809
      %v2811 = vpop.xlane.xlu0 %2810
      %v2812 = vmul.f32 %v2808, %v2799
      %v2813 = vmul.f32 %v2811, %v2799
      %v2814 = vadd.f32 %v2812, 1e-05
      %v2815 = vadd.f32 %v2813, 1e-05
      %v2816 = vrsqrt.pop %v2814
      %v2817 = vrsqrt.pop %v2815
      %v2818 = vmul.f32 %v2802, %v2816
      %v2819 = vmul.f32 %v2803, %v2817
      %v2820 = vld [vmem:[%s5] sm:$0x1]
      %v2822 = vlaneseq
      %v2823 = vshrl.u32 %v2822, 7
      %v2824 = vsub.s32 0, %v2823
      %v2825 = vrot.slane %v2820, %v2824
      %v2827 = vmul.f32 %v2818, %v2825
      %v2828 = vmul.f32 %v2819, %v2825
      %v2829 = vld [vmem:[%s6] sm:$0x1]
      %v2831 = vlaneseq
      %v2832 = vshrl.u32 %v2831, 7
      %v2833 = vsub.s32 0, %v2832
      %v2834 = vrot.slane %v2829, %v2833
      %v2836 = vadd.f32 %v2827, %v2834
      %v2837 = vadd.f32 %v2828, %v2834
      %v2838 = vpack.c.bf16 %v2837, %v2836
      %v2839 = vld [vmem:[%s7] sm:$0xf]
      %v2841 = vsel %vm460, %v2838, 0
      %v2844 = vsel %vm550, %v2839, 0
      %2846 = vmatprep.subr.bf16.mxu0 0
      %2847 = vmatpush1.bf16.msra.mxu0 %v2844
      %2848 = vmatprep.subr.bf16.mxu0 0
      %2849 = vmatpush1.bf16.msra.mxu0 0
      %2850 = vmatprep.subr.bf16.mxu0 0
      %2851 = vmatpush1.bf16.msra.mxu0 0
      %2852 = vmatprep.subr.bf16.mxu0 0
      %2853 = vmatpush1.bf16.msra.mxu0 0
      %2854 = vmatprep.subr.bf16.mxu0 0
      %2855 = vmatpush1.bf16.msra.mxu0 0
      %2856 = vmatprep.subr.bf16.mxu0 0
      %2857 = vmatpush1.bf16.msra.mxu0 0
      %2858 = vmatprep.subr.bf16.mxu0 0
      %2859 = vmatpush1.bf16.msra.mxu0 0
      %2860 = vmatprep.subr.bf16.mxu0 0
      %2861 = vmatpush1.bf16.msra.mxu0 0
      %2862 = vmatprep.subr.bf16.mxu0 0
      %2863 = vmatpush1.bf16.msra.mxu0 0
      %2864 = vmatprep.subr.bf16.mxu0 0
      %2865 = vmatpush1.bf16.msra.mxu0 0
      %2866 = vmatprep.subr.bf16.mxu0 0
      %2867 = vmatpush1.bf16.msra.mxu0 0
      %2868 = vmatprep.subr.bf16.mxu0 0
      %2869 = vmatpush1.bf16.msra.mxu0 0
      %2870 = vmatprep.subr.bf16.mxu0 0
      %2871 = vmatpush1.bf16.msra.mxu0 0
      %2872 = vmatprep.subr.bf16.mxu0 0
      %2873 = vmatpush1.bf16.msra.mxu0 0
      %2874 = vmatprep.subr.bf16.mxu0 0
      %2875 = vmatpush1.bf16.msra.mxu0 0
      %2876 = vmatprep.subr.bf16.mxu0 0
      %2877 = vmatpush1.bf16.msra.mxu0 0
      %2878 = vmatprep.mubr.bf16.mxu0 0
      %2879 = vmatmul.mubr.bf16.gmra.mrb[0].mxu0 %v2841
      %v2880 = vpop.f32.mrb[0].mxu0
      %v2881 = vadd.f32 0.0, %v2880
      %v2882 = vpop.f32.mrb[0].mxu0
      %v2883 = vpop.f32.mrb[0].mxu0
      %v2884 = vadd.f32 0.0, %v2883
      %v2885 = vpop.f32.mrb[0].mxu0
      %2886 = vdwg.mxu0
      %v2887 = vld [vmem:[%s8] sm:$0x1]
      %v2889 = vlaneseq
      %v2890 = vshrl.u32 %v2889, 7
      %v2891 = vsub.s32 0, %v2890
      %v2892 = vrot.slane %v2887, %v2891
      %v2894 = vmul.f32 %v2881, %v2892
      %v2895 = vmul.f32 %v2884, %v2892
      %v2896 = vld [vmem:[%s9] sm:$0x1]
      %v2898 = vlaneseq
      %v2899 = vshrl.u32 %v2898, 7
      %v2900 = vsub.s32 0, %v2899
      %v2901 = vrot.slane %v2896, %v2900
      %v2903 = vadd.f32 %v2894, %v2901
      %v2904 = vadd.f32 %v2895, %v2901
      %v2905 = vxor.u32 %v2903, 2147483648
      %v2906 = vxor.u32 %v2904, 2147483648
      %v2907 = vmul.f32 %v2905, 1.442695
      %v2908 = vpow.pop %v2907
      %v2909 = vmul.f32 %v2906, 1.442695
      %v2910 = vpow.pop %v2909
      %v2911 = vadd.f32 %v2908, 1.0
      %v2912 = vadd.f32 %v2910, 1.0
      %v2913 = vrcp.pop %v2911
      %v2914 = vmul.f32 1.0, %v2913
      %v2915 = vrcp.pop %v2912
      %v2916 = vmul.f32 1.0, %v2915
      %v2917 = vmul.f32 %v2903, %v2914
      %v2918 = vmul.f32 %v2904, %v2916
      %v2919 = vpack.c.bf16 %v2918, %v2917
      %v2920 = vld [vmem:[%s10] sm:$0x3]
      %v2922 = vsel %vm847, %v2919, 0
      %v2925 = vsel %vm851, %v2920, 0
      %2927 = vmatprep.subr.bf16.mxu0 0
      %2928 = vmatpush1.bf16.msra.mxu0 %v2925
      %2929 = vmatprep.subr.bf16.mxu0 0
      %2930 = vmatpush1.bf16.msra.mxu0 0
      %2931 = vmatprep.subr.bf16.mxu0 0
      %2932 = vmatpush1.bf16.msra.mxu0 0
      %2933 = vmatprep.subr.bf16.mxu0 0
      %2934 = vmatpush1.bf16.msra.mxu0 0
      %2935 = vmatprep.subr.bf16.mxu0 0
      %2936 = vmatpush1.bf16.msra.mxu0 0
      %2937 = vmatprep.subr.bf16.mxu0 0
      %2938 = vmatpush1.bf16.msra.mxu0 0
      %2939 = vmatprep.subr.bf16.mxu0 0
      %2940 = vmatpush1.bf16.msra.mxu0 0
      %2941 = vmatprep.subr.bf16.mxu0 0
      %2942 = vmatpush1.bf16.msra.mxu0 0
      %2943 = vmatprep.subr.bf16.mxu0 0
      %2944 = vmatpush1.bf16.msra.mxu0 0
      %2945 = vmatprep.subr.bf16.mxu0 0
      %2946 = vmatpush1.bf16.msra.mxu0 0
      %2947 = vmatprep.subr.bf16.mxu0 0
      %2948 = vmatpush1.bf16.msra.mxu0 0
      %2949 = vmatprep.subr.bf16.mxu0 0
      %2950 = vmatpush1.bf16.msra.mxu0 0
      %2951 = vmatprep.subr.bf16.mxu0 0
      %2952 = vmatpush1.bf16.msra.mxu0 0
      %2953 = vmatprep.subr.bf16.mxu0 0
      %2954 = vmatpush1.bf16.msra.mxu0 0
      %2955 = vmatprep.subr.bf16.mxu0 0
      %2956 = vmatpush1.bf16.msra.mxu0 0
      %2957 = vmatprep.subr.bf16.mxu0 0
      %2958 = vmatpush1.bf16.msra.mxu0 0
      %2959 = vmatprep.mubr.bf16.mxu0 0
      %2960 = vmatmul.mubr.bf16.gmra.mrb[0].mxu0 %v2922
      %v2961 = vpop.f32.mrb[0].mxu0
      %v2962 = vadd.f32 0.0, %v2961
      %v2963 = vpop.f32.mrb[0].mxu0
      %v2964 = vpop.f32.mrb[0].mxu0
      %v2965 = vadd.f32 0.0, %v2964
      %v2966 = vpop.f32.mrb[0].mxu0
      %2967 = vdwg.mxu0
      %v2968 = vld [vmem:[%s11] sm:$0x1]
      %v2970 = vlaneseq
      %v2971 = vshrl.u32 %v2970, 7
      %v2972 = vsub.s32 0, %v2971
      %v2973 = vrot.slane %v2968, %v2972
      %v2975 = vmul.f32 %v2962, %v2973
      %v2976 = vmul.f32 %v2965, %v2973
      %v2977 = vld [vmem:[%s12] sm:$0x1]
      %v2979 = vlaneseq
      %v2980 = vshrl.u32 %v2979, 7
      %v2981 = vsub.s32 0, %v2980
      %v2982 = vrot.slane %v2977, %v2981
      %v2984 = vadd.f32 %v2975, %v2982
      %v2985 = vadd.f32 %v2976, %v2982
      %v2986 = vxor.u32 %v2984, 2147483648
      %v2987 = vxor.u32 %v2985, 2147483648
      %v2988 = vmul.f32 %v2986, 1.442695
      %v2989 = vpow.pop %v2988
      %v2990 = vmul.f32 %v2987, 1.442695
      %v2991 = vpow.pop %v2990
      %v2992 = vadd.f32 %v2989, 1.0
      %v2993 = vadd.f32 %v2991, 1.0
      %v2994 = vrcp.pop %v2992
      %v2995 = vmul.f32 1.0, %v2994
      %v2996 = vrcp.pop %v2993
      %v2997 = vmul.f32 1.0, %v2996
      %v2998 = vmul.f32 %v2984, %v2995
      %v2999 = vmul.f32 %v2985, %v2997
      %3000 = vst.msk [vmem:[%s440] sm:$0xff] %vm460, %v2998
      %3001 = vst.msk [vmem:[%s440 + $0x8] sm:$0xff] %vm460, %v2999
      %p3002 = scmp.lt.s32.totalorder %s24, 1
      %s3003 = scalar_select %p3002, %s24, 1
      %s3004 = smul.addr %s3003, 2
      %s3005 = smul.addr %s3004, 8
      %s3006 = scalar_lea.vmem %s13, %s3005
      // Predicated region
      $region73: #{gat_featurehw_forward.1} parent=71 // pred_check
        %p3007 = pneg %p320
      $region74: #{gat_featurehw_forward.1} parent=71 // pred_check_branch
        %3009 = sbr.rel (%p3007) target = $region76
      $region75: #{gat_featurehw_forward.1} parent=71 // pred_region
        _
      $region76: #{gat_featurehw_forward.1} parent=71 // pred_fallthru
        _
    $region72: #{gat_featurehw_forward.1} parent=5 // pred_fallthru
      _
    %p3010 = scmp.le.s32.totalorder 2, %s19
    // Predicated region
    $region77: #{gat_featurehw_forward.1} parent=5 // pred_check
      %p3011 = pneg %p3010
    $region78: #{gat_featurehw_forward.1} parent=5 // pred_check_branch
      %3013 = sbr.rel (%p3011) target = $region80
    $region79: #{gat_featurehw_forward.1} parent=5 // pred_region
      %s3014 = ssub.s32 %s19, 2
      // Predicated region
      $region81: #{gat_featurehw_forward.1} parent=79 // pred_check
        %p3015 = pneg %p326
      $region82: #{gat_featurehw_forward.1} parent=79 // pred_check_branch
        %3017 = sbr.rel (%p3015) target = $region84
      $region83: #{gat_featurehw_forward.1} parent=79 // pred_region
        %p3018 = scmp.lt.s32.totalorder %s25, 1
        %s3019 = scalar_select %p3018, %s25, 1
        %s3020 = smul.addr %s3019, 2
        %s3021 = smul.addr %s3020, 8
        %s3022 = scalar_lea.vmem %s13, %s3021
      $region84: #{gat_featurehw_forward.1} parent=79 // pred_fallthru
        _
    $region80: #{gat_featurehw_forward.1} parent=5 // pred_fallthru
      _
  $region6: #{gat_featurehw_forward.1} parent=0 // loop_footer
    %s23 = sadd.s32 1, %s19
  $region7: #{gat_featurehw_forward.1} parent=0 // loop_footer_branch
    %18 = sbr.rel target = $region3
  $region8: #{gat_featurehw_forward.1} parent=0 // loop_exit
    _

</llo_original>
